<compile_context>
chip_gen: v6e
topology: v6e:2x2x1
jax: 0.10.0
libtpu: 0.0.40
codegen_flags: <defaults>
</compile_context>

<pallas_src>
import functools

import jax
import jax.numpy as jnp
from jax.experimental import pallas as pl
from jax.experimental.pallas import tpu as pltpu

EPS = 1e-5

# Abramowitz & Stegun 7.1.26 erf approximation (|err| <= 1.5e-7); uses only
# ops with guaranteed Mosaic lowerings (mul/add/div/exp/where).
_A1, _A2, _A3, _A4, _A5, _P = (0.254829592, -0.284496736, 1.421413741,
                               -1.453152027, 1.061405429, 0.3275911)


def _erf(x):
    s = jnp.where(x >= 0.0, jnp.float32(1.0), jnp.float32(-1.0))
    a = x * s
    t = 1.0 / (1.0 + _P * a)
    poly = ((((_A5 * t + _A4) * t + _A3) * t + _A2) * t + _A1) * t
    return s * (1.0 - poly * jnp.exp(-a * a))


def _gelu_exact(x):
    # matches nn.GELU() (erf form) to ~1e-7
    return 0.5 * x * (1.0 + _erf(x * 0.7071067811865476))


# --------------------------------------------------------------------------
# Kernel: full PET stack (all layers) for one batch block per grid step.
# --------------------------------------------------------------------------
def pet_kernel(x_ref, bias_ref, sm_ref, w_ref, v_ref, o_ref, *,
               num_layers, num_heads):
    Bb, T, D = x_ref.shape
    H = num_heads
    hd = D // H
    f32 = jnp.float32
    bf16 = jnp.bfloat16
    inv_td = 1.0 / float(T * D)

    xe = x_ref[...].astype(f32)        # (Bb, T, D)
    bias = bias_ref[...].astype(f32)   # (Bb, 1, T) additive key-padding bias
    sm = sm_ref[...].astype(f32)       # (Bb, T, 1) multiplicative sequence mask

    def gnorm(a, g, b):
        # GroupNorm(1, T): per-sample stats over (T, D); g/b pre-broadcast (T, D).
        mu = jnp.sum(jnp.sum(a, axis=2, keepdims=True), axis=1,
                     keepdims=True) * inv_td
        d = a - mu
        var = jnp.sum(jnp.sum(d * d, axis=2, keepdims=True), axis=1,
                      keepdims=True) * inv_td
        return d * jax.lax.rsqrt(var + EPS) * g[None] + b[None]

    for l in range(num_layers):
        # --- static unpack of the parameter slabs (all slices start at 0 lanes)
        wqkv = w_ref[l, 0:D, :]                       # (D, 3D)  bf16, q pre-scaled
        w1 = w_ref[l, 2 * D:3 * D, 0:2 * D]           # (D, 2D)  bf16
        w2 = w_ref[l, 3 * D:5 * D, 0:D]               # (2D, D)  bf16
        bqkv = v_ref[l, 0:1, 0:3 * D]                 # (1, 3D)  f32
        bo = v_ref[l, 1:2, 0:D]                       # (1, D)
        b1 = v_ref[l, 2:3, 0:2 * D]                   # (1, 2D)
        b2 = v_ref[l, 3:4, 0:D]                       # (1, D)
        g1 = v_ref[l, 8:8 + T, 0:D]                   # (T, D)
        be1 = v_ref[l, 8 + T:8 + 2 * T, 0:D]
        g2 = v_ref[l, 8 + 2 * T:8 + 3 * T, 0:D]
        be2 = v_ref[l, 8 + 3 * T:8 + 4 * T, 0:D]

        # ---- GroupNorm #1
        x1 = gnorm(xe, g1, be1)                       # (Bb, T, D) f32

        # ---- Fused QKV projection: one (Bb*T, D) @ (D, 3D) bf16 MXU push.
        qkv = jnp.dot(x1.reshape(Bb * T, D).astype(bf16), wqkv,
                      preferred_element_type=f32) + bqkv          # (Bb*T, 3D)
        qkv16 = qkv.astype(bf16)

        # ---- Attention, per head (static unroll).  No concatenates; bias is
        #      broadcast directly; head merge = per-head wo-block accumulation.
        attn = None
        for h in range(H):
            q_h = qkv16[:, h * hd:(h + 1) * hd].reshape(Bb, T, hd)
            k_h = qkv16[:, D + h * hd:D + (h + 1) * hd].reshape(Bb, T, hd)
            v_h = qkv16[:, 2 * D + h * hd:2 * D + (h + 1) * hd].reshape(Bb, T, hd)

            s = jnp.einsum('btd,bsd->bts', q_h, k_h,
                           preferred_element_type=f32) + bias      # (Bb, T, T)
            s = s - jnp.max(s, axis=-1, keepdims=True)
            p = jnp.exp(s)
            p = p * pl.reciprocal(jnp.sum(p, axis=-1, keepdims=True),
                                  approx=True)
            ctx = jnp.einsum('bts,bsd->btd', p.astype(bf16), v_h,
                             preferred_element_type=f32)           # (Bb, T, hd)

            wo_h = w_ref[l, D + h * hd:D + (h + 1) * hd, 0:D]      # (hd, D) bf16
            part = jnp.dot(ctx.reshape(Bb * T, hd).astype(bf16), wo_h,
                           preferred_element_type=f32)             # (Bb*T, D)
            attn = part if attn is None else attn + part
        attn = attn + bo

        # layer_scale disabled; Dropout / StochasticDepth are identity (eval).
        x2 = attn.reshape(Bb, T, D) + xe

        # ---- GroupNorm #2 + MLP (Linear -> exact GELU -> Linear)
        x3 = gnorm(x2, g2, be2)
        h1 = jnp.dot(x3.reshape(Bb * T, D).astype(bf16), w1,
                     preferred_element_type=f32) + b1              # (Bb*T, 2D)
        h1 = _gelu_exact(h1)
        h2 = jnp.dot(h1.astype(bf16), w2, preferred_element_type=f32) + b2

        # residual + multiplicative sequence masking (end of every block)
        xe = (h2.reshape(Bb, T, D) + x2) * sm

    o_ref[...] = xe.astype(o_ref.dtype)


# --------------------------------------------------------------------------
# Wrapper: pack parameter slabs, pick block sizes, launch one pallas_call.
# --------------------------------------------------------------------------
def _pack_params(layer_params, T, D, num_heads):
    """Two slabs: weights (L, 5D, 3D) bf16 ; biases/affines (L, 8+4T, 3D) f32."""
    H = num_heads
    hd = D // H
    scale = 1.0 / float(hd) ** 0.5
    W3 = 3 * D
    w_rows, v_rows = 5 * D, 8 + 4 * T
    w_list, v_list = [], []
    for p in layer_params:
        wq = p["wq"] * scale                      # fold 1/sqrt(hd) into q
        bq = p["bq"] * scale
        wqkv_t = jnp.concatenate([wq, p["wk"], p["wv"]], axis=0).T   # (D, 3D)

        Wl = jnp.zeros((w_rows, W3), jnp.float32)
        Wl = Wl.at[0:D, :].set(wqkv_t)
        Wl = Wl.at[D:2 * D, 0:D].set(p["wo"].T)
        Wl = Wl.at[2 * D:3 * D, 0:2 * D].set(p["w1"].T)
        Wl = Wl.at[3 * D:5 * D, 0:D].set(p["w2"].T)
        w_list.append(Wl)

        Vl = jnp.zeros((v_rows, W3), jnp.float32)
        Vl = Vl.at[0, 0:3 * D].set(
            jnp.concatenate([bq, p["bk"], p["bv"]], axis=1)[0])
        Vl = Vl.at[1, 0:D].set(p["bo"][0])
        Vl = Vl.at[2, 0:2 * D].set(p["bw1"][0])
        Vl = Vl.at[3, 0:D].set(p["bw2"][0])
        Vl = Vl.at[8:8 + T, 0:D].set(jnp.broadcast_to(p["g1"], (T, D)))
        Vl = Vl.at[8 + T:8 + 2 * T, 0:D].set(jnp.broadcast_to(p["be1"], (T, D)))
        Vl = Vl.at[8 + 2 * T:8 + 3 * T, 0:D].set(jnp.broadcast_to(p["g2"], (T, D)))
        Vl = Vl.at[8 + 3 * T:8 + 4 * T, 0:D].set(jnp.broadcast_to(p["be2"], (T, D)))
        v_list.append(Vl)

    w_slab = jnp.stack(w_list).astype(jnp.bfloat16)
    v_slab = jnp.stack(v_list).astype(jnp.float32)
    return w_slab, v_slab


def _vmem_limit_bytes():
    # Explicit scoped-VMEM limit (feedback: 16 MiB default on v5e is too small;
    # 64 MiB physical ceiling on v7x).  Safe fallback if query is unavailable.
    try:
        cap = int(getattr(pltpu.get_tpu_info(), "vmem_capacity_bytes", 0))
    except Exception:
        cap = 0
    if cap <= 0:
        cap = 64 * 1024 * 1024
    return int(min(max(cap // 2, 32 * 1024 * 1024), 100 * 1024 * 1024))


def _choose_batch_splits(B, bytes_per_sample, vmem_limit):
    """Largest per-block batch that fits a VMEM budget, but prefer >=2 blocks
    so BlockSpec double-buffering overlaps DMA with compute (and v7x megacore
    gets work on both TensorCores)."""
    budget = max(vmem_limit // 3, 1 << 20)
    max_bb = max(1, budget // max(int(bytes_per_sample), 1))
    splits = B
    for s in range(1, B + 1):
        if B % s == 0 and (B // s) <= max_bb:
            splits = s
            break
    if splits == 1 and B >= 2:
        for s in (2, 3, 4):
            if B % s == 0:
                splits = s
                break
    return splits


def pet_transformer(x_tbd, padding_mask, sequence_mask_tb1, layer_params,
                    num_heads, batch_splits=None):
    """Full PointEdgeTransformer forward.  PyTorch layout inputs:
       x (T, B, D), padding_mask (B, T) bool [True = pad], sequence_mask (T, B, 1)."""
    T, B, D = x_tbd.shape
    L = len(layer_params)

    x_btd = jnp.transpose(x_tbd, (1, 0, 2)).astype(jnp.float32)          # (B,T,D)
    attn_bias = jnp.where(padding_mask, jnp.float32(-1e30),
                          jnp.float32(0.0))[:, None, :]                  # (B,1,T)
    sm_bt1 = jnp.transpose(sequence_mask_tb1, (1, 0, 2)).astype(jnp.float32)

    w_slab, v_slab = _pack_params(layer_params, T, D, num_heads)

    vmem_limit = _vmem_limit_bytes()
    if batch_splits is None:
        bytes_per_sample = 4 * (T * D * 32 + T * T * 16)   # rough live-f32 estimate
        batch_splits = _choose_batch_splits(B, bytes_per_sample, vmem_limit)
    Bb = B // batch_splits

    kernel = functools.partial(pet_kernel, num_layers=L, num_heads=num_heads)
    out = pl.pallas_call(
        kernel,
        out_shape=jax.ShapeDtypeStruct((B, T, D), jnp.float32),
        grid=(batch_splits,),
        in_specs=[
            pl.BlockSpec((Bb, T, D), lambda i: (i, 0, 0)),      # x block
            pl.BlockSpec((Bb, 1, T), lambda i: (i, 0, 0)),      # additive pad bias
            pl.BlockSpec((Bb, T, 1), lambda i: (i, 0, 0)),      # sequence mask
            pl.BlockSpec(w_slab.shape, lambda i: (0, 0, 0)),    # weight slab (resident)
            pl.BlockSpec(v_slab.shape, lambda i: (0, 0, 0)),    # bias/affine slab
        ],
        out_specs=pl.BlockSpec((Bb, T, D), lambda i: (i, 0, 0)),
        compiler_params=pltpu.CompilerParams(
            dimension_semantics=("parallel",),
            vmem_limit_bytes=vmem_limit),
    )(x_btd, attn_bias, sm_bt1, w_slab, v_slab)

    return jnp.transpose(out, (1, 0, 2))                        # back to (T, B, D)


# --------------------------------------------------------------------------
# Plain-JAX reference (mirrors the PyTorch forward, f32) for validation.
# --------------------------------------------------------------------------
def ref_block(x_tbd, pad_mask, seq_mask_tb1, p, H):
    T, B, D = x_tbd.shape
    hd = D // H
    enc = jnp.transpose(x_tbd, (1, 0, 2))                                # (B,T,D)
    mu = enc.mean(axis=(1, 2), keepdims=True)
    var = ((enc - mu) ** 2).mean(axis=(1, 2), keepdims=True)
    g1 = p["g1"][:, 0][None, :, None]
    be1 = p["be1"][:, 0][None, :, None]
    x1 = (enc - mu) / jnp.sqrt(var + EPS) * g1 + be1

    q = x1 @ p["wq"].T + p["bq"]
    k = x1 @ p["wk"].T + p["bk"]
    v = x1 @ p["wv"].T + p["bv"]
    qh = q.reshape(B, T, H, hd).transpose(0, 2, 1, 3)
    kh = k.reshape(B, T, H, hd).transpose(0, 2, 1, 3)
    vh = v.reshape(B, T, H, hd).transpose(0, 2, 1, 3)
    s = (qh / jnp.sqrt(float(hd))) @ kh.transpose(0, 1, 3, 2)            # (B,H,T,T)
    s = jnp.where(pad_mask[:, None, None, :], jnp.float32(-1e30), s)
    a = jax.nn.softmax(s, axis=-1)
    o = (a @ vh).transpose(0, 2, 1, 3).reshape(B, T, D)
    upd = o @ p["wo"].T + p["bo"]

    x2 = upd + enc
    mu2 = x2.mean(axis=(1, 2), keepdims=True)
    var2 = ((x2 - mu2) ** 2).mean(axis=(1, 2), keepdims=True)
    g2 = p["g2"][:, 0][None, :, None]
    be2 = p["be2"][:, 0][None, :, None]
    x3 = (x2 - mu2) / jnp.sqrt(var2 + EPS) * g2 + be2
    h1 = jax.nn.gelu(x3 @ p["w1"].T + p["bw1"], approximate=False)
    h2 = h1 @ p["w2"].T + p["bw2"]
    return jnp.transpose(h2 + x2, (1, 0, 2)) * seq_mask_tb1


def ref_transformer(x_tbd, pad_mask, seq_mask_tb1, layer_params, H):
    enc = x_tbd
    for p in layer_params:
        enc = ref_block(enc, pad_mask, seq_mask_tb1, p, H)
    return enc


# --------------------------------------------------------------------------
# Deterministic parameter init (synthetic; shapes follow the module __init__).
# --------------------------------------------------------------------------
def init_layer_params(key, T, D):
    ks = jax.random.split(key, 16)
    w = lambda k, shape, s=0.05: (s * jax.random.normal(k, shape)).astype(jnp.float32)
    return {
        "g1": (1.0 + 0.1 * jax.random.normal(ks[0], (T, 1))).astype(jnp.float32),
        "be1": w(ks[1], (T, 1), 0.1),
        "wq": w(ks[2], (D, D)), "bq": w(ks[3], (1, D), 0.02),
        "wk": w(ks[4], (D, D)), "bk": w(ks[5], (1, D), 0.02),
        "wv": w(ks[6], (D, D)), "bv": w(ks[7], (1, D), 0.02),
        "wo": w(ks[8], (D, D)), "bo": w(ks[9], (1, D), 0.02),
        "g2": (1.0 + 0.1 * jax.random.normal(ks[10], (T, 1))).astype(jnp.float32),
        "be2": w(ks[11], (T, 1), 0.1),
        "w1": w(ks[12], (2 * D, D)), "bw1": w(ks[13], (1, 2 * D), 0.02),
        "w2": w(ks[14], (D, 2 * D)), "bw2": w(ks[15], (1, D), 0.02),
    }


if __name__ == "__main__":
    B, T, D, H = 2, 8, 32, 4          # batch, nMaxJet, hidden_dim, PET_num_heads
    NUM_LAYERS = 2

    root = jax.random.PRNGKey(0)
    kx, kp = jax.random.split(root)
    x_tbd = jax.random.normal(kx, (T, B, D), dtype=jnp.float32)

    # padding_mask: True = padded key position (no batch row fully masked)
    padding_mask = jnp.zeros((B, T), dtype=bool)
    padding_mask = padding_mask.at[0, 6:].set(True)
    padding_mask = padding_mask.at[1, 5:].set(True)
    # sequence_mask: 1 for valid tokens, (T, B, 1)
    sequence_mask = (~padding_mask).T[:, :, None].astype(jnp.float32)

    layer_keys = jax.random.split(kp, NUM_LAYERS)
    layer_params = [init_layer_params(k, T, D) for k in layer_keys]

    fwd = jax.jit(lambda x, pm, sm, lp: pet_transformer(x, pm, sm, lp, H))
    out = jax.block_until_ready(fwd(x_tbd, padding_mask, sequence_mask, layer_params))

    ref = ref_transformer(x_tbd, padding_mask, sequence_mask, layer_params, H)
    assert out.shape == (T, B, D)
    err = float(jnp.max(jnp.abs(out - ref)))
    # bf16 MXU operands + approx reciprocal => relaxed tolerance vs the f32 ref.
    assert err < 2e-2, f"max abs err {err}"
    print("KERNEL_OK")
</pallas_src>

<mosaic_0001>
module attributes {stable_mosaic.version = 11 : i64} {
  func.func @pet_kernel(%arg0: i32, %arg1: memref<1x8x32xf32, #tpu.memory_space<vmem>>, %arg2: memref<1x1x8xf32, #tpu.memory_space<vmem>>, %arg3: memref<1x8x1xf32, #tpu.memory_space<vmem>>, %arg4: memref<2x160x96xbf16, #tpu.memory_space<vmem>>, %arg5: memref<2x40x96xf32, #tpu.memory_space<vmem>>, %arg6: memref<1x8x32xf32, #tpu.memory_space<vmem>>) attributes {dimension_semantics = [#tpu.dimension_semantics<parallel>], iteration_bounds = array<i64: 2>, scalar_prefetch = 0 : i64, scratch_operands = 0 : i64, tpu.core_type = #tpu.core_type<tc>, window_params = [{transform_indices = @transform_0, window_bounds = array<i64: 1, 8, 32>}, {transform_indices = @transform_1, window_bounds = array<i64: 1, 1, 8>}, {transform_indices = @transform_2, window_bounds = array<i64: 1, 8, 1>}, {pipeline_mode = #tpu.pipeline_mode<synchronous>, transform_indices = @transform_3, window_bounds = array<i64: 2, 160, 96>}, {pipeline_mode = #tpu.pipeline_mode<synchronous>, transform_indices = @transform_4, window_bounds = array<i64: 2, 40, 96>}, {transform_indices = @transform_5, window_bounds = array<i64: 1, 8, 32>}]} {
    %c0 = arith.constant 0 : index
    %c0_0 = arith.constant 0 : index
    %c0_1 = arith.constant 0 : index
    %0 = vector.load %arg1[%c0, %c0_0, %c0_1] : memref<1x8x32xf32, #tpu.memory_space<vmem>>, vector<1x8x32xf32>
    %c0_2 = arith.constant 0 : index
    %c0_3 = arith.constant 0 : index
    %c0_4 = arith.constant 0 : index
    %1 = vector.load %arg2[%c0_2, %c0_3, %c0_4] : memref<1x1x8xf32, #tpu.memory_space<vmem>>, vector<1x1x8xf32>
    %c0_5 = arith.constant 0 : index
    %c0_6 = arith.constant 0 : index
    %c0_7 = arith.constant 0 : index
    %2 = vector.load %arg3[%c0_5, %c0_6, %c0_7] : memref<1x8x1xf32, #tpu.memory_space<vmem>>, vector<1x8x1xf32>
    %c0_8 = arith.constant 0 : index
    %c0_9 = arith.constant 0 : index
    %c0_10 = arith.constant 0 : index
    %3 = vector.load %arg4[%c0_8, %c0_9, %c0_10] : memref<2x160x96xbf16, #tpu.memory_space<vmem>>, vector<1x32x96xbf16>
    %4 = vector.shape_cast %3 : vector<1x32x96xbf16> to vector<32x96xbf16>
    %c0_11 = arith.constant 0 : index
    %c64 = arith.constant 64 : index
    %c0_12 = arith.constant 0 : index
    %5 = vector.load %arg4[%c0_11, %c64, %c0_12] : memref<2x160x96xbf16, #tpu.memory_space<vmem>>, vector<1x32x64xbf16>
    %6 = vector.shape_cast %5 : vector<1x32x64xbf16> to vector<32x64xbf16>
    %c0_13 = arith.constant 0 : index
    %c96 = arith.constant 96 : index
    %c0_14 = arith.constant 0 : index
    %7 = vector.load %arg4[%c0_13, %c96, %c0_14] : memref<2x160x96xbf16, #tpu.memory_space<vmem>>, vector<1x64x32xbf16>
    %8 = vector.shape_cast %7 : vector<1x64x32xbf16> to vector<64x32xbf16>
    %c0_15 = arith.constant 0 : index
    %c0_16 = arith.constant 0 : index
    %c0_17 = arith.constant 0 : index
    %9 = vector.load %arg5[%c0_15, %c0_16, %c0_17] : memref<2x40x96xf32, #tpu.memory_space<vmem>>, vector<1x1x96xf32>
    %10 = vector.shape_cast %9 : vector<1x1x96xf32> to vector<1x96xf32>
    %c0_18 = arith.constant 0 : index
    %c1 = arith.constant 1 : index
    %c0_19 = arith.constant 0 : index
    %11 = vector.load %arg5[%c0_18, %c1, %c0_19] : memref<2x40x96xf32, #tpu.memory_space<vmem>>, vector<1x1x32xf32>
    %12 = vector.shape_cast %11 : vector<1x1x32xf32> to vector<1x32xf32>
    %c0_20 = arith.constant 0 : index
    %c2 = arith.constant 2 : index
    %c0_21 = arith.constant 0 : index
    %13 = vector.load %arg5[%c0_20, %c2, %c0_21] : memref<2x40x96xf32, #tpu.memory_space<vmem>>, vector<1x1x64xf32>
    %14 = vector.shape_cast %13 : vector<1x1x64xf32> to vector<1x64xf32>
    %c0_22 = arith.constant 0 : index
    %c3 = arith.constant 3 : index
    %c0_23 = arith.constant 0 : index
    %15 = vector.load %arg5[%c0_22, %c3, %c0_23] : memref<2x40x96xf32, #tpu.memory_space<vmem>>, vector<1x1x32xf32>
    %16 = vector.shape_cast %15 : vector<1x1x32xf32> to vector<1x32xf32>
    %c0_24 = arith.constant 0 : index
    %c8 = arith.constant 8 : index
    %c0_25 = arith.constant 0 : index
    %17 = vector.load %arg5[%c0_24, %c8, %c0_25] : memref<2x40x96xf32, #tpu.memory_space<vmem>>, vector<1x8x32xf32>
    %18 = vector.shape_cast %17 : vector<1x8x32xf32> to vector<8x32xf32>
    %c0_26 = arith.constant 0 : index
    %c16 = arith.constant 16 : index
    %c0_27 = arith.constant 0 : index
    %19 = vector.load %arg5[%c0_26, %c16, %c0_27] : memref<2x40x96xf32, #tpu.memory_space<vmem>>, vector<1x8x32xf32>
    %20 = vector.shape_cast %19 : vector<1x8x32xf32> to vector<8x32xf32>
    %c0_28 = arith.constant 0 : index
    %c24 = arith.constant 24 : index
    %c0_29 = arith.constant 0 : index
    %21 = vector.load %arg5[%c0_28, %c24, %c0_29] : memref<2x40x96xf32, #tpu.memory_space<vmem>>, vector<1x8x32xf32>
    %22 = vector.shape_cast %21 : vector<1x8x32xf32> to vector<8x32xf32>
    %c0_30 = arith.constant 0 : index
    %c32 = arith.constant 32 : index
    %c0_31 = arith.constant 0 : index
    %23 = vector.load %arg5[%c0_30, %c32, %c0_31] : memref<2x40x96xf32, #tpu.memory_space<vmem>>, vector<1x8x32xf32>
    %24 = vector.shape_cast %23 : vector<1x8x32xf32> to vector<8x32xf32>
    %cst = arith.constant dense<0.000000e+00> : vector<1x8xf32>
    %25 = vector.multi_reduction <add>, %0, %cst [2] : vector<1x8x32xf32> to vector<1x8xf32>
    %26 = vector.shape_cast %25 : vector<1x8xf32> to vector<1x8x1xf32>
    %cst_32 = arith.constant dense<0.000000e+00> : vector<1x1xf32>
    %27 = vector.multi_reduction <add>, %26, %cst_32 [1] : vector<1x8x1xf32> to vector<1x1xf32>
    %28 = vector.shape_cast %27 : vector<1x1xf32> to vector<1x1x1xf32>
    %cst_33 = arith.constant 3.906250e-03 : f32
    %29 = vector.broadcast %cst_33 : f32 to vector<1x1x1xf32>
    %30 = arith.mulf %28, %29 : vector<1x1x1xf32>
    %31 = vector.broadcast %30 : vector<1x1x1xf32> to vector<1x8x32xf32>
    %32 = arith.subf %0, %31 : vector<1x8x32xf32>
    %33 = arith.mulf %32, %32 : vector<1x8x32xf32>
    %cst_34 = arith.constant dense<0.000000e+00> : vector<1x8xf32>
    %34 = vector.multi_reduction <add>, %33, %cst_34 [2] : vector<1x8x32xf32> to vector<1x8xf32>
    %35 = vector.shape_cast %34 : vector<1x8xf32> to vector<1x8x1xf32>
    %cst_35 = arith.constant dense<0.000000e+00> : vector<1x1xf32>
    %36 = vector.multi_reduction <add>, %35, %cst_35 [1] : vector<1x8x1xf32> to vector<1x1xf32>
    %37 = vector.shape_cast %36 : vector<1x1xf32> to vector<1x1x1xf32>
    %cst_36 = arith.constant 3.906250e-03 : f32
    %38 = vector.broadcast %cst_36 : f32 to vector<1x1x1xf32>
    %39 = arith.mulf %37, %38 : vector<1x1x1xf32>
    %cst_37 = arith.constant 9.99999974E-6 : f32
    %40 = vector.broadcast %cst_37 : f32 to vector<1x1x1xf32>
    %41 = arith.addf %39, %40 : vector<1x1x1xf32>
    %42 = math.rsqrt %41 : vector<1x1x1xf32>
    %43 = vector.broadcast %42 : vector<1x1x1xf32> to vector<1x8x32xf32>
    %44 = arith.mulf %32, %43 : vector<1x8x32xf32>
    %45 = vector.shape_cast %18 : vector<8x32xf32> to vector<1x8x32xf32>
    %46 = arith.mulf %44, %45 : vector<1x8x32xf32>
    %47 = vector.shape_cast %20 : vector<8x32xf32> to vector<1x8x32xf32>
    %48 = arith.addf %46, %47 : vector<1x8x32xf32>
    %49 = vector.shape_cast %48 : vector<1x8x32xf32> to vector<8x32xf32>
    %50 = arith.truncf %49 : vector<8x32xf32> to vector<8x32xbf16>
    %cst_38 = arith.constant dense<0.000000e+00> : vector<8x96xf32>
    %51 = tpu.matmul %50, %4, %cst_38 {dimension_numbers = #tpu.dot_dimension_numbers<[1], [0], [0], [1], [0, 0, 1, 1], [], []>} : vector<8x32xbf16>, vector<32x96xbf16>, vector<8x96xf32> -> vector<8x96xf32>
    %52 = vector.broadcast %10 : vector<1x96xf32> to vector<8x96xf32>
    %53 = arith.addf %51, %52 : vector<8x96xf32>
    %54 = arith.truncf %53 : vector<8x96xf32> to vector<8x96xbf16>
    %55 = vector.extract_strided_slice %54 {offsets = [0, 0], sizes = [8, 8], strides = [1, 1]} : vector<8x96xbf16> to vector<8x8xbf16>
    %56 = vector.shape_cast %55 : vector<8x8xbf16> to vector<1x8x8xbf16>
    %57 = vector.extract_strided_slice %54 {offsets = [0, 32], sizes = [8, 8], strides = [1, 1]} : vector<8x96xbf16> to vector<8x8xbf16>
    %58 = vector.shape_cast %57 : vector<8x8xbf16> to vector<1x8x8xbf16>
    %59 = vector.extract_strided_slice %54 {offsets = [0, 64], sizes = [8, 8], strides = [1, 1]} : vector<8x96xbf16> to vector<8x8xbf16>
    %60 = vector.shape_cast %59 : vector<8x8xbf16> to vector<1x8x8xbf16>
    "tpu.trace_start"() <{level = 10 : i32, message = "btd,bsd->bts"}> : () -> ()
    %cst_39 = arith.constant dense<0.000000e+00> : vector<1x8x8xf32>
    %61 = tpu.matmul %56, %58, %cst_39 {dimension_numbers = #tpu.dot_dimension_numbers<[2], [2], [1], [1], [0, 0, 0, 1, 1, 1], [0], [0]>} : vector<1x8x8xbf16>, vector<1x8x8xbf16>, vector<1x8x8xf32> -> vector<1x8x8xf32>
    "tpu.trace_stop"() : () -> ()
    %62 = vector.broadcast %1 : vector<1x1x8xf32> to vector<1x8x8xf32>
    %63 = arith.addf %61, %62 : vector<1x8x8xf32>
    %cst_40 = arith.constant dense<0xFF800000> : vector<1x8xf32>
    %64 = vector.multi_reduction <maximumf>, %63, %cst_40 [2] : vector<1x8x8xf32> to vector<1x8xf32>
    %65 = vector.shape_cast %64 : vector<1x8xf32> to vector<1x8x1xf32>
    %66 = vector.broadcast %65 : vector<1x8x1xf32> to vector<1x8x8xf32>
    %67 = arith.subf %63, %66 : vector<1x8x8xf32>
    %68 = math.exp %67 : vector<1x8x8xf32>
    %cst_41 = arith.constant dense<0.000000e+00> : vector<1x8xf32>
    %69 = vector.multi_reduction <add>, %68, %cst_41 [2] : vector<1x8x8xf32> to vector<1x8xf32>
    %70 = vector.shape_cast %69 : vector<1x8xf32> to vector<1x8x1xf32>
    %71 = tpu.reciprocal %70 {approx = true} : vector<1x8x1xf32> -> vector<1x8x1xf32>
    %72 = vector.broadcast %71 : vector<1x8x1xf32> to vector<1x8x8xf32>
    %73 = arith.mulf %68, %72 : vector<1x8x8xf32>
    %74 = arith.truncf %73 : vector<1x8x8xf32> to vector<1x8x8xbf16>
    "tpu.trace_start"() <{level = 10 : i32, message = "bts,bsd->btd"}> : () -> ()
    %cst_42 = arith.constant dense<0.000000e+00> : vector<1x8x8xf32>
    %75 = tpu.matmul %74, %60, %cst_42 {dimension_numbers = #tpu.dot_dimension_numbers<[2], [1], [1], [2], [0, 0, 0, 1, 1, 2], [0], [0]>} : vector<1x8x8xbf16>, vector<1x8x8xbf16>, vector<1x8x8xf32> -> vector<1x8x8xf32>
    "tpu.trace_stop"() : () -> ()
    %c0_43 = arith.constant 0 : index
    %c32_44 = arith.constant 32 : index
    %c0_45 = arith.constant 0 : index
    %76 = vector.load %arg4[%c0_43, %c32_44, %c0_45] : memref<2x160x96xbf16, #tpu.memory_space<vmem>>, vector<1x8x32xbf16>
    %77 = vector.shape_cast %76 : vector<1x8x32xbf16> to vector<8x32xbf16>
    %78 = vector.shape_cast %75 : vector<1x8x8xf32> to vector<8x8xf32>
    %79 = arith.truncf %78 : vector<8x8xf32> to vector<8x8xbf16>
    %cst_46 = arith.constant dense<0.000000e+00> : vector<8x32xf32>
    %80 = tpu.matmul %79, %77, %cst_46 {dimension_numbers = #tpu.dot_dimension_numbers<[1], [0], [0], [1], [0, 0, 1, 1], [], []>} : vector<8x8xbf16>, vector<8x32xbf16>, vector<8x32xf32> -> vector<8x32xf32>
    %81 = vector.extract_strided_slice %54 {offsets = [0, 8], sizes = [8, 8], strides = [1, 1]} : vector<8x96xbf16> to vector<8x8xbf16>
    %82 = vector.shape_cast %81 : vector<8x8xbf16> to vector<1x8x8xbf16>
    %83 = vector.extract_strided_slice %54 {offsets = [0, 40], sizes = [8, 8], strides = [1, 1]} : vector<8x96xbf16> to vector<8x8xbf16>
    %84 = vector.shape_cast %83 : vector<8x8xbf16> to vector<1x8x8xbf16>
    %85 = vector.extract_strided_slice %54 {offsets = [0, 72], sizes = [8, 8], strides = [1, 1]} : vector<8x96xbf16> to vector<8x8xbf16>
    %86 = vector.shape_cast %85 : vector<8x8xbf16> to vector<1x8x8xbf16>
    "tpu.trace_start"() <{level = 10 : i32, message = "btd,bsd->bts"}> : () -> ()
    %cst_47 = arith.constant dense<0.000000e+00> : vector<1x8x8xf32>
    %87 = tpu.matmul %82, %84, %cst_47 {dimension_numbers = #tpu.dot_dimension_numbers<[2], [2], [1], [1], [0, 0, 0, 1, 1, 1], [0], [0]>} : vector<1x8x8xbf16>, vector<1x8x8xbf16>, vector<1x8x8xf32> -> vector<1x8x8xf32>
    "tpu.trace_stop"() : () -> ()
    %88 = vector.broadcast %1 : vector<1x1x8xf32> to vector<1x8x8xf32>
    %89 = arith.addf %87, %88 : vector<1x8x8xf32>
    %cst_48 = arith.constant dense<0xFF800000> : vector<1x8xf32>
    %90 = vector.multi_reduction <maximumf>, %89, %cst_48 [2] : vector<1x8x8xf32> to vector<1x8xf32>
    %91 = vector.shape_cast %90 : vector<1x8xf32> to vector<1x8x1xf32>
    %92 = vector.broadcast %91 : vector<1x8x1xf32> to vector<1x8x8xf32>
    %93 = arith.subf %89, %92 : vector<1x8x8xf32>
    %94 = math.exp %93 : vector<1x8x8xf32>
    %cst_49 = arith.constant dense<0.000000e+00> : vector<1x8xf32>
    %95 = vector.multi_reduction <add>, %94, %cst_49 [2] : vector<1x8x8xf32> to vector<1x8xf32>
    %96 = vector.shape_cast %95 : vector<1x8xf32> to vector<1x8x1xf32>
    %97 = tpu.reciprocal %96 {approx = true} : vector<1x8x1xf32> -> vector<1x8x1xf32>
    %98 = vector.broadcast %97 : vector<1x8x1xf32> to vector<1x8x8xf32>
    %99 = arith.mulf %94, %98 : vector<1x8x8xf32>
    %100 = arith.truncf %99 : vector<1x8x8xf32> to vector<1x8x8xbf16>
    "tpu.trace_start"() <{level = 10 : i32, message = "bts,bsd->btd"}> : () -> ()
    %cst_50 = arith.constant dense<0.000000e+00> : vector<1x8x8xf32>
    %101 = tpu.matmul %100, %86, %cst_50 {dimension_numbers = #tpu.dot_dimension_numbers<[2], [1], [1], [2], [0, 0, 0, 1, 1, 2], [0], [0]>} : vector<1x8x8xbf16>, vector<1x8x8xbf16>, vector<1x8x8xf32> -> vector<1x8x8xf32>
    "tpu.trace_stop"() : () -> ()
    %c0_51 = arith.constant 0 : index
    %c40 = arith.constant 40 : index
    %c0_52 = arith.constant 0 : index
    %102 = vector.load %arg4[%c0_51, %c40, %c0_52] : memref<2x160x96xbf16, #tpu.memory_space<vmem>>, vector<1x8x32xbf16>
    %103 = vector.shape_cast %102 : vector<1x8x32xbf16> to vector<8x32xbf16>
    %104 = vector.shape_cast %101 : vector<1x8x8xf32> to vector<8x8xf32>
    %105 = arith.truncf %104 : vector<8x8xf32> to vector<8x8xbf16>
    %cst_53 = arith.constant dense<0.000000e+00> : vector<8x32xf32>
    %106 = tpu.matmul %105, %103, %cst_53 {dimension_numbers = #tpu.dot_dimension_numbers<[1], [0], [0], [1], [0, 0, 1, 1], [], []>} : vector<8x8xbf16>, vector<8x32xbf16>, vector<8x32xf32> -> vector<8x32xf32>
    %107 = arith.addf %80, %106 : vector<8x32xf32>
    %108 = vector.extract_strided_slice %54 {offsets = [0, 16], sizes = [8, 8], strides = [1, 1]} : vector<8x96xbf16> to vector<8x8xbf16>
    %109 = vector.shape_cast %108 : vector<8x8xbf16> to vector<1x8x8xbf16>
    %110 = vector.extract_strided_slice %54 {offsets = [0, 48], sizes = [8, 8], strides = [1, 1]} : vector<8x96xbf16> to vector<8x8xbf16>
    %111 = vector.shape_cast %110 : vector<8x8xbf16> to vector<1x8x8xbf16>
    %112 = vector.extract_strided_slice %54 {offsets = [0, 80], sizes = [8, 8], strides = [1, 1]} : vector<8x96xbf16> to vector<8x8xbf16>
    %113 = vector.shape_cast %112 : vector<8x8xbf16> to vector<1x8x8xbf16>
    "tpu.trace_start"() <{level = 10 : i32, message = "btd,bsd->bts"}> : () -> ()
    %cst_54 = arith.constant dense<0.000000e+00> : vector<1x8x8xf32>
    %114 = tpu.matmul %109, %111, %cst_54 {dimension_numbers = #tpu.dot_dimension_numbers<[2], [2], [1], [1], [0, 0, 0, 1, 1, 1], [0], [0]>} : vector<1x8x8xbf16>, vector<1x8x8xbf16>, vector<1x8x8xf32> -> vector<1x8x8xf32>
    "tpu.trace_stop"() : () -> ()
    %115 = vector.broadcast %1 : vector<1x1x8xf32> to vector<1x8x8xf32>
    %116 = arith.addf %114, %115 : vector<1x8x8xf32>
    %cst_55 = arith.constant dense<0xFF800000> : vector<1x8xf32>
    %117 = vector.multi_reduction <maximumf>, %116, %cst_55 [2] : vector<1x8x8xf32> to vector<1x8xf32>
    %118 = vector.shape_cast %117 : vector<1x8xf32> to vector<1x8x1xf32>
    %119 = vector.broadcast %118 : vector<1x8x1xf32> to vector<1x8x8xf32>
    %120 = arith.subf %116, %119 : vector<1x8x8xf32>
    %121 = math.exp %120 : vector<1x8x8xf32>
    %cst_56 = arith.constant dense<0.000000e+00> : vector<1x8xf32>
    %122 = vector.multi_reduction <add>, %121, %cst_56 [2] : vector<1x8x8xf32> to vector<1x8xf32>
    %123 = vector.shape_cast %122 : vector<1x8xf32> to vector<1x8x1xf32>
    %124 = tpu.reciprocal %123 {approx = true} : vector<1x8x1xf32> -> vector<1x8x1xf32>
    %125 = vector.broadcast %124 : vector<1x8x1xf32> to vector<1x8x8xf32>
    %126 = arith.mulf %121, %125 : vector<1x8x8xf32>
    %127 = arith.truncf %126 : vector<1x8x8xf32> to vector<1x8x8xbf16>
    "tpu.trace_start"() <{level = 10 : i32, message = "bts,bsd->btd"}> : () -> ()
    %cst_57 = arith.constant dense<0.000000e+00> : vector<1x8x8xf32>
    %128 = tpu.matmul %127, %113, %cst_57 {dimension_numbers = #tpu.dot_dimension_numbers<[2], [1], [1], [2], [0, 0, 0, 1, 1, 2], [0], [0]>} : vector<1x8x8xbf16>, vector<1x8x8xbf16>, vector<1x8x8xf32> -> vector<1x8x8xf32>
    "tpu.trace_stop"() : () -> ()
    %c0_58 = arith.constant 0 : index
    %c48 = arith.constant 48 : index
    %c0_59 = arith.constant 0 : index
    %129 = vector.load %arg4[%c0_58, %c48, %c0_59] : memref<2x160x96xbf16, #tpu.memory_space<vmem>>, vector<1x8x32xbf16>
    %130 = vector.shape_cast %129 : vector<1x8x32xbf16> to vector<8x32xbf16>
    %131 = vector.shape_cast %128 : vector<1x8x8xf32> to vector<8x8xf32>
    %132 = arith.truncf %131 : vector<8x8xf32> to vector<8x8xbf16>
    %cst_60 = arith.constant dense<0.000000e+00> : vector<8x32xf32>
    %133 = tpu.matmul %132, %130, %cst_60 {dimension_numbers = #tpu.dot_dimension_numbers<[1], [0], [0], [1], [0, 0, 1, 1], [], []>} : vector<8x8xbf16>, vector<8x32xbf16>, vector<8x32xf32> -> vector<8x32xf32>
    %134 = arith.addf %107, %133 : vector<8x32xf32>
    %135 = vector.extract_strided_slice %54 {offsets = [0, 24], sizes = [8, 8], strides = [1, 1]} : vector<8x96xbf16> to vector<8x8xbf16>
    %136 = vector.shape_cast %135 : vector<8x8xbf16> to vector<1x8x8xbf16>
    %137 = vector.extract_strided_slice %54 {offsets = [0, 56], sizes = [8, 8], strides = [1, 1]} : vector<8x96xbf16> to vector<8x8xbf16>
    %138 = vector.shape_cast %137 : vector<8x8xbf16> to vector<1x8x8xbf16>
    %139 = vector.extract_strided_slice %54 {offsets = [0, 88], sizes = [8, 8], strides = [1, 1]} : vector<8x96xbf16> to vector<8x8xbf16>
    %140 = vector.shape_cast %139 : vector<8x8xbf16> to vector<1x8x8xbf16>
    "tpu.trace_start"() <{level = 10 : i32, message = "btd,bsd->bts"}> : () -> ()
    %cst_61 = arith.constant dense<0.000000e+00> : vector<1x8x8xf32>
    %141 = tpu.matmul %136, %138, %cst_61 {dimension_numbers = #tpu.dot_dimension_numbers<[2], [2], [1], [1], [0, 0, 0, 1, 1, 1], [0], [0]>} : vector<1x8x8xbf16>, vector<1x8x8xbf16>, vector<1x8x8xf32> -> vector<1x8x8xf32>
    "tpu.trace_stop"() : () -> ()
    %142 = vector.broadcast %1 : vector<1x1x8xf32> to vector<1x8x8xf32>
    %143 = arith.addf %141, %142 : vector<1x8x8xf32>
    %cst_62 = arith.constant dense<0xFF800000> : vector<1x8xf32>
    %144 = vector.multi_reduction <maximumf>, %143, %cst_62 [2] : vector<1x8x8xf32> to vector<1x8xf32>
    %145 = vector.shape_cast %144 : vector<1x8xf32> to vector<1x8x1xf32>
    %146 = vector.broadcast %145 : vector<1x8x1xf32> to vector<1x8x8xf32>
    %147 = arith.subf %143, %146 : vector<1x8x8xf32>
    %148 = math.exp %147 : vector<1x8x8xf32>
    %cst_63 = arith.constant dense<0.000000e+00> : vector<1x8xf32>
    %149 = vector.multi_reduction <add>, %148, %cst_63 [2] : vector<1x8x8xf32> to vector<1x8xf32>
    %150 = vector.shape_cast %149 : vector<1x8xf32> to vector<1x8x1xf32>
    %151 = tpu.reciprocal %150 {approx = true} : vector<1x8x1xf32> -> vector<1x8x1xf32>
    %152 = vector.broadcast %151 : vector<1x8x1xf32> to vector<1x8x8xf32>
    %153 = arith.mulf %148, %152 : vector<1x8x8xf32>
    %154 = arith.truncf %153 : vector<1x8x8xf32> to vector<1x8x8xbf16>
    "tpu.trace_start"() <{level = 10 : i32, message = "bts,bsd->btd"}> : () -> ()
    %cst_64 = arith.constant dense<0.000000e+00> : vector<1x8x8xf32>
    %155 = tpu.matmul %154, %140, %cst_64 {dimension_numbers = #tpu.dot_dimension_numbers<[2], [1], [1], [2], [0, 0, 0, 1, 1, 2], [0], [0]>} : vector<1x8x8xbf16>, vector<1x8x8xbf16>, vector<1x8x8xf32> -> vector<1x8x8xf32>
    "tpu.trace_stop"() : () -> ()
    %c0_65 = arith.constant 0 : index
    %c56 = arith.constant 56 : index
    %c0_66 = arith.constant 0 : index
    %156 = vector.load %arg4[%c0_65, %c56, %c0_66] : memref<2x160x96xbf16, #tpu.memory_space<vmem>>, vector<1x8x32xbf16>
    %157 = vector.shape_cast %156 : vector<1x8x32xbf16> to vector<8x32xbf16>
    %158 = vector.shape_cast %155 : vector<1x8x8xf32> to vector<8x8xf32>
    %159 = arith.truncf %158 : vector<8x8xf32> to vector<8x8xbf16>
    %cst_67 = arith.constant dense<0.000000e+00> : vector<8x32xf32>
    %160 = tpu.matmul %159, %157, %cst_67 {dimension_numbers = #tpu.dot_dimension_numbers<[1], [0], [0], [1], [0, 0, 1, 1], [], []>} : vector<8x8xbf16>, vector<8x32xbf16>, vector<8x32xf32> -> vector<8x32xf32>
    %161 = arith.addf %134, %160 : vector<8x32xf32>
    %162 = vector.broadcast %12 : vector<1x32xf32> to vector<8x32xf32>
    %163 = arith.addf %161, %162 : vector<8x32xf32>
    %164 = vector.shape_cast %163 : vector<8x32xf32> to vector<1x8x32xf32>
    %165 = arith.addf %164, %0 : vector<1x8x32xf32>
    %cst_68 = arith.constant dense<0.000000e+00> : vector<1x8xf32>
    %166 = vector.multi_reduction <add>, %165, %cst_68 [2] : vector<1x8x32xf32> to vector<1x8xf32>
    %167 = vector.shape_cast %166 : vector<1x8xf32> to vector<1x8x1xf32>
    %cst_69 = arith.constant dense<0.000000e+00> : vector<1x1xf32>
    %168 = vector.multi_reduction <add>, %167, %cst_69 [1] : vector<1x8x1xf32> to vector<1x1xf32>
    %169 = vector.shape_cast %168 : vector<1x1xf32> to vector<1x1x1xf32>
    %cst_70 = arith.constant 3.906250e-03 : f32
    %170 = vector.broadcast %cst_70 : f32 to vector<1x1x1xf32>
    %171 = arith.mulf %169, %170 : vector<1x1x1xf32>
    %172 = vector.broadcast %171 : vector<1x1x1xf32> to vector<1x8x32xf32>
    %173 = arith.subf %165, %172 : vector<1x8x32xf32>
    %174 = arith.mulf %173, %173 : vector<1x8x32xf32>
    %cst_71 = arith.constant dense<0.000000e+00> : vector<1x8xf32>
    %175 = vector.multi_reduction <add>, %174, %cst_71 [2] : vector<1x8x32xf32> to vector<1x8xf32>
    %176 = vector.shape_cast %175 : vector<1x8xf32> to vector<1x8x1xf32>
    %cst_72 = arith.constant dense<0.000000e+00> : vector<1x1xf32>
    %177 = vector.multi_reduction <add>, %176, %cst_72 [1] : vector<1x8x1xf32> to vector<1x1xf32>
    %178 = vector.shape_cast %177 : vector<1x1xf32> to vector<1x1x1xf32>
    %cst_73 = arith.constant 3.906250e-03 : f32
    %179 = vector.broadcast %cst_73 : f32 to vector<1x1x1xf32>
    %180 = arith.mulf %178, %179 : vector<1x1x1xf32>
    %cst_74 = arith.constant 9.99999974E-6 : f32
    %181 = vector.broadcast %cst_74 : f32 to vector<1x1x1xf32>
    %182 = arith.addf %180, %181 : vector<1x1x1xf32>
    %183 = math.rsqrt %182 : vector<1x1x1xf32>
    %184 = vector.broadcast %183 : vector<1x1x1xf32> to vector<1x8x32xf32>
    %185 = arith.mulf %173, %184 : vector<1x8x32xf32>
    %186 = vector.shape_cast %22 : vector<8x32xf32> to vector<1x8x32xf32>
    %187 = arith.mulf %185, %186 : vector<1x8x32xf32>
    %188 = vector.shape_cast %24 : vector<8x32xf32> to vector<1x8x32xf32>
    %189 = arith.addf %187, %188 : vector<1x8x32xf32>
    %190 = vector.shape_cast %189 : vector<1x8x32xf32> to vector<8x32xf32>
    %191 = arith.truncf %190 : vector<8x32xf32> to vector<8x32xbf16>
    %cst_75 = arith.constant dense<0.000000e+00> : vector<8x64xf32>
    %192 = tpu.matmul %191, %6, %cst_75 {dimension_numbers = #tpu.dot_dimension_numbers<[1], [0], [0], [1], [0, 0, 1, 1], [], []>} : vector<8x32xbf16>, vector<32x64xbf16>, vector<8x64xf32> -> vector<8x64xf32>
    %193 = vector.broadcast %14 : vector<1x64xf32> to vector<8x64xf32>
    %194 = arith.addf %192, %193 : vector<8x64xf32>
    %cst_76 = arith.constant 5.000000e-01 : f32
    %195 = vector.broadcast %cst_76 : f32 to vector<8x64xf32>
    %196 = arith.mulf %195, %194 : vector<8x64xf32>
    %cst_77 = arith.constant 0.707106769 : f32
    %197 = vector.broadcast %cst_77 : f32 to vector<8x64xf32>
    %198 = arith.mulf %194, %197 : vector<8x64xf32>
    %cst_78 = arith.constant 0.000000e+00 : f32
    %199 = vector.broadcast %cst_78 : f32 to vector<8x64xf32>
    %200 = arith.cmpf oge, %198, %199 : vector<8x64xf32>
    %cst_79 = arith.constant 1.000000e+00 : f32
    %cst_80 = arith.constant -1.000000e+00 : f32
    %201 = vector.broadcast %cst_79 : f32 to vector<8x64xf32>
    %202 = vector.broadcast %cst_80 : f32 to vector<8x64xf32>
    %203 = arith.select %200, %201, %202 : vector<8x64xi1>, vector<8x64xf32>
    %204 = arith.mulf %198, %203 : vector<8x64xf32>
    %cst_81 = arith.constant 0.327591091 : f32
    %205 = vector.broadcast %cst_81 : f32 to vector<8x64xf32>
    %206 = arith.mulf %205, %204 : vector<8x64xf32>
    %cst_82 = arith.constant 1.000000e+00 : f32
    %207 = vector.broadcast %cst_82 : f32 to vector<8x64xf32>
    %208 = arith.addf %207, %206 : vector<8x64xf32>
    %cst_83 = arith.constant 1.000000e+00 : f32
    %209 = vector.broadcast %cst_83 : f32 to vector<8x64xf32>
    %210 = arith.divf %209, %208 : vector<8x64xf32>
    %cst_84 = arith.constant 1.06140542 : f32
    %211 = vector.broadcast %cst_84 : f32 to vector<8x64xf32>
    %212 = arith.mulf %211, %210 : vector<8x64xf32>
    %cst_85 = arith.constant -1.45315206 : f32
    %213 = vector.broadcast %cst_85 : f32 to vector<8x64xf32>
    %214 = arith.addf %212, %213 : vector<8x64xf32>
    %215 = arith.mulf %214, %210 : vector<8x64xf32>
    %cst_86 = arith.constant 1.42141378 : f32
    %216 = vector.broadcast %cst_86 : f32 to vector<8x64xf32>
    %217 = arith.addf %215, %216 : vector<8x64xf32>
    %218 = arith.mulf %217, %210 : vector<8x64xf32>
    %cst_87 = arith.constant -0.284496725 : f32
    %219 = vector.broadcast %cst_87 : f32 to vector<8x64xf32>
    %220 = arith.addf %218, %219 : vector<8x64xf32>
    %221 = arith.mulf %220, %210 : vector<8x64xf32>
    %cst_88 = arith.constant 0.254829586 : f32
    %222 = vector.broadcast %cst_88 : f32 to vector<8x64xf32>
    %223 = arith.addf %221, %222 : vector<8x64xf32>
    %224 = arith.mulf %223, %210 : vector<8x64xf32>
    %cst_89 = arith.constant 0.000000e+00 : f32
    %225 = vector.broadcast %cst_89 : f32 to vector<8x64xf32>
    %226 = arith.subf %225, %204 : vector<8x64xf32>
    %227 = arith.mulf %226, %204 : vector<8x64xf32>
    %228 = math.exp %227 : vector<8x64xf32>
    %229 = arith.mulf %224, %228 : vector<8x64xf32>
    %cst_90 = arith.constant 1.000000e+00 : f32
    %230 = vector.broadcast %cst_90 : f32 to vector<8x64xf32>
    %231 = arith.subf %230, %229 : vector<8x64xf32>
    %232 = arith.mulf %203, %231 : vector<8x64xf32>
    %cst_91 = arith.constant 1.000000e+00 : f32
    %233 = vector.broadcast %cst_91 : f32 to vector<8x64xf32>
    %234 = arith.addf %233, %232 : vector<8x64xf32>
    %235 = arith.mulf %196, %234 : vector<8x64xf32>
    %236 = arith.truncf %235 : vector<8x64xf32> to vector<8x64xbf16>
    %cst_92 = arith.constant dense<0.000000e+00> : vector<8x32xf32>
    %237 = tpu.matmul %236, %8, %cst_92 {dimension_numbers = #tpu.dot_dimension_numbers<[1], [0], [0], [1], [0, 0, 1, 1], [], []>} : vector<8x64xbf16>, vector<64x32xbf16>, vector<8x32xf32> -> vector<8x32xf32>
    %238 = vector.broadcast %16 : vector<1x32xf32> to vector<8x32xf32>
    %239 = arith.addf %237, %238 : vector<8x32xf32>
    %240 = vector.shape_cast %239 : vector<8x32xf32> to vector<1x8x32xf32>
    %241 = arith.addf %240, %165 : vector<1x8x32xf32>
    %242 = vector.broadcast %2 : vector<1x8x1xf32> to vector<1x8x32xf32>
    %243 = arith.mulf %241, %242 : vector<1x8x32xf32>
    %c1_93 = arith.constant 1 : index
    %c0_94 = arith.constant 0 : index
    %c0_95 = arith.constant 0 : index
    %244 = vector.load %arg4[%c1_93, %c0_94, %c0_95] : memref<2x160x96xbf16, #tpu.memory_space<vmem>>, vector<1x32x96xbf16>
    %245 = vector.shape_cast %244 : vector<1x32x96xbf16> to vector<32x96xbf16>
    %c1_96 = arith.constant 1 : index
    %c64_97 = arith.constant 64 : index
    %c0_98 = arith.constant 0 : index
    %246 = vector.load %arg4[%c1_96, %c64_97, %c0_98] : memref<2x160x96xbf16, #tpu.memory_space<vmem>>, vector<1x32x64xbf16>
    %247 = vector.shape_cast %246 : vector<1x32x64xbf16> to vector<32x64xbf16>
    %c1_99 = arith.constant 1 : index
    %c96_100 = arith.constant 96 : index
    %c0_101 = arith.constant 0 : index
    %248 = vector.load %arg4[%c1_99, %c96_100, %c0_101] : memref<2x160x96xbf16, #tpu.memory_space<vmem>>, vector<1x64x32xbf16>
    %249 = vector.shape_cast %248 : vector<1x64x32xbf16> to vector<64x32xbf16>
    %c1_102 = arith.constant 1 : index
    %c0_103 = arith.constant 0 : index
    %c0_104 = arith.constant 0 : index
    %250 = vector.load %arg5[%c1_102, %c0_103, %c0_104] : memref<2x40x96xf32, #tpu.memory_space<vmem>>, vector<1x1x96xf32>
    %251 = vector.shape_cast %250 : vector<1x1x96xf32> to vector<1x96xf32>
    %c1_105 = arith.constant 1 : index
    %c1_106 = arith.constant 1 : index
    %c0_107 = arith.constant 0 : index
    %252 = vector.load %arg5[%c1_105, %c1_106, %c0_107] : memref<2x40x96xf32, #tpu.memory_space<vmem>>, vector<1x1x32xf32>
    %253 = vector.shape_cast %252 : vector<1x1x32xf32> to vector<1x32xf32>
    %c1_108 = arith.constant 1 : index
    %c2_109 = arith.constant 2 : index
    %c0_110 = arith.constant 0 : index
    %254 = vector.load %arg5[%c1_108, %c2_109, %c0_110] : memref<2x40x96xf32, #tpu.memory_space<vmem>>, vector<1x1x64xf32>
    %255 = vector.shape_cast %254 : vector<1x1x64xf32> to vector<1x64xf32>
    %c1_111 = arith.constant 1 : index
    %c3_112 = arith.constant 3 : index
    %c0_113 = arith.constant 0 : index
    %256 = vector.load %arg5[%c1_111, %c3_112, %c0_113] : memref<2x40x96xf32, #tpu.memory_space<vmem>>, vector<1x1x32xf32>
    %257 = vector.shape_cast %256 : vector<1x1x32xf32> to vector<1x32xf32>
    %c1_114 = arith.constant 1 : index
    %c8_115 = arith.constant 8 : index
    %c0_116 = arith.constant 0 : index
    %258 = vector.load %arg5[%c1_114, %c8_115, %c0_116] : memref<2x40x96xf32, #tpu.memory_space<vmem>>, vector<1x8x32xf32>
    %259 = vector.shape_cast %258 : vector<1x8x32xf32> to vector<8x32xf32>
    %c1_117 = arith.constant 1 : index
    %c16_118 = arith.constant 16 : index
    %c0_119 = arith.constant 0 : index
    %260 = vector.load %arg5[%c1_117, %c16_118, %c0_119] : memref<2x40x96xf32, #tpu.memory_space<vmem>>, vector<1x8x32xf32>
    %261 = vector.shape_cast %260 : vector<1x8x32xf32> to vector<8x32xf32>
    %c1_120 = arith.constant 1 : index
    %c24_121 = arith.constant 24 : index
    %c0_122 = arith.constant 0 : index
    %262 = vector.load %arg5[%c1_120, %c24_121, %c0_122] : memref<2x40x96xf32, #tpu.memory_space<vmem>>, vector<1x8x32xf32>
    %263 = vector.shape_cast %262 : vector<1x8x32xf32> to vector<8x32xf32>
    %c1_123 = arith.constant 1 : index
    %c32_124 = arith.constant 32 : index
    %c0_125 = arith.constant 0 : index
    %264 = vector.load %arg5[%c1_123, %c32_124, %c0_125] : memref<2x40x96xf32, #tpu.memory_space<vmem>>, vector<1x8x32xf32>
    %265 = vector.shape_cast %264 : vector<1x8x32xf32> to vector<8x32xf32>
    %cst_126 = arith.constant dense<0.000000e+00> : vector<1x8xf32>
    %266 = vector.multi_reduction <add>, %243, %cst_126 [2] : vector<1x8x32xf32> to vector<1x8xf32>
    %267 = vector.shape_cast %266 : vector<1x8xf32> to vector<1x8x1xf32>
    %cst_127 = arith.constant dense<0.000000e+00> : vector<1x1xf32>
    %268 = vector.multi_reduction <add>, %267, %cst_127 [1] : vector<1x8x1xf32> to vector<1x1xf32>
    %269 = vector.shape_cast %268 : vector<1x1xf32> to vector<1x1x1xf32>
    %cst_128 = arith.constant 3.906250e-03 : f32
    %270 = vector.broadcast %cst_128 : f32 to vector<1x1x1xf32>
    %271 = arith.mulf %269, %270 : vector<1x1x1xf32>
    %272 = vector.broadcast %271 : vector<1x1x1xf32> to vector<1x8x32xf32>
    %273 = arith.subf %243, %272 : vector<1x8x32xf32>
    %274 = arith.mulf %273, %273 : vector<1x8x32xf32>
    %cst_129 = arith.constant dense<0.000000e+00> : vector<1x8xf32>
    %275 = vector.multi_reduction <add>, %274, %cst_129 [2] : vector<1x8x32xf32> to vector<1x8xf32>
    %276 = vector.shape_cast %275 : vector<1x8xf32> to vector<1x8x1xf32>
    %cst_130 = arith.constant dense<0.000000e+00> : vector<1x1xf32>
    %277 = vector.multi_reduction <add>, %276, %cst_130 [1] : vector<1x8x1xf32> to vector<1x1xf32>
    %278 = vector.shape_cast %277 : vector<1x1xf32> to vector<1x1x1xf32>
    %cst_131 = arith.constant 3.906250e-03 : f32
    %279 = vector.broadcast %cst_131 : f32 to vector<1x1x1xf32>
    %280 = arith.mulf %278, %279 : vector<1x1x1xf32>
    %cst_132 = arith.constant 9.99999974E-6 : f32
    %281 = vector.broadcast %cst_132 : f32 to vector<1x1x1xf32>
    %282 = arith.addf %280, %281 : vector<1x1x1xf32>
    %283 = math.rsqrt %282 : vector<1x1x1xf32>
    %284 = vector.broadcast %283 : vector<1x1x1xf32> to vector<1x8x32xf32>
    %285 = arith.mulf %273, %284 : vector<1x8x32xf32>
    %286 = vector.shape_cast %259 : vector<8x32xf32> to vector<1x8x32xf32>
    %287 = arith.mulf %285, %286 : vector<1x8x32xf32>
    %288 = vector.shape_cast %261 : vector<8x32xf32> to vector<1x8x32xf32>
    %289 = arith.addf %287, %288 : vector<1x8x32xf32>
    %290 = vector.shape_cast %289 : vector<1x8x32xf32> to vector<8x32xf32>
    %291 = arith.truncf %290 : vector<8x32xf32> to vector<8x32xbf16>
    %cst_133 = arith.constant dense<0.000000e+00> : vector<8x96xf32>
    %292 = tpu.matmul %291, %245, %cst_133 {dimension_numbers = #tpu.dot_dimension_numbers<[1], [0], [0], [1], [0, 0, 1, 1], [], []>} : vector<8x32xbf16>, vector<32x96xbf16>, vector<8x96xf32> -> vector<8x96xf32>
    %293 = vector.broadcast %251 : vector<1x96xf32> to vector<8x96xf32>
    %294 = arith.addf %292, %293 : vector<8x96xf32>
    %295 = arith.truncf %294 : vector<8x96xf32> to vector<8x96xbf16>
    %296 = vector.extract_strided_slice %295 {offsets = [0, 0], sizes = [8, 8], strides = [1, 1]} : vector<8x96xbf16> to vector<8x8xbf16>
    %297 = vector.shape_cast %296 : vector<8x8xbf16> to vector<1x8x8xbf16>
    %298 = vector.extract_strided_slice %295 {offsets = [0, 32], sizes = [8, 8], strides = [1, 1]} : vector<8x96xbf16> to vector<8x8xbf16>
    %299 = vector.shape_cast %298 : vector<8x8xbf16> to vector<1x8x8xbf16>
    %300 = vector.extract_strided_slice %295 {offsets = [0, 64], sizes = [8, 8], strides = [1, 1]} : vector<8x96xbf16> to vector<8x8xbf16>
    %301 = vector.shape_cast %300 : vector<8x8xbf16> to vector<1x8x8xbf16>
    "tpu.trace_start"() <{level = 10 : i32, message = "btd,bsd->bts"}> : () -> ()
    %cst_134 = arith.constant dense<0.000000e+00> : vector<1x8x8xf32>
    %302 = tpu.matmul %297, %299, %cst_134 {dimension_numbers = #tpu.dot_dimension_numbers<[2], [2], [1], [1], [0, 0, 0, 1, 1, 1], [0], [0]>} : vector<1x8x8xbf16>, vector<1x8x8xbf16>, vector<1x8x8xf32> -> vector<1x8x8xf32>
    "tpu.trace_stop"() : () -> ()
    %303 = vector.broadcast %1 : vector<1x1x8xf32> to vector<1x8x8xf32>
    %304 = arith.addf %302, %303 : vector<1x8x8xf32>
    %cst_135 = arith.constant dense<0xFF800000> : vector<1x8xf32>
    %305 = vector.multi_reduction <maximumf>, %304, %cst_135 [2] : vector<1x8x8xf32> to vector<1x8xf32>
    %306 = vector.shape_cast %305 : vector<1x8xf32> to vector<1x8x1xf32>
    %307 = vector.broadcast %306 : vector<1x8x1xf32> to vector<1x8x8xf32>
    %308 = arith.subf %304, %307 : vector<1x8x8xf32>
    %309 = math.exp %308 : vector<1x8x8xf32>
    %cst_136 = arith.constant dense<0.000000e+00> : vector<1x8xf32>
    %310 = vector.multi_reduction <add>, %309, %cst_136 [2] : vector<1x8x8xf32> to vector<1x8xf32>
    %311 = vector.shape_cast %310 : vector<1x8xf32> to vector<1x8x1xf32>
    %312 = tpu.reciprocal %311 {approx = true} : vector<1x8x1xf32> -> vector<1x8x1xf32>
    %313 = vector.broadcast %312 : vector<1x8x1xf32> to vector<1x8x8xf32>
    %314 = arith.mulf %309, %313 : vector<1x8x8xf32>
    %315 = arith.truncf %314 : vector<1x8x8xf32> to vector<1x8x8xbf16>
    "tpu.trace_start"() <{level = 10 : i32, message = "bts,bsd->btd"}> : () -> ()
    %cst_137 = arith.constant dense<0.000000e+00> : vector<1x8x8xf32>
    %316 = tpu.matmul %315, %301, %cst_137 {dimension_numbers = #tpu.dot_dimension_numbers<[2], [1], [1], [2], [0, 0, 0, 1, 1, 2], [0], [0]>} : vector<1x8x8xbf16>, vector<1x8x8xbf16>, vector<1x8x8xf32> -> vector<1x8x8xf32>
    "tpu.trace_stop"() : () -> ()
    %c1_138 = arith.constant 1 : index
    %c32_139 = arith.constant 32 : index
    %c0_140 = arith.constant 0 : index
    %317 = vector.load %arg4[%c1_138, %c32_139, %c0_140] : memref<2x160x96xbf16, #tpu.memory_space<vmem>>, vector<1x8x32xbf16>
    %318 = vector.shape_cast %317 : vector<1x8x32xbf16> to vector<8x32xbf16>
    %319 = vector.shape_cast %316 : vector<1x8x8xf32> to vector<8x8xf32>
    %320 = arith.truncf %319 : vector<8x8xf32> to vector<8x8xbf16>
    %cst_141 = arith.constant dense<0.000000e+00> : vector<8x32xf32>
    %321 = tpu.matmul %320, %318, %cst_141 {dimension_numbers = #tpu.dot_dimension_numbers<[1], [0], [0], [1], [0, 0, 1, 1], [], []>} : vector<8x8xbf16>, vector<8x32xbf16>, vector<8x32xf32> -> vector<8x32xf32>
    %322 = vector.extract_strided_slice %295 {offsets = [0, 8], sizes = [8, 8], strides = [1, 1]} : vector<8x96xbf16> to vector<8x8xbf16>
    %323 = vector.shape_cast %322 : vector<8x8xbf16> to vector<1x8x8xbf16>
    %324 = vector.extract_strided_slice %295 {offsets = [0, 40], sizes = [8, 8], strides = [1, 1]} : vector<8x96xbf16> to vector<8x8xbf16>
    %325 = vector.shape_cast %324 : vector<8x8xbf16> to vector<1x8x8xbf16>
    %326 = vector.extract_strided_slice %295 {offsets = [0, 72], sizes = [8, 8], strides = [1, 1]} : vector<8x96xbf16> to vector<8x8xbf16>
    %327 = vector.shape_cast %326 : vector<8x8xbf16> to vector<1x8x8xbf16>
    "tpu.trace_start"() <{level = 10 : i32, message = "btd,bsd->bts"}> : () -> ()
    %cst_142 = arith.constant dense<0.000000e+00> : vector<1x8x8xf32>
    %328 = tpu.matmul %323, %325, %cst_142 {dimension_numbers = #tpu.dot_dimension_numbers<[2], [2], [1], [1], [0, 0, 0, 1, 1, 1], [0], [0]>} : vector<1x8x8xbf16>, vector<1x8x8xbf16>, vector<1x8x8xf32> -> vector<1x8x8xf32>
    "tpu.trace_stop"() : () -> ()
    %329 = vector.broadcast %1 : vector<1x1x8xf32> to vector<1x8x8xf32>
    %330 = arith.addf %328, %329 : vector<1x8x8xf32>
    %cst_143 = arith.constant dense<0xFF800000> : vector<1x8xf32>
    %331 = vector.multi_reduction <maximumf>, %330, %cst_143 [2] : vector<1x8x8xf32> to vector<1x8xf32>
    %332 = vector.shape_cast %331 : vector<1x8xf32> to vector<1x8x1xf32>
    %333 = vector.broadcast %332 : vector<1x8x1xf32> to vector<1x8x8xf32>
    %334 = arith.subf %330, %333 : vector<1x8x8xf32>
    %335 = math.exp %334 : vector<1x8x8xf32>
    %cst_144 = arith.constant dense<0.000000e+00> : vector<1x8xf32>
    %336 = vector.multi_reduction <add>, %335, %cst_144 [2] : vector<1x8x8xf32> to vector<1x8xf32>
    %337 = vector.shape_cast %336 : vector<1x8xf32> to vector<1x8x1xf32>
    %338 = tpu.reciprocal %337 {approx = true} : vector<1x8x1xf32> -> vector<1x8x1xf32>
    %339 = vector.broadcast %338 : vector<1x8x1xf32> to vector<1x8x8xf32>
    %340 = arith.mulf %335, %339 : vector<1x8x8xf32>
    %341 = arith.truncf %340 : vector<1x8x8xf32> to vector<1x8x8xbf16>
    "tpu.trace_start"() <{level = 10 : i32, message = "bts,bsd->btd"}> : () -> ()
    %cst_145 = arith.constant dense<0.000000e+00> : vector<1x8x8xf32>
    %342 = tpu.matmul %341, %327, %cst_145 {dimension_numbers = #tpu.dot_dimension_numbers<[2], [1], [1], [2], [0, 0, 0, 1, 1, 2], [0], [0]>} : vector<1x8x8xbf16>, vector<1x8x8xbf16>, vector<1x8x8xf32> -> vector<1x8x8xf32>
    "tpu.trace_stop"() : () -> ()
    %c1_146 = arith.constant 1 : index
    %c40_147 = arith.constant 40 : index
    %c0_148 = arith.constant 0 : index
    %343 = vector.load %arg4[%c1_146, %c40_147, %c0_148] : memref<2x160x96xbf16, #tpu.memory_space<vmem>>, vector<1x8x32xbf16>
    %344 = vector.shape_cast %343 : vector<1x8x32xbf16> to vector<8x32xbf16>
    %345 = vector.shape_cast %342 : vector<1x8x8xf32> to vector<8x8xf32>
    %346 = arith.truncf %345 : vector<8x8xf32> to vector<8x8xbf16>
    %cst_149 = arith.constant dense<0.000000e+00> : vector<8x32xf32>
    %347 = tpu.matmul %346, %344, %cst_149 {dimension_numbers = #tpu.dot_dimension_numbers<[1], [0], [0], [1], [0, 0, 1, 1], [], []>} : vector<8x8xbf16>, vector<8x32xbf16>, vector<8x32xf32> -> vector<8x32xf32>
    %348 = arith.addf %321, %347 : vector<8x32xf32>
    %349 = vector.extract_strided_slice %295 {offsets = [0, 16], sizes = [8, 8], strides = [1, 1]} : vector<8x96xbf16> to vector<8x8xbf16>
    %350 = vector.shape_cast %349 : vector<8x8xbf16> to vector<1x8x8xbf16>
    %351 = vector.extract_strided_slice %295 {offsets = [0, 48], sizes = [8, 8], strides = [1, 1]} : vector<8x96xbf16> to vector<8x8xbf16>
    %352 = vector.shape_cast %351 : vector<8x8xbf16> to vector<1x8x8xbf16>
    %353 = vector.extract_strided_slice %295 {offsets = [0, 80], sizes = [8, 8], strides = [1, 1]} : vector<8x96xbf16> to vector<8x8xbf16>
    %354 = vector.shape_cast %353 : vector<8x8xbf16> to vector<1x8x8xbf16>
    "tpu.trace_start"() <{level = 10 : i32, message = "btd,bsd->bts"}> : () -> ()
    %cst_150 = arith.constant dense<0.000000e+00> : vector<1x8x8xf32>
    %355 = tpu.matmul %350, %352, %cst_150 {dimension_numbers = #tpu.dot_dimension_numbers<[2], [2], [1], [1], [0, 0, 0, 1, 1, 1], [0], [0]>} : vector<1x8x8xbf16>, vector<1x8x8xbf16>, vector<1x8x8xf32> -> vector<1x8x8xf32>
    "tpu.trace_stop"() : () -> ()
    %356 = vector.broadcast %1 : vector<1x1x8xf32> to vector<1x8x8xf32>
    %357 = arith.addf %355, %356 : vector<1x8x8xf32>
    %cst_151 = arith.constant dense<0xFF800000> : vector<1x8xf32>
    %358 = vector.multi_reduction <maximumf>, %357, %cst_151 [2] : vector<1x8x8xf32> to vector<1x8xf32>
    %359 = vector.shape_cast %358 : vector<1x8xf32> to vector<1x8x1xf32>
    %360 = vector.broadcast %359 : vector<1x8x1xf32> to vector<1x8x8xf32>
    %361 = arith.subf %357, %360 : vector<1x8x8xf32>
    %362 = math.exp %361 : vector<1x8x8xf32>
    %cst_152 = arith.constant dense<0.000000e+00> : vector<1x8xf32>
    %363 = vector.multi_reduction <add>, %362, %cst_152 [2] : vector<1x8x8xf32> to vector<1x8xf32>
    %364 = vector.shape_cast %363 : vector<1x8xf32> to vector<1x8x1xf32>
    %365 = tpu.reciprocal %364 {approx = true} : vector<1x8x1xf32> -> vector<1x8x1xf32>
    %366 = vector.broadcast %365 : vector<1x8x1xf32> to vector<1x8x8xf32>
    %367 = arith.mulf %362, %366 : vector<1x8x8xf32>
    %368 = arith.truncf %367 : vector<1x8x8xf32> to vector<1x8x8xbf16>
    "tpu.trace_start"() <{level = 10 : i32, message = "bts,bsd->btd"}> : () -> ()
    %cst_153 = arith.constant dense<0.000000e+00> : vector<1x8x8xf32>
    %369 = tpu.matmul %368, %354, %cst_153 {dimension_numbers = #tpu.dot_dimension_numbers<[2], [1], [1], [2], [0, 0, 0, 1, 1, 2], [0], [0]>} : vector<1x8x8xbf16>, vector<1x8x8xbf16>, vector<1x8x8xf32> -> vector<1x8x8xf32>
    "tpu.trace_stop"() : () -> ()
    %c1_154 = arith.constant 1 : index
    %c48_155 = arith.constant 48 : index
    %c0_156 = arith.constant 0 : index
    %370 = vector.load %arg4[%c1_154, %c48_155, %c0_156] : memref<2x160x96xbf16, #tpu.memory_space<vmem>>, vector<1x8x32xbf16>
    %371 = vector.shape_cast %370 : vector<1x8x32xbf16> to vector<8x32xbf16>
    %372 = vector.shape_cast %369 : vector<1x8x8xf32> to vector<8x8xf32>
    %373 = arith.truncf %372 : vector<8x8xf32> to vector<8x8xbf16>
    %cst_157 = arith.constant dense<0.000000e+00> : vector<8x32xf32>
    %374 = tpu.matmul %373, %371, %cst_157 {dimension_numbers = #tpu.dot_dimension_numbers<[1], [0], [0], [1], [0, 0, 1, 1], [], []>} : vector<8x8xbf16>, vector<8x32xbf16>, vector<8x32xf32> -> vector<8x32xf32>
    %375 = arith.addf %348, %374 : vector<8x32xf32>
    %376 = vector.extract_strided_slice %295 {offsets = [0, 24], sizes = [8, 8], strides = [1, 1]} : vector<8x96xbf16> to vector<8x8xbf16>
    %377 = vector.shape_cast %376 : vector<8x8xbf16> to vector<1x8x8xbf16>
    %378 = vector.extract_strided_slice %295 {offsets = [0, 56], sizes = [8, 8], strides = [1, 1]} : vector<8x96xbf16> to vector<8x8xbf16>
    %379 = vector.shape_cast %378 : vector<8x8xbf16> to vector<1x8x8xbf16>
    %380 = vector.extract_strided_slice %295 {offsets = [0, 88], sizes = [8, 8], strides = [1, 1]} : vector<8x96xbf16> to vector<8x8xbf16>
    %381 = vector.shape_cast %380 : vector<8x8xbf16> to vector<1x8x8xbf16>
    "tpu.trace_start"() <{level = 10 : i32, message = "btd,bsd->bts"}> : () -> ()
    %cst_158 = arith.constant dense<0.000000e+00> : vector<1x8x8xf32>
    %382 = tpu.matmul %377, %379, %cst_158 {dimension_numbers = #tpu.dot_dimension_numbers<[2], [2], [1], [1], [0, 0, 0, 1, 1, 1], [0], [0]>} : vector<1x8x8xbf16>, vector<1x8x8xbf16>, vector<1x8x8xf32> -> vector<1x8x8xf32>
    "tpu.trace_stop"() : () -> ()
    %383 = vector.broadcast %1 : vector<1x1x8xf32> to vector<1x8x8xf32>
    %384 = arith.addf %382, %383 : vector<1x8x8xf32>
    %cst_159 = arith.constant dense<0xFF800000> : vector<1x8xf32>
    %385 = vector.multi_reduction <maximumf>, %384, %cst_159 [2] : vector<1x8x8xf32> to vector<1x8xf32>
    %386 = vector.shape_cast %385 : vector<1x8xf32> to vector<1x8x1xf32>
    %387 = vector.broadcast %386 : vector<1x8x1xf32> to vector<1x8x8xf32>
    %388 = arith.subf %384, %387 : vector<1x8x8xf32>
    %389 = math.exp %388 : vector<1x8x8xf32>
    %cst_160 = arith.constant dense<0.000000e+00> : vector<1x8xf32>
    %390 = vector.multi_reduction <add>, %389, %cst_160 [2] : vector<1x8x8xf32> to vector<1x8xf32>
    %391 = vector.shape_cast %390 : vector<1x8xf32> to vector<1x8x1xf32>
    %392 = tpu.reciprocal %391 {approx = true} : vector<1x8x1xf32> -> vector<1x8x1xf32>
    %393 = vector.broadcast %392 : vector<1x8x1xf32> to vector<1x8x8xf32>
    %394 = arith.mulf %389, %393 : vector<1x8x8xf32>
    %395 = arith.truncf %394 : vector<1x8x8xf32> to vector<1x8x8xbf16>
    "tpu.trace_start"() <{level = 10 : i32, message = "bts,bsd->btd"}> : () -> ()
    %cst_161 = arith.constant dense<0.000000e+00> : vector<1x8x8xf32>
    %396 = tpu.matmul %395, %381, %cst_161 {dimension_numbers = #tpu.dot_dimension_numbers<[2], [1], [1], [2], [0, 0, 0, 1, 1, 2], [0], [0]>} : vector<1x8x8xbf16>, vector<1x8x8xbf16>, vector<1x8x8xf32> -> vector<1x8x8xf32>
    "tpu.trace_stop"() : () -> ()
    %c1_162 = arith.constant 1 : index
    %c56_163 = arith.constant 56 : index
    %c0_164 = arith.constant 0 : index
    %397 = vector.load %arg4[%c1_162, %c56_163, %c0_164] : memref<2x160x96xbf16, #tpu.memory_space<vmem>>, vector<1x8x32xbf16>
    %398 = vector.shape_cast %397 : vector<1x8x32xbf16> to vector<8x32xbf16>
    %399 = vector.shape_cast %396 : vector<1x8x8xf32> to vector<8x8xf32>
    %400 = arith.truncf %399 : vector<8x8xf32> to vector<8x8xbf16>
    %cst_165 = arith.constant dense<0.000000e+00> : vector<8x32xf32>
    %401 = tpu.matmul %400, %398, %cst_165 {dimension_numbers = #tpu.dot_dimension_numbers<[1], [0], [0], [1], [0, 0, 1, 1], [], []>} : vector<8x8xbf16>, vector<8x32xbf16>, vector<8x32xf32> -> vector<8x32xf32>
    %402 = arith.addf %375, %401 : vector<8x32xf32>
    %403 = vector.broadcast %253 : vector<1x32xf32> to vector<8x32xf32>
    %404 = arith.addf %402, %403 : vector<8x32xf32>
    %405 = vector.shape_cast %404 : vector<8x32xf32> to vector<1x8x32xf32>
    %406 = arith.addf %405, %243 : vector<1x8x32xf32>
    %cst_166 = arith.constant dense<0.000000e+00> : vector<1x8xf32>
    %407 = vector.multi_reduction <add>, %406, %cst_166 [2] : vector<1x8x32xf32> to vector<1x8xf32>
    %408 = vector.shape_cast %407 : vector<1x8xf32> to vector<1x8x1xf32>
    %cst_167 = arith.constant dense<0.000000e+00> : vector<1x1xf32>
    %409 = vector.multi_reduction <add>, %408, %cst_167 [1] : vector<1x8x1xf32> to vector<1x1xf32>
    %410 = vector.shape_cast %409 : vector<1x1xf32> to vector<1x1x1xf32>
    %cst_168 = arith.constant 3.906250e-03 : f32
    %411 = vector.broadcast %cst_168 : f32 to vector<1x1x1xf32>
    %412 = arith.mulf %410, %411 : vector<1x1x1xf32>
    %413 = vector.broadcast %412 : vector<1x1x1xf32> to vector<1x8x32xf32>
    %414 = arith.subf %406, %413 : vector<1x8x32xf32>
    %415 = arith.mulf %414, %414 : vector<1x8x32xf32>
    %cst_169 = arith.constant dense<0.000000e+00> : vector<1x8xf32>
    %416 = vector.multi_reduction <add>, %415, %cst_169 [2] : vector<1x8x32xf32> to vector<1x8xf32>
    %417 = vector.shape_cast %416 : vector<1x8xf32> to vector<1x8x1xf32>
    %cst_170 = arith.constant dense<0.000000e+00> : vector<1x1xf32>
    %418 = vector.multi_reduction <add>, %417, %cst_170 [1] : vector<1x8x1xf32> to vector<1x1xf32>
    %419 = vector.shape_cast %418 : vector<1x1xf32> to vector<1x1x1xf32>
    %cst_171 = arith.constant 3.906250e-03 : f32
    %420 = vector.broadcast %cst_171 : f32 to vector<1x1x1xf32>
    %421 = arith.mulf %419, %420 : vector<1x1x1xf32>
    %cst_172 = arith.constant 9.99999974E-6 : f32
    %422 = vector.broadcast %cst_172 : f32 to vector<1x1x1xf32>
    %423 = arith.addf %421, %422 : vector<1x1x1xf32>
    %424 = math.rsqrt %423 : vector<1x1x1xf32>
    %425 = vector.broadcast %424 : vector<1x1x1xf32> to vector<1x8x32xf32>
    %426 = arith.mulf %414, %425 : vector<1x8x32xf32>
    %427 = vector.shape_cast %263 : vector<8x32xf32> to vector<1x8x32xf32>
    %428 = arith.mulf %426, %427 : vector<1x8x32xf32>
    %429 = vector.shape_cast %265 : vector<8x32xf32> to vector<1x8x32xf32>
    %430 = arith.addf %428, %429 : vector<1x8x32xf32>
    %431 = vector.shape_cast %430 : vector<1x8x32xf32> to vector<8x32xf32>
    %432 = arith.truncf %431 : vector<8x32xf32> to vector<8x32xbf16>
    %cst_173 = arith.constant dense<0.000000e+00> : vector<8x64xf32>
    %433 = tpu.matmul %432, %247, %cst_173 {dimension_numbers = #tpu.dot_dimension_numbers<[1], [0], [0], [1], [0, 0, 1, 1], [], []>} : vector<8x32xbf16>, vector<32x64xbf16>, vector<8x64xf32> -> vector<8x64xf32>
    %434 = vector.broadcast %255 : vector<1x64xf32> to vector<8x64xf32>
    %435 = arith.addf %433, %434 : vector<8x64xf32>
    %cst_174 = arith.constant 5.000000e-01 : f32
    %436 = vector.broadcast %cst_174 : f32 to vector<8x64xf32>
    %437 = arith.mulf %436, %435 : vector<8x64xf32>
    %cst_175 = arith.constant 0.707106769 : f32
    %438 = vector.broadcast %cst_175 : f32 to vector<8x64xf32>
    %439 = arith.mulf %435, %438 : vector<8x64xf32>
    %cst_176 = arith.constant 0.000000e+00 : f32
    %440 = vector.broadcast %cst_176 : f32 to vector<8x64xf32>
    %441 = arith.cmpf oge, %439, %440 : vector<8x64xf32>
    %cst_177 = arith.constant 1.000000e+00 : f32
    %cst_178 = arith.constant -1.000000e+00 : f32
    %442 = vector.broadcast %cst_177 : f32 to vector<8x64xf32>
    %443 = vector.broadcast %cst_178 : f32 to vector<8x64xf32>
    %444 = arith.select %441, %442, %443 : vector<8x64xi1>, vector<8x64xf32>
    %445 = arith.mulf %439, %444 : vector<8x64xf32>
    %cst_179 = arith.constant 0.327591091 : f32
    %446 = vector.broadcast %cst_179 : f32 to vector<8x64xf32>
    %447 = arith.mulf %446, %445 : vector<8x64xf32>
    %cst_180 = arith.constant 1.000000e+00 : f32
    %448 = vector.broadcast %cst_180 : f32 to vector<8x64xf32>
    %449 = arith.addf %448, %447 : vector<8x64xf32>
    %cst_181 = arith.constant 1.000000e+00 : f32
    %450 = vector.broadcast %cst_181 : f32 to vector<8x64xf32>
    %451 = arith.divf %450, %449 : vector<8x64xf32>
    %cst_182 = arith.constant 1.06140542 : f32
    %452 = vector.broadcast %cst_182 : f32 to vector<8x64xf32>
    %453 = arith.mulf %452, %451 : vector<8x64xf32>
    %cst_183 = arith.constant -1.45315206 : f32
    %454 = vector.broadcast %cst_183 : f32 to vector<8x64xf32>
    %455 = arith.addf %453, %454 : vector<8x64xf32>
    %456 = arith.mulf %455, %451 : vector<8x64xf32>
    %cst_184 = arith.constant 1.42141378 : f32
    %457 = vector.broadcast %cst_184 : f32 to vector<8x64xf32>
    %458 = arith.addf %456, %457 : vector<8x64xf32>
    %459 = arith.mulf %458, %451 : vector<8x64xf32>
    %cst_185 = arith.constant -0.284496725 : f32
    %460 = vector.broadcast %cst_185 : f32 to vector<8x64xf32>
    %461 = arith.addf %459, %460 : vector<8x64xf32>
    %462 = arith.mulf %461, %451 : vector<8x64xf32>
    %cst_186 = arith.constant 0.254829586 : f32
    %463 = vector.broadcast %cst_186 : f32 to vector<8x64xf32>
    %464 = arith.addf %462, %463 : vector<8x64xf32>
    %465 = arith.mulf %464, %451 : vector<8x64xf32>
    %cst_187 = arith.constant 0.000000e+00 : f32
    %466 = vector.broadcast %cst_187 : f32 to vector<8x64xf32>
    %467 = arith.subf %466, %445 : vector<8x64xf32>
    %468 = arith.mulf %467, %445 : vector<8x64xf32>
    %469 = math.exp %468 : vector<8x64xf32>
    %470 = arith.mulf %465, %469 : vector<8x64xf32>
    %cst_188 = arith.constant 1.000000e+00 : f32
    %471 = vector.broadcast %cst_188 : f32 to vector<8x64xf32>
    %472 = arith.subf %471, %470 : vector<8x64xf32>
    %473 = arith.mulf %444, %472 : vector<8x64xf32>
    %cst_189 = arith.constant 1.000000e+00 : f32
    %474 = vector.broadcast %cst_189 : f32 to vector<8x64xf32>
    %475 = arith.addf %474, %473 : vector<8x64xf32>
    %476 = arith.mulf %437, %475 : vector<8x64xf32>
    %477 = arith.truncf %476 : vector<8x64xf32> to vector<8x64xbf16>
    %cst_190 = arith.constant dense<0.000000e+00> : vector<8x32xf32>
    %478 = tpu.matmul %477, %249, %cst_190 {dimension_numbers = #tpu.dot_dimension_numbers<[1], [0], [0], [1], [0, 0, 1, 1], [], []>} : vector<8x64xbf16>, vector<64x32xbf16>, vector<8x32xf32> -> vector<8x32xf32>
    %479 = vector.broadcast %257 : vector<1x32xf32> to vector<8x32xf32>
    %480 = arith.addf %478, %479 : vector<8x32xf32>
    %481 = vector.shape_cast %480 : vector<8x32xf32> to vector<1x8x32xf32>
    %482 = arith.addf %481, %406 : vector<1x8x32xf32>
    %483 = vector.broadcast %2 : vector<1x8x1xf32> to vector<1x8x32xf32>
    %484 = arith.mulf %482, %483 : vector<1x8x32xf32>
    %c0_191 = arith.constant 0 : index
    %c0_192 = arith.constant 0 : index
    %c0_193 = arith.constant 0 : index
    %485 = vector.load %arg6[%c0_191, %c0_192, %c0_193] : memref<1x8x32xf32, #tpu.memory_space<vmem>>, vector<1x8x32xf32>
    tpu.vector_store %arg6[%c0_191, %c0_192, %c0_193], %484 {strides = array<i32>} : memref<1x8x32xf32, #tpu.memory_space<vmem>>, vector<1x8x32xf32>,
    return
  }
  func.func @transform_0(%arg0: i32) -> (i32, i32, i32) {
    %c0_i32 = arith.constant 0 : i32
    %c0_i32_0 = arith.constant 0 : i32
    %c0_i32_1 = arith.constant 0 : i32
    return %arg0, %c0_i32, %c0_i32_0 : i32, i32, i32
  }
  func.func @transform_1(%arg0: i32) -> (i32, i32, i32) {
    %c0_i32 = arith.constant 0 : i32
    %c0_i32_0 = arith.constant 0 : i32
    %c0_i32_1 = arith.constant 0 : i32
    return %arg0, %c0_i32, %c0_i32_0 : i32, i32, i32
  }
  func.func @transform_2(%arg0: i32) -> (i32, i32, i32) {
    %c0_i32 = arith.constant 0 : i32
    %c0_i32_0 = arith.constant 0 : i32
    %c0_i32_1 = arith.constant 0 : i32
    return %arg0, %c0_i32, %c0_i32_0 : i32, i32, i32
  }
  func.func @transform_3(%arg0: i32) -> (i32, i32, i32) {
    %c0_i32 = arith.constant 0 : i32
    %c0_i32_0 = arith.constant 0 : i32
    %c0_i32_1 = arith.constant 0 : i32
    %c0_i32_2 = arith.constant 0 : i32
    return %c0_i32, %c0_i32_0, %c0_i32_1 : i32, i32, i32
  }
  func.func @transform_4(%arg0: i32) -> (i32, i32, i32) {
    %c0_i32 = arith.constant 0 : i32
    %c0_i32_0 = arith.constant 0 : i32
    %c0_i32_1 = arith.constant 0 : i32
    %c0_i32_2 = arith.constant 0 : i32
    return %c0_i32, %c0_i32_0, %c0_i32_1 : i32, i32, i32
  }
  func.func @transform_5(%arg0: i32) -> (i32, i32, i32) {
    %c0_i32 = arith.constant 0 : i32
    %c0_i32_0 = arith.constant 0 : i32
    %c0_i32_1 = arith.constant 0 : i32
    return %arg0, %c0_i32, %c0_i32_0 : i32, i32, i32
  }
}

</mosaic_0001>

<llo_original>
// kernel: _lambda_.1
$region0: #{_lambda_.1}
  #allocation0 [shape = 'u32[]', space=smem, size = 0x4, offset = 0x4, fixed_abs, tag = 'smem constant byte address 0x4 - core index']
  #allocation1 [shape = 'u32[144,128]{1,0:T(1,128)}', space=vmem, size = 0x12000, scoped, tag = 'internal scratch']
  %s0 = inlined_call_operand.vmem [shape: f32[2,8,32], index: 0, kind: input, shape index: {}]
  %s1 = inlined_call_operand.vmem [shape: f32[2,1,8], index: 1, kind: input, shape index: {}]
  %s2 = inlined_call_operand.vmem [shape: f32[2,8,1], index: 2, kind: input, shape index: {}]
  %s3 = inlined_call_operand.vmem [shape: bf16[2,160,96], index: 3, kind: input, shape index: {}]
  %s4 = inlined_call_operand.vmem [shape: f32[2,40,96], index: 4, kind: input, shape index: {}]
  %s5 = inlined_call_operand.vmem [shape: f32[2,8,32], index: 5, kind: output, shape index: {}]
  %s6 = sld [smem:[#allocation0]]
  $region53: #{_lambda_.1} parent=0
    _
  %s8 = ssub.s32 1, %s6
  %s9 = scalar_select 0, %s8, %s6
  loop: start=0, step=1, limit=4
  $region2: #{_lambda_.1} parent=0 // loop_pre_header
    _
  $region3: #{_lambda_.1} parent=0 // loop_header
    %s11 = sphi 0, %s15
    %p12 = scmp.ge.s32.totalorder %s11, 4
    %s21 = sphi 0, %s23
    %s24 = sphi 0, %s21
    %s25 = sphi 0, %s24
    %s41 = sphi 0, %s25
    %s47 = sphi 0, %s49
    %s50 = sphi 0, %s47
    %s51 = sphi 0, %s50
    %s67 = sphi 0, %s51
    %s73 = sphi 0, %s75
    %s76 = sphi 0, %s73
    %s77 = sphi 0, %s76
    %s93 = sphi 0, %s77
    %s97 = sphi 0, %s97
    %s99 = sphi 0, %s97
    %s100 = sphi 0, %s99
    %s114 = sphi 0, %s100
    %s118 = sphi 0, %s118
    %s120 = sphi 0, %s118
    %s121 = sphi 0, %s120
    %s135 = sphi 0, %s121
    %s141 = sphi 0, %s143
    %s144 = sphi 0, %s141
    %s145 = sphi 0, %s144
    %s161 = sphi 0, %s145
  $region4: #{_lambda_.1} parent=0 // loop_header_branch
    %14 = sbr.rel (%p12) target = $region8
  $region5: #{_lambda_.1} parent=0 // loop_body
    %s16 = ssub.s32 %s11, 1
    %s17 = ssub.s32 %s11, 2
    %s18 = sadd.s32 %s11, 1
    %s19 = ssub.s32 %s11, %s18
    %p20 = scmp.eq.s32.totalorder %s19, 0
    %s22 = sadd.s32 %s21, 1
    %s23 = scalar_select %p20, %s21, %s22
    %p26 = pneg %p20
    %p27 = scmp.eq.s32.totalorder %s11, 1
    %p28 = por %p26, %p27
    %p29 = scmp.ne.s32.totalorder %s21, %s24
    %p30 = scmp.eq.s32.totalorder %s11, 0
    %p31 = por %p29, %p30
    %p32 = scmp.ne.s32.totalorder %s21, %s24
    %p33 = scmp.eq.s32.totalorder %s16, 1
    %p34 = por %p32, %p33
    %p35 = scmp.ne.s32.totalorder %s24, %s25
    %p36 = scmp.eq.s32.totalorder %s16, 0
    %p37 = por %p35, %p36
    %p38 = scmp.ne.s32.totalorder %s24, %s25
    %p39 = scmp.eq.s32.totalorder %s17, 1
    %p40 = por %p38, %p39
    %p42 = scmp.ne.s32.totalorder %s25, %s41
    %p43 = scmp.eq.s32.totalorder %s17, 0
    %p44 = por %p42, %p43
    %s45 = ssub.s32 %s11, %s18
    %p46 = scmp.eq.s32.totalorder %s45, 0
    %s48 = sadd.s32 %s47, 1
    %s49 = scalar_select %p46, %s47, %s48
    %p52 = pneg %p46
    %p53 = scmp.eq.s32.totalorder %s11, 1
    %p54 = por %p52, %p53
    %p55 = scmp.ne.s32.totalorder %s47, %s50
    %p56 = scmp.eq.s32.totalorder %s11, 0
    %p57 = por %p55, %p56
    %p58 = scmp.ne.s32.totalorder %s47, %s50
    %p59 = scmp.eq.s32.totalorder %s16, 1
    %p60 = por %p58, %p59
    %p61 = scmp.ne.s32.totalorder %s50, %s51
    %p62 = scmp.eq.s32.totalorder %s16, 0
    %p63 = por %p61, %p62
    %p64 = scmp.ne.s32.totalorder %s50, %s51
    %p65 = scmp.eq.s32.totalorder %s17, 1
    %p66 = por %p64, %p65
    %p68 = scmp.ne.s32.totalorder %s51, %s67
    %p69 = scmp.eq.s32.totalorder %s17, 0
    %p70 = por %p68, %p69
    %s71 = ssub.s32 %s11, %s18
    %p72 = scmp.eq.s32.totalorder %s71, 0
    %s74 = sadd.s32 %s73, 1
    %s75 = scalar_select %p72, %s73, %s74
    %p78 = pneg %p72
    %p79 = scmp.eq.s32.totalorder %s11, 1
    %p80 = por %p78, %p79
    %p81 = scmp.ne.s32.totalorder %s73, %s76
    %p82 = scmp.eq.s32.totalorder %s11, 0
    %p83 = por %p81, %p82
    %p84 = scmp.ne.s32.totalorder %s73, %s76
    %p85 = scmp.eq.s32.totalorder %s16, 1
    %p86 = por %p84, %p85
    %p87 = scmp.ne.s32.totalorder %s76, %s77
    %p88 = scmp.eq.s32.totalorder %s16, 0
    %p89 = por %p87, %p88
    %p90 = scmp.ne.s32.totalorder %s76, %s77
    %p91 = scmp.eq.s32.totalorder %s17, 1
    %p92 = por %p90, %p91
    %p94 = scmp.ne.s32.totalorder %s77, %s93
    %p95 = scmp.eq.s32.totalorder %s17, 0
    %p96 = por %p94, %p95
    %s98 = sadd.s32 %s97, 1
    %p101 = scmp.eq.s32.totalorder %s11, 1
    %p102 = scmp.ne.s32.totalorder %s97, %s99
    %p103 = scmp.eq.s32.totalorder %s11, 0
    %p104 = por %p102, %p103
    %p105 = scmp.ne.s32.totalorder %s97, %s99
    %p106 = scmp.eq.s32.totalorder %s16, 1
    %p107 = por %p105, %p106
    %p108 = scmp.ne.s32.totalorder %s99, %s100
    %p109 = scmp.eq.s32.totalorder %s16, 0
    %p110 = por %p108, %p109
    %p111 = scmp.ne.s32.totalorder %s99, %s100
    %p112 = scmp.eq.s32.totalorder %s17, 1
    %p113 = por %p111, %p112
    %p115 = scmp.ne.s32.totalorder %s100, %s114
    %p116 = scmp.eq.s32.totalorder %s17, 0
    %p117 = por %p115, %p116
    %s119 = sadd.s32 %s118, 1
    %p122 = scmp.eq.s32.totalorder %s11, 1
    %p123 = scmp.ne.s32.totalorder %s118, %s120
    %p124 = scmp.eq.s32.totalorder %s11, 0
    %p125 = por %p123, %p124
    %p126 = scmp.ne.s32.totalorder %s118, %s120
    %p127 = scmp.eq.s32.totalorder %s16, 1
    %p128 = por %p126, %p127
    %p129 = scmp.ne.s32.totalorder %s120, %s121
    %p130 = scmp.eq.s32.totalorder %s16, 0
    %p131 = por %p129, %p130
    %p132 = scmp.ne.s32.totalorder %s120, %s121
    %p133 = scmp.eq.s32.totalorder %s17, 1
    %p134 = por %p132, %p133
    %p136 = scmp.ne.s32.totalorder %s121, %s135
    %p137 = scmp.eq.s32.totalorder %s17, 0
    %p138 = por %p136, %p137
    %s139 = ssub.s32 %s11, %s18
    %p140 = scmp.eq.s32.totalorder %s139, 0
    %s142 = sadd.s32 %s141, 1
    %s143 = scalar_select %p140, %s141, %s142
    %p146 = pneg %p140
    %p147 = scmp.eq.s32.totalorder %s11, 1
    %p148 = por %p146, %p147
    %p149 = scmp.ne.s32.totalorder %s141, %s144
    %p150 = scmp.eq.s32.totalorder %s11, 0
    %p151 = por %p149, %p150
    %p152 = scmp.ne.s32.totalorder %s141, %s144
    %p153 = scmp.eq.s32.totalorder %s16, 1
    %p154 = por %p152, %p153
    %p155 = scmp.ne.s32.totalorder %s144, %s145
    %p156 = scmp.eq.s32.totalorder %s16, 0
    %p157 = por %p155, %p156
    %p158 = scmp.ne.s32.totalorder %s144, %s145
    %p159 = scmp.eq.s32.totalorder %s17, 1
    %p160 = por %p158, %p159
    %p162 = scmp.ne.s32.totalorder %s145, %s161
    %p163 = scmp.eq.s32.totalorder %s17, 0
    %p164 = por %p162, %p163
    %p165 = scmp.le.s32.totalorder 1, %s11
    %p166 = scmp.lt.s32.totalorder %s11, 3
    %p167 = pnand %p165, %p166
    %p168 = pneg %p167
    // Predicated region
    $region9: #{_lambda_.1} parent=5 // pred_check
      _
    $region10: #{_lambda_.1} parent=5 // pred_check_branch
      %170 = sbr.rel (%p167) target = $region12
    $region11: #{_lambda_.1} parent=5 // pred_region
      %s171 = ssub.s32 %s11, 1
      // Predicated region
      $region13: #{_lambda_.1} parent=11 // pred_check
        %p172 = pneg %p110
      $region14: #{_lambda_.1} parent=11 // pred_check_branch
        %174 = sbr.rel (%p172) target = $region16
      $region15: #{_lambda_.1} parent=11 // pred_region
        _
      $region16: #{_lambda_.1} parent=11 // pred_fallthru
        _
      // Predicated region
      $region17: #{_lambda_.1} parent=11 // pred_check
        %p175 = pneg %p131
      $region18: #{_lambda_.1} parent=11 // pred_check_branch
        %177 = sbr.rel (%p175) target = $region20
      $region19: #{_lambda_.1} parent=11 // pred_region
        _
      $region20: #{_lambda_.1} parent=11 // pred_fallthru
        _
    $region12: #{_lambda_.1} parent=5 // pred_fallthru
      _
    %p178 = scmp.lt.s32.totalorder %s11, 2
    // Predicated region
    $region21: #{_lambda_.1} parent=5 // pred_check
      %p179 = pneg %p178
    $region22: #{_lambda_.1} parent=5 // pred_check_branch
      %181 = sbr.rel (%p179) target = $region24
    $region23: #{_lambda_.1} parent=5 // pred_region
      // Predicated region
      $region25: #{_lambda_.1} parent=23 // pred_check
        %p182 = pneg %p31
      $region26: #{_lambda_.1} parent=23 // pred_check_branch
        %184 = sbr.rel (%p182) target = $region28
      $region27: #{_lambda_.1} parent=23 // pred_region
        %p185 = scmp.lt.s32.totalorder %s11, 1
        %s186 = scalar_select %p185, %s11, 1
        %s187 = smul.addr %s186, 8
        %s188 = scalar_lea.vmem %s0, %s187
      $region28: #{_lambda_.1} parent=23 // pred_fallthru
        _
      // Predicated region
      $region29: #{_lambda_.1} parent=23 // pred_check
        %p189 = pneg %p57
      $region30: #{_lambda_.1} parent=23 // pred_check_branch
        %191 = sbr.rel (%p189) target = $region32
      $region31: #{_lambda_.1} parent=23 // pred_region
        %p192 = scmp.lt.s32.totalorder %s11, 1
        %s193 = scalar_select %p192, %s11, 1
        %s194 = scalar_lea.vmem %s1, %s193
      $region32: #{_lambda_.1} parent=23 // pred_fallthru
        _
      // Predicated region
      $region33: #{_lambda_.1} parent=23 // pred_check
        %p195 = pneg %p83
      $region34: #{_lambda_.1} parent=23 // pred_check_branch
        %197 = sbr.rel (%p195) target = $region36
      $region35: #{_lambda_.1} parent=23 // pred_region
        %p198 = scmp.lt.s32.totalorder %s11, 1
        %s199 = scalar_select %p198, %s11, 1
        %s200 = smul.addr %s199, 8
        %s201 = scalar_lea.vmem %s2, %s200
      $region36: #{_lambda_.1} parent=23 // pred_fallthru
        _
    $region24: #{_lambda_.1} parent=5 // pred_fallthru
      _
    %p202 = scmp.le.s32.totalorder 1, %s11
    %p203 = scmp.lt.s32.totalorder %s11, 3
    %p204 = pnand %p202, %p203
    %p205 = pneg %p204
    // Predicated region
    $region37: #{_lambda_.1} parent=5 // pred_check
      _
    $region38: #{_lambda_.1} parent=5 // pred_check_branch
      %207 = sbr.rel (%p204) target = $region40
    $region39: #{_lambda_.1} parent=5 // pred_region
      %s208 = ssub.s32 %s11, 1
      %p209 = scmp.lt.s32.totalorder %s16, 1
      %s210 = scalar_select %p209, %s16, 1
      %s211 = smul.addr %s210, 8
      %s212 = scalar_lea.vmem %s0, %s211
      %p213 = pneg %p37
      %p214 = pneg %p34
      %p215 = scmp.lt.s32.totalorder %s16, 1
      %s216 = scalar_select %p215, %s16, 1
      %s217 = scalar_lea.vmem %s1, %s216
      %p218 = pneg %p63
      %p219 = pneg %p60
      %p220 = scmp.lt.s32.totalorder %s16, 1
      %s221 = scalar_select %p220, %s16, 1
      %s222 = smul.addr %s221, 8
      %s223 = scalar_lea.vmem %s2, %s222
      %p224 = pneg %p89
      %p225 = pneg %p86
      %p226 = pneg %p110
      %p227 = pneg %p107
      %p228 = pneg %p131
      %p229 = pneg %p128
      %p230 = pneg %p157
      %p231 = pneg %p154
      %p232 = scmp.lt.s32.totalorder %s16, 1
      %s233 = scalar_select %p232, %s16, 1
      %s234 = smul.addr %s233, 8
      %s235 = scalar_lea.vmem %s5, %s234
      %p236 = scmp.lt.s32.totalorder %s16, 1
      %s237 = scalar_select %p236, %s16, 1
      %s238 = smul.addr %s237, 8
      %s239 = scalar_lea.vmem %s0, %s238
      %p240 = scmp.lt.s32.totalorder %s16, 1
      %s241 = scalar_select %p240, %s16, 1
      %s242 = scalar_lea.vmem %s1, %s241
      %p243 = scmp.lt.s32.totalorder %s16, 1
      %s244 = scalar_select %p243, %s16, 1
      %s245 = smul.addr %s244, 8
      %s246 = scalar_lea.vmem %s2, %s245
      %p247 = scmp.lt.s32.totalorder %s16, 1
      %s248 = scalar_select %p247, %s16, 1
      %s249 = smul.addr %s248, 8
      %s250 = scalar_lea.vmem %s5, %s249
      %v252 = vld [vmem:[%s239] sm:$0xff]
      %v253 = vld [vmem:[%s242] sm:$0x1]
      %v254 = vld [vmem:[%s246] sm:$0xff]
      %v255 = vld [vmem:[%s3] sm:$0xf]
      %v256 = vld [vmem:[%s3 + $0x4] sm:$0xf]
      %v257 = vld [vmem:[%s3 + $0x8] sm:$0xf]
      %v258 = vld [vmem:[%s3 + $0xc] sm:$0xf]
      %v259 = vld [vmem:[%s3 + $0x20] sm:$0xf]
      %v260 = vld [vmem:[%s3 + $0x24] sm:$0xf]
      %v261 = vld [vmem:[%s3 + $0x28] sm:$0xf]
      %v262 = vld [vmem:[%s3 + $0x2c] sm:$0xf]
      %v263 = vld [vmem:[%s3 + $0x30] sm:$0xf]
      %v264 = vld [vmem:[%s3 + $0x34] sm:$0xf]
      %v265 = vld [vmem:[%s3 + $0x38] sm:$0xf]
      %v266 = vld [vmem:[%s3 + $0x3c] sm:$0xf]
      %v267 = vld [vmem:[%s3 + $0x40] sm:$0xf]
      %v268 = vld [vmem:[%s3 + $0x44] sm:$0xf]
      %v269 = vld [vmem:[%s3 + $0x48] sm:$0xf]
      %v270 = vld [vmem:[%s3 + $0x4c] sm:$0xf]
      %v271 = vld [vmem:[%s4] sm:$0x1]
      %v272 = vld [vmem:[%s4 + $0x1] sm:$0x1]
      %v273 = vld [vmem:[%s4 + $0x2] sm:$0x1]
      %v274 = vld [vmem:[%s4 + $0x3] sm:$0x1]
      %v275 = vld [vmem:[%s4 + $0x8] sm:$0xff]
      %v276 = vld [vmem:[%s4 + $0x10] sm:$0xff]
      %v277 = vld [vmem:[%s4 + $0x18] sm:$0xff]
      %v278 = vld [vmem:[%s4 + $0x20] sm:$0xff]
      %vm279 = vcmask 261120
      %v280 = vsel %vm279, %v252, 0.0
      %281 = vadd.xlane.f32.xlu0 %v280
      %v282 = vpop.xlane.xlu0 %281
      %v283 = vrot.slane %v282, 4
      %v284 = vadd.f32 %v282, %v283
      %v285 = vrot.slane %v284, 2
      %v286 = vadd.f32 %v284, %v285
      %v287 = vrot.slane %v286, 1
      %v288 = vadd.f32 %v286, %v287
      %v289 = vmul.f32 %v288, 0.00390625
      %v290 = vsub.f32 %v252, %v289
      %v291 = vmul.f32 %v290, %v290
      %v292 = vsel %vm279, %v291, 0.0
      %293 = vadd.xlane.f32.xlu0 %v292
      %v294 = vpop.xlane.xlu0 %293
      %v295 = vrot.slane %v294, 4
      %v296 = vadd.f32 %v294, %v295
      %v297 = vrot.slane %v296, 2
      %v298 = vadd.f32 %v296, %v297
      %v299 = vrot.slane %v298, 1
      %v300 = vadd.f32 %v298, %v299
      %v301 = vmul.f32 %v300, 0.00390625
      %v302 = vadd.f32 %v301, 1e-05
      %v303 = vrsqrt.pop %v302
      %v304 = vmul.f32 %v290, %v303
      %v305 = vmul.f32 %v304, %v275
      %v306 = vadd.f32 %v305, %v276
      %v307 = vpack.c.bf16 %v306, %v306
      %v308 = vlaneseq
      %v309 = vshrl.u32 %v308, 7
      %v310 = vsub.s32 0, %v309
      %v311 = vrot.slane %v271, %v310
      %v316 = vunpack.c.l.b16 %v255
      %v317 = vunpack.c.l.b16 %v256
      %v318 = vunpack.c.l.b16 %v257
      %v319 = vunpack.c.l.b16 %v258
      %v320 = vpack.c.b16 %v317, %v316
      %v321 = vpack.c.b16 %v319, %v318
      %v325 = vsel %vm279, %v307, 0
      %327 = vmatprep.subr.bf16.mxu0 0
      %328 = vmatpush1.bf16.msra.mxu0 0
      %329 = vmatprep.subr.bf16.mxu0 0
      %330 = vmatpush1.bf16.msra.mxu0 0
      %331 = vmatprep.subr.bf16.mxu0 0
      %332 = vmatpush1.bf16.msra.mxu0 0
      %333 = vmatprep.subr.bf16.mxu0 0
      %334 = vmatpush1.bf16.msra.mxu0 0
      %335 = vmatprep.subr.bf16.mxu0 0
      %336 = vmatpush1.bf16.msra.mxu0 0
      %337 = vmatprep.subr.bf16.mxu0 0
      %338 = vmatpush1.bf16.msra.mxu0 0
      %339 = vmatprep.subr.bf16.mxu0 0
      %340 = vmatpush1.bf16.msra.mxu0 %v321
      %341 = vmatprep.subr.bf16.mxu0 0
      %342 = vmatpush1.bf16.msra.mxu0 %v320
      %343 = vmatprep.subr.bf16.mxu0 0
      %344 = vmatpush2.bf16.msra.mxu0 0
      %345 = vmatprep.subr.bf16.mxu0 0
      %346 = vmatpush2.bf16.msra.mxu0 0
      %347 = vmatprep.subr.bf16.mxu0 0
      %348 = vmatpush2.bf16.msra.mxu0 0
      %349 = vmatprep.subr.bf16.mxu0 0
      %350 = vmatpush2.bf16.msra.mxu0 0
      %351 = vmatprep.subr.bf16.mxu0 0
      %352 = vmatpush2.bf16.msra.mxu0 0
      %353 = vmatprep.subr.bf16.mxu0 0
      %354 = vmatpush2.bf16.msra.mxu0 0
      %355 = vmatprep.subr.bf16.mxu0 0
      %356 = vmatpush2.bf16.msra.mxu0 0
      %357 = vmatprep.subr.bf16.mxu0 0
      %358 = vmatpush2.bf16.msra.mxu0 0
      %359 = vmatprep.mubr.bf16.mxu0 0
      %360 = vmatmul.mubr.bf16.gmra.mxu0 %v325
      %v361 = vpop.f32.mrf.mxu0
      %v362 = vadd.f32 %v311, %v361
      %v363 = vpop.f32.mrf.mxu0
      %v364 = vpop.f32.mrf.mxu0
      %v365 = vpop.f32.mrf.mxu0
      %366 = vdwg.mxu0
      %v367 = vpack.c.bf16 %v362, %v362
      %v369 = vlaneseq
      %v370 = vshrl.u32 %v369, 7
      %v371 = vsub.s32 0, %v370
      %v372 = vrot.slane %v253, %v371
      %375 = vrot.lane.b32.xlu0 %v367, 96
      %v376 = vpop.permute.xlu0 %375
      %vm377 = vcmask 64512
      %v379 = vsel %vm377, %v367, 0
      %v382 = vsel %vm377, %v376, 0
      %384 = vmatprep.subr.bf16.mxu0 0
      %385 = vmatpush1.bf16.xpose.msra.mxu0 0
      %386 = vmatprep.subr.bf16.mxu0 0
      %387 = vmatpush1.bf16.xpose.msra.mxu0 0
      %388 = vmatprep.subr.bf16.mxu0 0
      %389 = vmatpush1.bf16.xpose.msra.mxu0 0
      %390 = vmatprep.subr.bf16.mxu0 0
      %391 = vmatpush1.bf16.xpose.msra.mxu0 0
      %392 = vmatprep.subr.bf16.mxu0 0
      %393 = vmatpush1.bf16.xpose.msra.mxu0 0
      %394 = vmatprep.subr.bf16.mxu0 0
      %395 = vmatpush1.bf16.xpose.msra.mxu0 0
      %396 = vmatprep.subr.bf16.mxu0 0
      %397 = vmatpush1.bf16.xpose.msra.mxu0 0
      %398 = vmatprep.subr.bf16.mxu0 0
      %399 = vmatpush1.bf16.xpose.msra.mxu0 %v382
      %400 = vmatprep.subr.bf16.mxu0 0
      %401 = vmatpush2.bf16.xpose.msra.mxu0 0
      %402 = vmatprep.subr.bf16.mxu0 0
      %403 = vmatpush2.bf16.xpose.msra.mxu0 0
      %404 = vmatprep.subr.bf16.mxu0 0
      %405 = vmatpush2.bf16.xpose.msra.mxu0 0
      %406 = vmatprep.subr.bf16.mxu0 0
      %407 = vmatpush2.bf16.xpose.msra.mxu0 0
      %408 = vmatprep.subr.bf16.mxu0 0
      %409 = vmatpush2.bf16.xpose.msra.mxu0 0
      %410 = vmatprep.subr.bf16.mxu0 0
      %411 = vmatpush2.bf16.xpose.msra.mxu0 0
      %412 = vmatprep.subr.bf16.mxu0 0
      %413 = vmatpush2.bf16.xpose.msra.mxu0 0
      %414 = vmatprep.subr.bf16.mxu0 0
      %415 = vmatpush2.bf16.xpose.msra.mxu0 0
      %416 = vmatprep.mubr.bf16.mxu0 0
      %417 = vmatmul.mubr.bf16.gmra.mxu0 %v379
      %v418 = vpop.f32.mrf.mxu0
      %v419 = vadd.f32 %v372, %v418
      %v420 = vpop.f32.mrf.mxu0
      %v421 = vpop.f32.mrf.mxu0
      %v422 = vpop.f32.mrf.mxu0
      %423 = vdwg.mxu0
      %v424 = vsel %vm377, %v419, -inf
      %425 = vmax.xlane.f32.xlu0 %v424
      %v426 = vpop.xlane.xlu0 %425
      %v427 = vsub.f32 %v419, %v426
      %v428 = vmul.f32 %v427, 1.442695
      %v429 = vpow.pop %v428
      %v430 = vsel %vm377, %v429, 0.0
      %431 = vadd.xlane.f32.xlu0 %v430
      %v432 = vpop.xlane.xlu0 %431
      %v433 = vrcp.pop %v432
      %v434 = vmul.f32 %v429, %v433
      %v435 = vpack.c.bf16 %v434, %v434
      %436 = vrot.lane.b32.xlu0 %v367, 64
      %v437 = vpop.permute.xlu0 %436
      %v439 = vsel %vm377, %v435, 0
      %vm441 = vcmask 1043456
      %v443 = vsel %vm441, %v437, 0
      %445 = vmatprep.subr.bf16.mxu0 0
      %446 = vmatpush1.bf16.msra.mxu0 0
      %447 = vmatprep.subr.bf16.mxu0 0
      %448 = vmatpush1.bf16.msra.mxu0 0
      %449 = vmatprep.subr.bf16.mxu0 0
      %450 = vmatpush1.bf16.msra.mxu0 0
      %451 = vmatprep.subr.bf16.mxu0 0
      %452 = vmatpush1.bf16.msra.mxu0 0
      %453 = vmatprep.subr.bf16.mxu0 0
      %454 = vmatpush1.bf16.msra.mxu0 0
      %455 = vmatprep.subr.bf16.mxu0 0
      %456 = vmatpush1.bf16.msra.mxu0 0
      %457 = vmatprep.subr.bf16.mxu0 0
      %458 = vmatpush1.bf16.msra.mxu0 0
      %459 = vmatprep.subr.bf16.mxu0 0
      %460 = vmatpush1.bf16.msra.mxu0 %v443
      %461 = vmatprep.subr.bf16.mxu0 0
      %462 = vmatpush2.bf16.msra.mxu0 0
      %463 = vmatprep.subr.bf16.mxu0 0
      %464 = vmatpush2.bf16.msra.mxu0 0
      %465 = vmatprep.subr.bf16.mxu0 0
      %466 = vmatpush2.bf16.msra.mxu0 0
      %467 = vmatprep.subr.bf16.mxu0 0
      %468 = vmatpush2.bf16.msra.mxu0 0
      %469 = vmatprep.subr.bf16.mxu0 0
      %470 = vmatpush2.bf16.msra.mxu0 0
      %471 = vmatprep.subr.bf16.mxu0 0
      %472 = vmatpush2.bf16.msra.mxu0 0
      %473 = vmatprep.subr.bf16.mxu0 0
      %474 = vmatpush2.bf16.msra.mxu0 0
      %475 = vmatprep.subr.bf16.mxu0 0
      %476 = vmatpush2.bf16.msra.mxu0 0
      %477 = vmatprep.mubr.bf16.mxu0 0
      %478 = vmatmul.mubr.bf16.gmra.mxu0 %v439
      %v479 = vpop.f32.mrf.mxu0
      %v480 = vadd.f32 0.0, %v479
      %v481 = vpop.f32.mrf.mxu0
      %v482 = vpop.f32.mrf.mxu0
      %v483 = vpop.f32.mrf.mxu0
      %484 = vdwg.mxu0
      %v485 = vld [vmem:[%s3 + $0x10] sm:$0xf]
      %v486 = vpack.c.bf16 %v480, %v480
      %487 = vrot.lane.b32.xlu0 %v367, 120
      %v488 = vpop.permute.xlu0 %487
      %489 = vrot.lane.b32.xlu0 %v367, 88
      %v490 = vpop.permute.xlu0 %489
      %v492 = vsel %vm377, %v488, 0
      %v495 = vsel %vm377, %v490, 0
      %497 = vmatprep.subr.bf16.mxu0 0
      %498 = vmatpush1.bf16.xpose.msra.mxu0 0
      %499 = vmatprep.subr.bf16.mxu0 0
      %500 = vmatpush1.bf16.xpose.msra.mxu0 0
      %501 = vmatprep.subr.bf16.mxu0 0
      %502 = vmatpush1.bf16.xpose.msra.mxu0 0
      %503 = vmatprep.subr.bf16.mxu0 0
      %504 = vmatpush1.bf16.xpose.msra.mxu0 0
      %505 = vmatprep.subr.bf16.mxu0 0
      %506 = vmatpush1.bf16.xpose.msra.mxu0 0
      %507 = vmatprep.subr.bf16.mxu0 0
      %508 = vmatpush1.bf16.xpose.msra.mxu0 0
      %509 = vmatprep.subr.bf16.mxu0 0
      %510 = vmatpush1.bf16.xpose.msra.mxu0 0
      %511 = vmatprep.subr.bf16.mxu0 0
      %512 = vmatpush1.bf16.xpose.msra.mxu0 %v495
      %513 = vmatprep.subr.bf16.mxu0 0
      %514 = vmatpush2.bf16.xpose.msra.mxu0 0
      %515 = vmatprep.subr.bf16.mxu0 0
      %516 = vmatpush2.bf16.xpose.msra.mxu0 0
      %517 = vmatprep.subr.bf16.mxu0 0
      %518 = vmatpush2.bf16.xpose.msra.mxu0 0
      %519 = vmatprep.subr.bf16.mxu0 0
      %520 = vmatpush2.bf16.xpose.msra.mxu0 0
      %521 = vmatprep.subr.bf16.mxu0 0
      %522 = vmatpush2.bf16.xpose.msra.mxu0 0
      %523 = vmatprep.subr.bf16.mxu0 0
      %524 = vmatpush2.bf16.xpose.msra.mxu0 0
      %525 = vmatprep.subr.bf16.mxu0 0
      %526 = vmatpush2.bf16.xpose.msra.mxu0 0
      %527 = vmatprep.subr.bf16.mxu0 0
      %528 = vmatpush2.bf16.xpose.msra.mxu0 0
      %529 = vmatprep.mubr.bf16.mxu0 0
      %530 = vmatmul.mubr.bf16.gmra.mxu0 %v492
      %v531 = vpop.f32.mrf.mxu0
      %v532 = vadd.f32 %v372, %v531
      %v533 = vpop.f32.mrf.mxu0
      %v534 = vpop.f32.mrf.mxu0
      %v535 = vpop.f32.mrf.mxu0
      %536 = vdwg.mxu0
      %v537 = vsel %vm377, %v532, -inf
      %538 = vmax.xlane.f32.xlu0 %v537
      %v539 = vpop.xlane.xlu0 %538
      %v540 = vsub.f32 %v532, %v539
      %v541 = vmul.f32 %v540, 1.442695
      %v542 = vpow.pop %v541
      %v543 = vsel %vm377, %v542, 0.0
      %544 = vadd.xlane.f32.xlu0 %v543
      %v545 = vpop.xlane.xlu0 %544
      %v546 = vrcp.pop %v545
      %v547 = vmul.f32 %v542, %v546
      %v548 = vpack.c.bf16 %v547, %v547
      %549 = vrot.lane.b32.xlu0 %v367, 56
      %v550 = vpop.permute.xlu0 %549
      %v552 = vsel %vm377, %v548, 0
      %v555 = vsel %vm441, %v550, 0
      %557 = vmatprep.subr.bf16.mxu0 0
      %558 = vmatpush1.bf16.msra.mxu0 0
      %559 = vmatprep.subr.bf16.mxu0 0
      %560 = vmatpush1.bf16.msra.mxu0 0
      %561 = vmatprep.subr.bf16.mxu0 0
      %562 = vmatpush1.bf16.msra.mxu0 0
      %563 = vmatprep.subr.bf16.mxu0 0
      %564 = vmatpush1.bf16.msra.mxu0 0
      %565 = vmatprep.subr.bf16.mxu0 0
      %566 = vmatpush1.bf16.msra.mxu0 0
      %567 = vmatprep.subr.bf16.mxu0 0
      %568 = vmatpush1.bf16.msra.mxu0 0
      %569 = vmatprep.subr.bf16.mxu0 0
      %570 = vmatpush1.bf16.msra.mxu0 0
      %571 = vmatprep.subr.bf16.mxu0 0
      %572 = vmatpush1.bf16.msra.mxu0 %v555
      %573 = vmatprep.subr.bf16.mxu0 0
      %574 = vmatpush2.bf16.msra.mxu0 0
      %575 = vmatprep.subr.bf16.mxu0 0
      %576 = vmatpush2.bf16.msra.mxu0 0
      %577 = vmatprep.subr.bf16.mxu0 0
      %578 = vmatpush2.bf16.msra.mxu0 0
      %579 = vmatprep.subr.bf16.mxu0 0
      %580 = vmatpush2.bf16.msra.mxu0 0
      %581 = vmatprep.subr.bf16.mxu0 0
      %582 = vmatpush2.bf16.msra.mxu0 0
      %583 = vmatprep.subr.bf16.mxu0 0
      %584 = vmatpush2.bf16.msra.mxu0 0
      %585 = vmatprep.subr.bf16.mxu0 0
      %586 = vmatpush2.bf16.msra.mxu0 0
      %587 = vmatprep.subr.bf16.mxu0 0
      %588 = vmatpush2.bf16.msra.mxu0 0
      %589 = vmatprep.mubr.bf16.mxu0 0
      %590 = vmatmul.mubr.bf16.gmra.mxu0 %v552
      %v591 = vpop.f32.mrf.mxu0
      %v592 = vadd.f32 0.0, %v591
      %v593 = vpop.f32.mrf.mxu0
      %v594 = vpop.f32.mrf.mxu0
      %v595 = vpop.f32.mrf.mxu0
      %596 = vdwg.mxu0
      %v597 = vld [vmem:[%s3 + $0x14] sm:$0xf]
      %v598 = vpack.c.bf16 %v592, %v592
      %v600 = vsel %vm377, %v598, 0
      %v603 = vsel %vm441, %v597, 0
      %605 = vmatprep.subr.bf16.mxu0 0
      %606 = vmatpush1.bf16.msra.mxu0 0
      %607 = vmatprep.subr.bf16.mxu0 0
      %608 = vmatpush1.bf16.msra.mxu0 0
      %609 = vmatprep.subr.bf16.mxu0 0
      %610 = vmatpush1.bf16.msra.mxu0 0
      %611 = vmatprep.subr.bf16.mxu0 0
      %612 = vmatpush1.bf16.msra.mxu0 0
      %613 = vmatprep.subr.bf16.mxu0 0
      %614 = vmatpush1.bf16.msra.mxu0 0
      %615 = vmatprep.subr.bf16.mxu0 0
      %616 = vmatpush1.bf16.msra.mxu0 0
      %617 = vmatprep.subr.bf16.mxu0 0
      %618 = vmatpush1.bf16.msra.mxu0 0
      %619 = vmatprep.subr.bf16.mxu0 0
      %620 = vmatpush1.bf16.msra.mxu0 %v603
      %621 = vmatprep.subr.bf16.mxu0 0
      %622 = vmatpush2.bf16.msra.mxu0 0
      %623 = vmatprep.subr.bf16.mxu0 0
      %624 = vmatpush2.bf16.msra.mxu0 0
      %625 = vmatprep.subr.bf16.mxu0 0
      %626 = vmatpush2.bf16.msra.mxu0 0
      %627 = vmatprep.subr.bf16.mxu0 0
      %628 = vmatpush2.bf16.msra.mxu0 0
      %629 = vmatprep.subr.bf16.mxu0 0
      %630 = vmatpush2.bf16.msra.mxu0 0
      %631 = vmatprep.subr.bf16.mxu0 0
      %632 = vmatpush2.bf16.msra.mxu0 0
      %633 = vmatprep.subr.bf16.mxu0 0
      %634 = vmatpush2.bf16.msra.mxu0 0
      %635 = vmatprep.subr.bf16.mxu0 0
      %636 = vmatpush2.bf16.msra.mxu0 0
      %637 = vmatprep.mubr.bf16.mxu0 0
      %638 = vmatmul.mubr.bf16.gmra.mxu0 %v600
      %v639 = vpop.f32.mrf.mxu0
      %v640 = vadd.f32 0.0, %v639
      %v641 = vpop.f32.mrf.mxu0
      %v642 = vpop.f32.mrf.mxu0
      %v643 = vpop.f32.mrf.mxu0
      %644 = vdwg.mxu0
      %v646 = vsel %vm377, %v486, 0
      %v649 = vsel %vm441, %v485, 0
      %651 = vmatprep.subr.bf16.mxu0 0
      %652 = vmatpush1.bf16.msra.mxu0 0
      %653 = vmatprep.subr.bf16.mxu0 0
      %654 = vmatpush1.bf16.msra.mxu0 0
      %655 = vmatprep.subr.bf16.mxu0 0
      %656 = vmatpush1.bf16.msra.mxu0 0
      %657 = vmatprep.subr.bf16.mxu0 0
      %658 = vmatpush1.bf16.msra.mxu0 0
      %659 = vmatprep.subr.bf16.mxu0 0
      %660 = vmatpush1.bf16.msra.mxu0 0
      %661 = vmatprep.subr.bf16.mxu0 0
      %662 = vmatpush1.bf16.msra.mxu0 0
      %663 = vmatprep.subr.bf16.mxu0 0
      %664 = vmatpush1.bf16.msra.mxu0 0
      %665 = vmatprep.subr.bf16.mxu0 0
      %666 = vmatpush1.bf16.msra.mxu0 %v649
      %667 = vmatprep.subr.bf16.mxu0 0
      %668 = vmatpush2.bf16.msra.mxu0 0
      %669 = vmatprep.subr.bf16.mxu0 0
      %670 = vmatpush2.bf16.msra.mxu0 0
      %671 = vmatprep.subr.bf16.mxu0 0
      %672 = vmatpush2.bf16.msra.mxu0 0
      %673 = vmatprep.subr.bf16.mxu0 0
      %674 = vmatpush2.bf16.msra.mxu0 0
      %675 = vmatprep.subr.bf16.mxu0 0
      %676 = vmatpush2.bf16.msra.mxu0 0
      %677 = vmatprep.subr.bf16.mxu0 0
      %678 = vmatpush2.bf16.msra.mxu0 0
      %679 = vmatprep.subr.bf16.mxu0 0
      %680 = vmatpush2.bf16.msra.mxu0 0
      %681 = vmatprep.subr.bf16.mxu0 0
      %682 = vmatpush2.bf16.msra.mxu0 0
      %683 = vmatprep.mubr.bf16.mxu0 0
      %684 = vmatmul.mubr.bf16.gmra.mxu0 %v646
      %v685 = vpop.f32.mrf.mxu0
      %v686 = vadd.f32 %v640, %v685
      %v687 = vpop.f32.mrf.mxu0
      %v688 = vpop.f32.mrf.mxu0
      %v689 = vpop.f32.mrf.mxu0
      %690 = vdwg.mxu0
      %691 = vrot.lane.b32.xlu0 %v367, 112
      %v692 = vpop.permute.xlu0 %691
      %693 = vrot.lane.b32.xlu0 %v367, 80
      %v694 = vpop.permute.xlu0 %693
      %v696 = vsel %vm377, %v692, 0
      %v699 = vsel %vm377, %v694, 0
      %701 = vmatprep.subr.bf16.mxu0 0
      %702 = vmatpush1.bf16.xpose.msra.mxu0 0
      %703 = vmatprep.subr.bf16.mxu0 0
      %704 = vmatpush1.bf16.xpose.msra.mxu0 0
      %705 = vmatprep.subr.bf16.mxu0 0
      %706 = vmatpush1.bf16.xpose.msra.mxu0 0
      %707 = vmatprep.subr.bf16.mxu0 0
      %708 = vmatpush1.bf16.xpose.msra.mxu0 0
      %709 = vmatprep.subr.bf16.mxu0 0
      %710 = vmatpush1.bf16.xpose.msra.mxu0 0
      %711 = vmatprep.subr.bf16.mxu0 0
      %712 = vmatpush1.bf16.xpose.msra.mxu0 0
      %713 = vmatprep.subr.bf16.mxu0 0
      %714 = vmatpush1.bf16.xpose.msra.mxu0 0
      %715 = vmatprep.subr.bf16.mxu0 0
      %716 = vmatpush1.bf16.xpose.msra.mxu0 %v699
      %717 = vmatprep.subr.bf16.mxu0 0
      %718 = vmatpush2.bf16.xpose.msra.mxu0 0
      %719 = vmatprep.subr.bf16.mxu0 0
      %720 = vmatpush2.bf16.xpose.msra.mxu0 0
      %721 = vmatprep.subr.bf16.mxu0 0
      %722 = vmatpush2.bf16.xpose.msra.mxu0 0
      %723 = vmatprep.subr.bf16.mxu0 0
      %724 = vmatpush2.bf16.xpose.msra.mxu0 0
      %725 = vmatprep.subr.bf16.mxu0 0
      %726 = vmatpush2.bf16.xpose.msra.mxu0 0
      %727 = vmatprep.subr.bf16.mxu0 0
      %728 = vmatpush2.bf16.xpose.msra.mxu0 0
      %729 = vmatprep.subr.bf16.mxu0 0
      %730 = vmatpush2.bf16.xpose.msra.mxu0 0
      %731 = vmatprep.subr.bf16.mxu0 0
      %732 = vmatpush2.bf16.xpose.msra.mxu0 0
      %733 = vmatprep.mubr.bf16.mxu0 0
      %734 = vmatmul.mubr.bf16.gmra.mxu0 %v696
      %v735 = vpop.f32.mrf.mxu0
      %v736 = vadd.f32 %v372, %v735
      %v737 = vpop.f32.mrf.mxu0
      %v738 = vpop.f32.mrf.mxu0
      %v739 = vpop.f32.mrf.mxu0
      %740 = vdwg.mxu0
      %v741 = vsel %vm377, %v736, -inf
      %742 = vmax.xlane.f32.xlu0 %v741
      %v743 = vpop.xlane.xlu0 %742
      %v744 = vsub.f32 %v736, %v743
      %v745 = vmul.f32 %v744, 1.442695
      %v746 = vpow.pop %v745
      %v747 = vsel %vm377, %v746, 0.0
      %748 = vadd.xlane.f32.xlu0 %v747
      %v749 = vpop.xlane.xlu0 %748
      %v750 = vrcp.pop %v749
      %v751 = vmul.f32 %v746, %v750
      %v752 = vpack.c.bf16 %v751, %v751
      %753 = vrot.lane.b32.xlu0 %v367, 48
      %v754 = vpop.permute.xlu0 %753
      %v756 = vsel %vm377, %v752, 0
      %v759 = vsel %vm441, %v754, 0
      %761 = vmatprep.subr.bf16.mxu0 0
      %762 = vmatpush1.bf16.msra.mxu0 0
      %763 = vmatprep.subr.bf16.mxu0 0
      %764 = vmatpush1.bf16.msra.mxu0 0
      %765 = vmatprep.subr.bf16.mxu0 0
      %766 = vmatpush1.bf16.msra.mxu0 0
      %767 = vmatprep.subr.bf16.mxu0 0
      %768 = vmatpush1.bf16.msra.mxu0 0
      %769 = vmatprep.subr.bf16.mxu0 0
      %770 = vmatpush1.bf16.msra.mxu0 0
      %771 = vmatprep.subr.bf16.mxu0 0
      %772 = vmatpush1.bf16.msra.mxu0 0
      %773 = vmatprep.subr.bf16.mxu0 0
      %774 = vmatpush1.bf16.msra.mxu0 0
      %775 = vmatprep.subr.bf16.mxu0 0
      %776 = vmatpush1.bf16.msra.mxu0 %v759
      %777 = vmatprep.subr.bf16.mxu0 0
      %778 = vmatpush2.bf16.msra.mxu0 0
      %779 = vmatprep.subr.bf16.mxu0 0
      %780 = vmatpush2.bf16.msra.mxu0 0
      %781 = vmatprep.subr.bf16.mxu0 0
      %782 = vmatpush2.bf16.msra.mxu0 0
      %783 = vmatprep.subr.bf16.mxu0 0
      %784 = vmatpush2.bf16.msra.mxu0 0
      %785 = vmatprep.subr.bf16.mxu0 0
      %786 = vmatpush2.bf16.msra.mxu0 0
      %787 = vmatprep.subr.bf16.mxu0 0
      %788 = vmatpush2.bf16.msra.mxu0 0
      %789 = vmatprep.subr.bf16.mxu0 0
      %790 = vmatpush2.bf16.msra.mxu0 0
      %791 = vmatprep.subr.bf16.mxu0 0
      %792 = vmatpush2.bf16.msra.mxu0 0
      %793 = vmatprep.mubr.bf16.mxu0 0
      %794 = vmatmul.mubr.bf16.gmra.mxu0 %v756
      %v795 = vpop.f32.mrf.mxu0
      %v796 = vadd.f32 0.0, %v795
      %v797 = vpop.f32.mrf.mxu0
      %v798 = vpop.f32.mrf.mxu0
      %v799 = vpop.f32.mrf.mxu0
      %800 = vdwg.mxu0
      %v801 = vld [vmem:[%s3 + $0x18] sm:$0xf]
      %v802 = vpack.c.bf16 %v796, %v796
      %v804 = vsel %vm377, %v802, 0
      %v807 = vsel %vm441, %v801, 0
      %809 = vmatprep.subr.bf16.mxu0 0
      %810 = vmatpush1.bf16.msra.mxu0 0
      %811 = vmatprep.subr.bf16.mxu0 0
      %812 = vmatpush1.bf16.msra.mxu0 0
      %813 = vmatprep.subr.bf16.mxu0 0
      %814 = vmatpush1.bf16.msra.mxu0 0
      %815 = vmatprep.subr.bf16.mxu0 0
      %816 = vmatpush1.bf16.msra.mxu0 0
      %817 = vmatprep.subr.bf16.mxu0 0
      %818 = vmatpush1.bf16.msra.mxu0 0
      %819 = vmatprep.subr.bf16.mxu0 0
      %820 = vmatpush1.bf16.msra.mxu0 0
      %821 = vmatprep.subr.bf16.mxu0 0
      %822 = vmatpush1.bf16.msra.mxu0 0
      %823 = vmatprep.subr.bf16.mxu0 0
      %824 = vmatpush1.bf16.msra.mxu0 %v807
      %825 = vmatprep.subr.bf16.mxu0 0
      %826 = vmatpush2.bf16.msra.mxu0 0
      %827 = vmatprep.subr.bf16.mxu0 0
      %828 = vmatpush2.bf16.msra.mxu0 0
      %829 = vmatprep.subr.bf16.mxu0 0
      %830 = vmatpush2.bf16.msra.mxu0 0
      %831 = vmatprep.subr.bf16.mxu0 0
      %832 = vmatpush2.bf16.msra.mxu0 0
      %833 = vmatprep.subr.bf16.mxu0 0
      %834 = vmatpush2.bf16.msra.mxu0 0
      %835 = vmatprep.subr.bf16.mxu0 0
      %836 = vmatpush2.bf16.msra.mxu0 0
      %837 = vmatprep.subr.bf16.mxu0 0
      %838 = vmatpush2.bf16.msra.mxu0 0
      %839 = vmatprep.subr.bf16.mxu0 0
      %840 = vmatpush2.bf16.msra.mxu0 0
      %841 = vmatprep.mubr.bf16.mxu0 0
      %842 = vmatmul.mubr.bf16.gmra.mxu0 %v804
      %v843 = vpop.f32.mrf.mxu0
      %v844 = vadd.f32 0.0, %v843
      %v845 = vpop.f32.mrf.mxu0
      %v846 = vpop.f32.mrf.mxu0
      %v847 = vpop.f32.mrf.mxu0
      %848 = vdwg.mxu0
      %v849 = vadd.f32 %v686, %v844
      %850 = vrot.lane.b32.xlu0 %v367, 104
      %v851 = vpop.permute.xlu0 %850
      %852 = vrot.lane.b32.xlu0 %v367, 72
      %v853 = vpop.permute.xlu0 %852
      %v855 = vsel %vm377, %v851, 0
      %v858 = vsel %vm377, %v853, 0
      %860 = vmatprep.subr.bf16.mxu0 0
      %861 = vmatpush1.bf16.xpose.msra.mxu0 0
      %862 = vmatprep.subr.bf16.mxu0 0
      %863 = vmatpush1.bf16.xpose.msra.mxu0 0
      %864 = vmatprep.subr.bf16.mxu0 0
      %865 = vmatpush1.bf16.xpose.msra.mxu0 0
      %866 = vmatprep.subr.bf16.mxu0 0
      %867 = vmatpush1.bf16.xpose.msra.mxu0 0
      %868 = vmatprep.subr.bf16.mxu0 0
      %869 = vmatpush1.bf16.xpose.msra.mxu0 0
      %870 = vmatprep.subr.bf16.mxu0 0
      %871 = vmatpush1.bf16.xpose.msra.mxu0 0
      %872 = vmatprep.subr.bf16.mxu0 0
      %873 = vmatpush1.bf16.xpose.msra.mxu0 0
      %874 = vmatprep.subr.bf16.mxu0 0
      %875 = vmatpush1.bf16.xpose.msra.mxu0 %v858
      %876 = vmatprep.subr.bf16.mxu0 0
      %877 = vmatpush2.bf16.xpose.msra.mxu0 0
      %878 = vmatprep.subr.bf16.mxu0 0
      %879 = vmatpush2.bf16.xpose.msra.mxu0 0
      %880 = vmatprep.subr.bf16.mxu0 0
      %881 = vmatpush2.bf16.xpose.msra.mxu0 0
      %882 = vmatprep.subr.bf16.mxu0 0
      %883 = vmatpush2.bf16.xpose.msra.mxu0 0
      %884 = vmatprep.subr.bf16.mxu0 0
      %885 = vmatpush2.bf16.xpose.msra.mxu0 0
      %886 = vmatprep.subr.bf16.mxu0 0
      %887 = vmatpush2.bf16.xpose.msra.mxu0 0
      %888 = vmatprep.subr.bf16.mxu0 0
      %889 = vmatpush2.bf16.xpose.msra.mxu0 0
      %890 = vmatprep.subr.bf16.mxu0 0
      %891 = vmatpush2.bf16.xpose.msra.mxu0 0
      %892 = vmatprep.mubr.bf16.mxu0 0
      %893 = vmatmul.mubr.bf16.gmra.mxu0 %v855
      %v894 = vpop.f32.mrf.mxu0
      %v895 = vadd.f32 %v372, %v894
      %v896 = vpop.f32.mrf.mxu0
      %v897 = vpop.f32.mrf.mxu0
      %v898 = vpop.f32.mrf.mxu0
      %899 = vdwg.mxu0
      %v900 = vsel %vm377, %v895, -inf
      %901 = vmax.xlane.f32.xlu0 %v900
      %v902 = vpop.xlane.xlu0 %901
      %v903 = vsub.f32 %v895, %v902
      %v904 = vmul.f32 %v903, 1.442695
      %v905 = vpow.pop %v904
      %v906 = vsel %vm377, %v905, 0.0
      %907 = vadd.xlane.f32.xlu0 %v906
      %v908 = vpop.xlane.xlu0 %907
      %v909 = vrcp.pop %v908
      %v910 = vmul.f32 %v905, %v909
      %v911 = vpack.c.bf16 %v910, %v910
      %912 = vrot.lane.b32.xlu0 %v367, 40
      %v913 = vpop.permute.xlu0 %912
      %v915 = vsel %vm377, %v911, 0
      %v918 = vsel %vm441, %v913, 0
      %920 = vmatprep.subr.bf16.mxu0 0
      %921 = vmatpush1.bf16.msra.mxu0 0
      %922 = vmatprep.subr.bf16.mxu0 0
      %923 = vmatpush1.bf16.msra.mxu0 0
      %924 = vmatprep.subr.bf16.mxu0 0
      %925 = vmatpush1.bf16.msra.mxu0 0
      %926 = vmatprep.subr.bf16.mxu0 0
      %927 = vmatpush1.bf16.msra.mxu0 0
      %928 = vmatprep.subr.bf16.mxu0 0
      %929 = vmatpush1.bf16.msra.mxu0 0
      %930 = vmatprep.subr.bf16.mxu0 0
      %931 = vmatpush1.bf16.msra.mxu0 0
      %932 = vmatprep.subr.bf16.mxu0 0
      %933 = vmatpush1.bf16.msra.mxu0 0
      %934 = vmatprep.subr.bf16.mxu0 0
      %935 = vmatpush1.bf16.msra.mxu0 %v918
      %936 = vmatprep.subr.bf16.mxu0 0
      %937 = vmatpush2.bf16.msra.mxu0 0
      %938 = vmatprep.subr.bf16.mxu0 0
      %939 = vmatpush2.bf16.msra.mxu0 0
      %940 = vmatprep.subr.bf16.mxu0 0
      %941 = vmatpush2.bf16.msra.mxu0 0
      %942 = vmatprep.subr.bf16.mxu0 0
      %943 = vmatpush2.bf16.msra.mxu0 0
      %944 = vmatprep.subr.bf16.mxu0 0
      %945 = vmatpush2.bf16.msra.mxu0 0
      %946 = vmatprep.subr.bf16.mxu0 0
      %947 = vmatpush2.bf16.msra.mxu0 0
      %948 = vmatprep.subr.bf16.mxu0 0
      %949 = vmatpush2.bf16.msra.mxu0 0
      %950 = vmatprep.subr.bf16.mxu0 0
      %951 = vmatpush2.bf16.msra.mxu0 0
      %952 = vmatprep.mubr.bf16.mxu0 0
      %953 = vmatmul.mubr.bf16.gmra.mxu0 %v915
      %v954 = vpop.f32.mrf.mxu0
      %v955 = vadd.f32 0.0, %v954
      %v956 = vpop.f32.mrf.mxu0
      %v957 = vpop.f32.mrf.mxu0
      %v958 = vpop.f32.mrf.mxu0
      %959 = vdwg.mxu0
      %v960 = vld [vmem:[%s3 + $0x1c] sm:$0xf]
      %v961 = vpack.c.bf16 %v955, %v955
      %v963 = vsel %vm377, %v961, 0
      %v966 = vsel %vm441, %v960, 0
      %968 = vmatprep.subr.bf16.mxu0 0
      %969 = vmatpush1.bf16.msra.mxu0 0
      %970 = vmatprep.subr.bf16.mxu0 0
      %971 = vmatpush1.bf16.msra.mxu0 0
      %972 = vmatprep.subr.bf16.mxu0 0
      %973 = vmatpush1.bf16.msra.mxu0 0
      %974 = vmatprep.subr.bf16.mxu0 0
      %975 = vmatpush1.bf16.msra.mxu0 0
      %976 = vmatprep.subr.bf16.mxu0 0
      %977 = vmatpush1.bf16.msra.mxu0 0
      %978 = vmatprep.subr.bf16.mxu0 0
      %979 = vmatpush1.bf16.msra.mxu0 0
      %980 = vmatprep.subr.bf16.mxu0 0
      %981 = vmatpush1.bf16.msra.mxu0 0
      %982 = vmatprep.subr.bf16.mxu0 0
      %983 = vmatpush1.bf16.msra.mxu0 %v966
      %984 = vmatprep.subr.bf16.mxu0 0
      %985 = vmatpush2.bf16.msra.mxu0 0
      %986 = vmatprep.subr.bf16.mxu0 0
      %987 = vmatpush2.bf16.msra.mxu0 0
      %988 = vmatprep.subr.bf16.mxu0 0
      %989 = vmatpush2.bf16.msra.mxu0 0
      %990 = vmatprep.subr.bf16.mxu0 0
      %991 = vmatpush2.bf16.msra.mxu0 0
      %992 = vmatprep.subr.bf16.mxu0 0
      %993 = vmatpush2.bf16.msra.mxu0 0
      %994 = vmatprep.subr.bf16.mxu0 0
      %995 = vmatpush2.bf16.msra.mxu0 0
      %996 = vmatprep.subr.bf16.mxu0 0
      %997 = vmatpush2.bf16.msra.mxu0 0
      %998 = vmatprep.subr.bf16.mxu0 0
      %999 = vmatpush2.bf16.msra.mxu0 0
      %1000 = vmatprep.mubr.bf16.mxu0 0
      %1001 = vmatmul.mubr.bf16.gmra.mxu0 %v963
      %v1002 = vpop.f32.mrf.mxu0
      %v1003 = vadd.f32 0.0, %v1002
      %v1004 = vpop.f32.mrf.mxu0
      %v1005 = vpop.f32.mrf.mxu0
      %v1006 = vpop.f32.mrf.mxu0
      %1007 = vdwg.mxu0
      %v1008 = vadd.f32 %v849, %v1003
      %v1009 = vlaneseq
      %v1010 = vshrl.u32 %v1009, 7
      %v1011 = vsub.s32 0, %v1010
      %v1012 = vrot.slane %v272, %v1011
      %v1013 = vadd.f32 %v1008, %v1012
      %v1014 = vadd.f32 %v1013, %v252
      %v1015 = vsel %vm279, %v1014, 0.0
      %1016 = vadd.xlane.f32.xlu0 %v1015
      %v1017 = vpop.xlane.xlu0 %1016
      %v1018 = vrot.slane %v1017, 4
      %v1019 = vadd.f32 %v1017, %v1018
      %v1020 = vrot.slane %v1019, 2
      %v1021 = vadd.f32 %v1019, %v1020
      %v1022 = vrot.slane %v1021, 1
      %v1023 = vadd.f32 %v1021, %v1022
      %v1024 = vmul.f32 %v1023, 0.00390625
      %v1025 = vsub.f32 %v1014, %v1024
      %v1026 = vmul.f32 %v1025, %v1025
      %v1027 = vsel %vm279, %v1026, 0.0
      %1028 = vadd.xlane.f32.xlu0 %v1027
      %v1029 = vpop.xlane.xlu0 %1028
      %v1030 = vrot.slane %v1029, 4
      %v1031 = vadd.f32 %v1029, %v1030
      %v1032 = vrot.slane %v1031, 2
      %v1033 = vadd.f32 %v1031, %v1032
      %v1034 = vrot.slane %v1033, 1
      %v1035 = vadd.f32 %v1033, %v1034
      %v1036 = vmul.f32 %v1035, 0.00390625
      %v1037 = vadd.f32 %v1036, 1e-05
      %v1038 = vrsqrt.pop %v1037
      %v1039 = vmul.f32 %v1025, %v1038
      %v1040 = vmul.f32 %v1039, %v277
      %v1041 = vadd.f32 %v1040, %v278
      %v1042 = vpack.c.bf16 %v1041, %v1041
      %v1043 = vlaneseq
      %v1044 = vshrl.u32 %v1043, 7
      %v1045 = vsub.s32 0, %v1044
      %v1046 = vrot.slane %v273, %v1045
      %v1051 = vunpack.c.l.b16 %v259
      %v1052 = vunpack.c.l.b16 %v260
      %v1053 = vunpack.c.l.b16 %v261
      %v1054 = vunpack.c.l.b16 %v262
      %v1055 = vpack.c.b16 %v1052, %v1051
      %v1056 = vpack.c.b16 %v1054, %v1053
      %v1060 = vsel %vm279, %v1042, 0
      %1062 = vmatprep.subr.bf16.mxu0 0
      %1063 = vmatpush1.bf16.msra.mxu0 0
      %1064 = vmatprep.subr.bf16.mxu0 0
      %1065 = vmatpush1.bf16.msra.mxu0 0
      %1066 = vmatprep.subr.bf16.mxu0 0
      %1067 = vmatpush1.bf16.msra.mxu0 0
      %1068 = vmatprep.subr.bf16.mxu0 0
      %1069 = vmatpush1.bf16.msra.mxu0 0
      %1070 = vmatprep.subr.bf16.mxu0 0
      %1071 = vmatpush1.bf16.msra.mxu0 0
      %1072 = vmatprep.subr.bf16.mxu0 0
      %1073 = vmatpush1.bf16.msra.mxu0 0
      %1074 = vmatprep.subr.bf16.mxu0 0
      %1075 = vmatpush1.bf16.msra.mxu0 %v1056
      %1076 = vmatprep.subr.bf16.mxu0 0
      %1077 = vmatpush1.bf16.msra.mxu0 %v1055
      %1078 = vmatprep.subr.bf16.mxu0 0
      %1079 = vmatpush2.bf16.msra.mxu0 0
      %1080 = vmatprep.subr.bf16.mxu0 0
      %1081 = vmatpush2.bf16.msra.mxu0 0
      %1082 = vmatprep.subr.bf16.mxu0 0
      %1083 = vmatpush2.bf16.msra.mxu0 0
      %1084 = vmatprep.subr.bf16.mxu0 0
      %1085 = vmatpush2.bf16.msra.mxu0 0
      %1086 = vmatprep.subr.bf16.mxu0 0
      %1087 = vmatpush2.bf16.msra.mxu0 0
      %1088 = vmatprep.subr.bf16.mxu0 0
      %1089 = vmatpush2.bf16.msra.mxu0 0
      %1090 = vmatprep.subr.bf16.mxu0 0
      %1091 = vmatpush2.bf16.msra.mxu0 0
      %1092 = vmatprep.subr.bf16.mxu0 0
      %1093 = vmatpush2.bf16.msra.mxu0 0
      %1094 = vmatprep.mubr.bf16.mxu0 0
      %1095 = vmatmul.mubr.bf16.gmra.mxu0 %v1060
      %v1096 = vpop.f32.mrf.mxu0
      %v1097 = vadd.f32 %v1046, %v1096
      %v1098 = vpop.f32.mrf.mxu0
      %v1099 = vpop.f32.mrf.mxu0
      %v1100 = vpop.f32.mrf.mxu0
      %1101 = vdwg.mxu0
      %v1102 = vmul.f32 %v1097, 0.5
      %v1103 = vmul.f32 %v1097, 0.70710677
      %vm1104 = vcmp.ge.f32.partialorder %v1103, 0.0
      %v1105 = vsel %vm1104, 1.0, -1.0
      %v1106 = vmul.f32 %v1103, %v1105
      %v1107 = vmul.f32 %v1106, 0.3275911
      %v1108 = vadd.f32 %v1107, 1.0
      %v1109 = vrcp.pop %v1108
      %v1110 = vmul.f32 1.0, %v1109
      %v1111 = vmul.f32 %v1110, 1.0614054
      %v1112 = vadd.f32 %v1111, -1.4531521
      %v1113 = vmul.f32 %v1112, %v1110
      %v1114 = vadd.f32 %v1113, 1.4214138
      %v1115 = vmul.f32 %v1114, %v1110
      %v1116 = vadd.f32 %v1115, -0.28449672
      %v1117 = vmul.f32 %v1116, %v1110
      %v1118 = vadd.f32 %v1117, 0.2548296
      %v1119 = vmul.f32 %v1118, %v1110
      %v1120 = vsub.f32 0.0, %v1106
      %v1121 = vmul.f32 %v1120, %v1106
      %v1122 = vmul.f32 %v1121, 1.442695
      %v1123 = vpow.pop %v1122
      %v1124 = vmul.f32 %v1119, %v1123
      %v1125 = vsub.f32 1.0, %v1124
      %v1126 = vmul.f32 %v1105, %v1125
      %v1127 = vadd.f32 %v1126, 1.0
      %v1128 = vmul.f32 %v1102, %v1127
      %v1129 = vpack.c.bf16 %v1128, %v1128
      %v1130 = vlaneseq
      %v1131 = vshrl.u32 %v1130, 7
      %v1132 = vsub.s32 0, %v1131
      %v1133 = vrot.slane %v274, %v1132
      %v1142 = vunpack.c.l.b16 %v263
      %v1143 = vunpack.c.l.b16 %v264
      %v1144 = vunpack.c.l.b16 %v265
      %v1145 = vunpack.c.l.b16 %v266
      %v1146 = vunpack.c.l.b16 %v267
      %v1147 = vunpack.c.l.b16 %v268
      %v1148 = vunpack.c.l.b16 %v269
      %v1149 = vunpack.c.l.b16 %v270
      %v1150 = vpack.c.b16 %v1143, %v1142
      %v1151 = vpack.c.b16 %v1145, %v1144
      %v1152 = vpack.c.b16 %v1147, %v1146
      %v1153 = vpack.c.b16 %v1149, %v1148
      %vm1158 = vcmask 523264
      %v1160 = vsel %vm1158, %v1129, 0
      %1162 = vmatprep.subr.bf16.mxu0 0
      %1163 = vmatpush1.bf16.msra.mxu0 0
      %1164 = vmatprep.subr.bf16.mxu0 0
      %1165 = vmatpush1.bf16.msra.mxu0 0
      %1166 = vmatprep.subr.bf16.mxu0 0
      %1167 = vmatpush1.bf16.msra.mxu0 0
      %1168 = vmatprep.subr.bf16.mxu0 0
      %1169 = vmatpush1.bf16.msra.mxu0 0
      %1170 = vmatprep.subr.bf16.mxu0 0
      %1171 = vmatpush1.bf16.msra.mxu0 %v1153
      %1172 = vmatprep.subr.bf16.mxu0 0
      %1173 = vmatpush1.bf16.msra.mxu0 %v1152
      %1174 = vmatprep.subr.bf16.mxu0 0
      %1175 = vmatpush1.bf16.msra.mxu0 %v1151
      %1176 = vmatprep.subr.bf16.mxu0 0
      %1177 = vmatpush1.bf16.msra.mxu0 %v1150
      %1178 = vmatprep.subr.bf16.mxu0 0
      %1179 = vmatpush2.bf16.msra.mxu0 0
      %1180 = vmatprep.subr.bf16.mxu0 0
      %1181 = vmatpush2.bf16.msra.mxu0 0
      %1182 = vmatprep.subr.bf16.mxu0 0
      %1183 = vmatpush2.bf16.msra.mxu0 0
      %1184 = vmatprep.subr.bf16.mxu0 0
      %1185 = vmatpush2.bf16.msra.mxu0 0
      %1186 = vmatprep.subr.bf16.mxu0 0
      %1187 = vmatpush2.bf16.msra.mxu0 0
      %1188 = vmatprep.subr.bf16.mxu0 0
      %1189 = vmatpush2.bf16.msra.mxu0 0
      %1190 = vmatprep.subr.bf16.mxu0 0
      %1191 = vmatpush2.bf16.msra.mxu0 0
      %1192 = vmatprep.subr.bf16.mxu0 0
      %1193 = vmatpush2.bf16.msra.mxu0 0
      %1194 = vmatprep.mubr.bf16.mxu0 0
      %1195 = vmatmul.mubr.bf16.gmra.mxu0 %v1160
      %v1196 = vpop.f32.mrf.mxu0
      %v1197 = vadd.f32 %v1133, %v1196
      %v1198 = vpop.f32.mrf.mxu0
      %v1199 = vpop.f32.mrf.mxu0
      %v1200 = vpop.f32.mrf.mxu0
      %1201 = vdwg.mxu0
      %v1202 = vadd.f32 %v1197, %v1014
      %1204 = vset.pattern.permute.xlu0 0
      %1205 = vperm.xlu0 %1204, %v254
      %v1206 = vpop.permute.xlu0 %1205
      %v1208 = vmul.f32 %v1202, %v1206
      %s1209 = scalar_lea.vmem %s3, 80
      %v1210 = vld [vmem:[%s1209] sm:$0xf]
      %v1211 = vld [vmem:[%s1209 + $0x4] sm:$0xf]
      %v1212 = vld [vmem:[%s1209 + $0x8] sm:$0xf]
      %v1213 = vld [vmem:[%s1209 + $0xc] sm:$0xf]
      %v1214 = vld [vmem:[%s1209 + $0x20] sm:$0xf]
      %v1215 = vld [vmem:[%s1209 + $0x24] sm:$0xf]
      %v1216 = vld [vmem:[%s1209 + $0x28] sm:$0xf]
      %v1217 = vld [vmem:[%s1209 + $0x2c] sm:$0xf]
      %v1218 = vld [vmem:[%s1209 + $0x30] sm:$0xf]
      %v1219 = vld [vmem:[%s1209 + $0x34] sm:$0xf]
      %v1220 = vld [vmem:[%s1209 + $0x38] sm:$0xf]
      %v1221 = vld [vmem:[%s1209 + $0x3c] sm:$0xf]
      %v1222 = vld [vmem:[%s1209 + $0x40] sm:$0xf]
      %v1223 = vld [vmem:[%s1209 + $0x44] sm:$0xf]
      %v1224 = vld [vmem:[%s1209 + $0x48] sm:$0xf]
      %v1225 = vld [vmem:[%s1209 + $0x4c] sm:$0xf]
      %s1226 = scalar_lea.vmem %s4, 40
      %v1227 = vld [vmem:[%s1226] sm:$0x1]
      %v1228 = vld [vmem:[%s1226 + $0x1] sm:$0x1]
      %v1229 = vld [vmem:[%s1226 + $0x2] sm:$0x1]
      %v1230 = vld [vmem:[%s1226 + $0x3] sm:$0x1]
      %v1231 = vld [vmem:[%s1226 + $0x8] sm:$0xff]
      %v1232 = vld [vmem:[%s1226 + $0x10] sm:$0xff]
      %v1233 = vld [vmem:[%s1226 + $0x18] sm:$0xff]
      %v1234 = vld [vmem:[%s1226 + $0x20] sm:$0xff]
      %v1235 = vsel %vm279, %v1208, 0.0
      %1236 = vadd.xlane.f32.xlu0 %v1235
      %v1237 = vpop.xlane.xlu0 %1236
      %v1238 = vrot.slane %v1237, 4
      %v1239 = vadd.f32 %v1237, %v1238
      %v1240 = vrot.slane %v1239, 2
      %v1241 = vadd.f32 %v1239, %v1240
      %v1242 = vrot.slane %v1241, 1
      %v1243 = vadd.f32 %v1241, %v1242
      %v1244 = vmul.f32 %v1243, 0.00390625
      %v1245 = vsub.f32 %v1208, %v1244
      %v1246 = vmul.f32 %v1245, %v1245
      %v1247 = vsel %vm279, %v1246, 0.0
      %1248 = vadd.xlane.f32.xlu0 %v1247
      %v1249 = vpop.xlane.xlu0 %1248
      %v1250 = vrot.slane %v1249, 4
      %v1251 = vadd.f32 %v1249, %v1250
      %v1252 = vrot.slane %v1251, 2
      %v1253 = vadd.f32 %v1251, %v1252
      %v1254 = vrot.slane %v1253, 1
      %v1255 = vadd.f32 %v1253, %v1254
      %v1256 = vmul.f32 %v1255, 0.00390625
      %v1257 = vadd.f32 %v1256, 1e-05
      %v1258 = vrsqrt.pop %v1257
      %v1259 = vmul.f32 %v1245, %v1258
      %v1260 = vmul.f32 %v1259, %v1231
      %v1261 = vadd.f32 %v1260, %v1232
      %v1262 = vpack.c.bf16 %v1261, %v1261
      %v1263 = vlaneseq
      %v1264 = vshrl.u32 %v1263, 7
      %v1265 = vsub.s32 0, %v1264
      %v1266 = vrot.slane %v1227, %v1265
      %v1271 = vunpack.c.l.b16 %v1210
      %v1272 = vunpack.c.l.b16 %v1211
      %v1273 = vunpack.c.l.b16 %v1212
      %v1274 = vunpack.c.l.b16 %v1213
      %v1275 = vpack.c.b16 %v1272, %v1271
      %v1276 = vpack.c.b16 %v1274, %v1273
      %v1280 = vsel %vm279, %v1262, 0
      %1282 = vmatprep.subr.bf16.mxu0 0
      %1283 = vmatpush1.bf16.msra.mxu0 0
      %1284 = vmatprep.subr.bf16.mxu0 0
      %1285 = vmatpush1.bf16.msra.mxu0 0
      %1286 = vmatprep.subr.bf16.mxu0 0
      %1287 = vmatpush1.bf16.msra.mxu0 0
      %1288 = vmatprep.subr.bf16.mxu0 0
      %1289 = vmatpush1.bf16.msra.mxu0 0
      %1290 = vmatprep.subr.bf16.mxu0 0
      %1291 = vmatpush1.bf16.msra.mxu0 0
      %1292 = vmatprep.subr.bf16.mxu0 0
      %1293 = vmatpush1.bf16.msra.mxu0 0
      %1294 = vmatprep.subr.bf16.mxu0 0
      %1295 = vmatpush1.bf16.msra.mxu0 %v1276
      %1296 = vmatprep.subr.bf16.mxu0 0
      %1297 = vmatpush1.bf16.msra.mxu0 %v1275
      %1298 = vmatprep.subr.bf16.mxu0 0
      %1299 = vmatpush2.bf16.msra.mxu0 0
      %1300 = vmatprep.subr.bf16.mxu0 0
      %1301 = vmatpush2.bf16.msra.mxu0 0
      %1302 = vmatprep.subr.bf16.mxu0 0
      %1303 = vmatpush2.bf16.msra.mxu0 0
      %1304 = vmatprep.subr.bf16.mxu0 0
      %1305 = vmatpush2.bf16.msra.mxu0 0
      %1306 = vmatprep.subr.bf16.mxu0 0
      %1307 = vmatpush2.bf16.msra.mxu0 0
      %1308 = vmatprep.subr.bf16.mxu0 0
      %1309 = vmatpush2.bf16.msra.mxu0 0
      %1310 = vmatprep.subr.bf16.mxu0 0
      %1311 = vmatpush2.bf16.msra.mxu0 0
      %1312 = vmatprep.subr.bf16.mxu0 0
      %1313 = vmatpush2.bf16.msra.mxu0 0
      %1314 = vmatprep.mubr.bf16.mxu0 0
      %1315 = vmatmul.mubr.bf16.gmra.mxu0 %v1280
      %v1316 = vpop.f32.mrf.mxu0
      %v1317 = vadd.f32 %v1266, %v1316
      %v1318 = vpop.f32.mrf.mxu0
      %v1319 = vpop.f32.mrf.mxu0
      %v1320 = vpop.f32.mrf.mxu0
      %1321 = vdwg.mxu0
      %v1322 = vpack.c.bf16 %v1317, %v1317
      %1324 = vrot.lane.b32.xlu0 %v1322, 96
      %v1325 = vpop.permute.xlu0 %1324
      %v1327 = vsel %vm377, %v1322, 0
      %v1330 = vsel %vm377, %v1325, 0
      %1332 = vmatprep.subr.bf16.mxu0 0
      %1333 = vmatpush1.bf16.xpose.msra.mxu0 0
      %1334 = vmatprep.subr.bf16.mxu0 0
      %1335 = vmatpush1.bf16.xpose.msra.mxu0 0
      %1336 = vmatprep.subr.bf16.mxu0 0
      %1337 = vmatpush1.bf16.xpose.msra.mxu0 0
      %1338 = vmatprep.subr.bf16.mxu0 0
      %1339 = vmatpush1.bf16.xpose.msra.mxu0 0
      %1340 = vmatprep.subr.bf16.mxu0 0
      %1341 = vmatpush1.bf16.xpose.msra.mxu0 0
      %1342 = vmatprep.subr.bf16.mxu0 0
      %1343 = vmatpush1.bf16.xpose.msra.mxu0 0
      %1344 = vmatprep.subr.bf16.mxu0 0
      %1345 = vmatpush1.bf16.xpose.msra.mxu0 0
      %1346 = vmatprep.subr.bf16.mxu0 0
      %1347 = vmatpush1.bf16.xpose.msra.mxu0 %v1330
      %1348 = vmatprep.subr.bf16.mxu0 0
      %1349 = vmatpush2.bf16.xpose.msra.mxu0 0
      %1350 = vmatprep.subr.bf16.mxu0 0
      %1351 = vmatpush2.bf16.xpose.msra.mxu0 0
      %1352 = vmatprep.subr.bf16.mxu0 0
      %1353 = vmatpush2.bf16.xpose.msra.mxu0 0
      %1354 = vmatprep.subr.bf16.mxu0 0
      %1355 = vmatpush2.bf16.xpose.msra.mxu0 0
      %1356 = vmatprep.subr.bf16.mxu0 0
      %1357 = vmatpush2.bf16.xpose.msra.mxu0 0
      %1358 = vmatprep.subr.bf16.mxu0 0
      %1359 = vmatpush2.bf16.xpose.msra.mxu0 0
      %1360 = vmatprep.subr.bf16.mxu0 0
      %1361 = vmatpush2.bf16.xpose.msra.mxu0 0
      %1362 = vmatprep.subr.bf16.mxu0 0
      %1363 = vmatpush2.bf16.xpose.msra.mxu0 0
      %1364 = vmatprep.mubr.bf16.mxu0 0
      %1365 = vmatmul.mubr.bf16.gmra.mxu0 %v1327
      %v1366 = vpop.f32.mrf.mxu0
      %v1367 = vadd.f32 %v372, %v1366
      %v1368 = vpop.f32.mrf.mxu0
      %v1369 = vpop.f32.mrf.mxu0
      %v1370 = vpop.f32.mrf.mxu0
      %1371 = vdwg.mxu0
      %v1372 = vsel %vm377, %v1367, -inf
      %1373 = vmax.xlane.f32.xlu0 %v1372
      %v1374 = vpop.xlane.xlu0 %1373
      %v1375 = vsub.f32 %v1367, %v1374
      %v1376 = vmul.f32 %v1375, 1.442695
      %v1377 = vpow.pop %v1376
      %v1378 = vsel %vm377, %v1377, 0.0
      %1379 = vadd.xlane.f32.xlu0 %v1378
      %v1380 = vpop.xlane.xlu0 %1379
      %v1381 = vrcp.pop %v1380
      %v1382 = vmul.f32 %v1377, %v1381
      %v1383 = vpack.c.bf16 %v1382, %v1382
      %1384 = vrot.lane.b32.xlu0 %v1322, 64
      %v1385 = vpop.permute.xlu0 %1384
      %v1387 = vsel %vm377, %v1383, 0
      %v1390 = vsel %vm441, %v1385, 0
      %1392 = vmatprep.subr.bf16.mxu0 0
      %1393 = vmatpush1.bf16.msra.mxu0 0
      %1394 = vmatprep.subr.bf16.mxu0 0
      %1395 = vmatpush1.bf16.msra.mxu0 0
      %1396 = vmatprep.subr.bf16.mxu0 0
      %1397 = vmatpush1.bf16.msra.mxu0 0
      %1398 = vmatprep.subr.bf16.mxu0 0
      %1399 = vmatpush1.bf16.msra.mxu0 0
      %1400 = vmatprep.subr.bf16.mxu0 0
      %1401 = vmatpush1.bf16.msra.mxu0 0
      %1402 = vmatprep.subr.bf16.mxu0 0
      %1403 = vmatpush1.bf16.msra.mxu0 0
      %1404 = vmatprep.subr.bf16.mxu0 0
      %1405 = vmatpush1.bf16.msra.mxu0 0
      %1406 = vmatprep.subr.bf16.mxu0 0
      %1407 = vmatpush1.bf16.msra.mxu0 %v1390
      %1408 = vmatprep.subr.bf16.mxu0 0
      %1409 = vmatpush2.bf16.msra.mxu0 0
      %1410 = vmatprep.subr.bf16.mxu0 0
      %1411 = vmatpush2.bf16.msra.mxu0 0
      %1412 = vmatprep.subr.bf16.mxu0 0
      %1413 = vmatpush2.bf16.msra.mxu0 0
      %1414 = vmatprep.subr.bf16.mxu0 0
      %1415 = vmatpush2.bf16.msra.mxu0 0
      %1416 = vmatprep.subr.bf16.mxu0 0
      %1417 = vmatpush2.bf16.msra.mxu0 0
      %1418 = vmatprep.subr.bf16.mxu0 0
      %1419 = vmatpush2.bf16.msra.mxu0 0
      %1420 = vmatprep.subr.bf16.mxu0 0
      %1421 = vmatpush2.bf16.msra.mxu0 0
      %1422 = vmatprep.subr.bf16.mxu0 0
      %1423 = vmatpush2.bf16.msra.mxu0 0
      %1424 = vmatprep.mubr.bf16.mxu0 0
      %1425 = vmatmul.mubr.bf16.gmra.mxu0 %v1387
      %v1426 = vpop.f32.mrf.mxu0
      %v1427 = vadd.f32 0.0, %v1426
      %v1428 = vpop.f32.mrf.mxu0
      %v1429 = vpop.f32.mrf.mxu0
      %v1430 = vpop.f32.mrf.mxu0
      %1431 = vdwg.mxu0
      %v1432 = vld [vmem:[%s1209 + $0x10] sm:$0xf]
      %v1433 = vpack.c.bf16 %v1427, %v1427
      %1434 = vrot.lane.b32.xlu0 %v1322, 120
      %v1435 = vpop.permute.xlu0 %1434
      %1436 = vrot.lane.b32.xlu0 %v1322, 88
      %v1437 = vpop.permute.xlu0 %1436
      %v1439 = vsel %vm377, %v1435, 0
      %v1442 = vsel %vm377, %v1437, 0
      %1444 = vmatprep.subr.bf16.mxu0 0
      %1445 = vmatpush1.bf16.xpose.msra.mxu0 0
      %1446 = vmatprep.subr.bf16.mxu0 0
      %1447 = vmatpush1.bf16.xpose.msra.mxu0 0
      %1448 = vmatprep.subr.bf16.mxu0 0
      %1449 = vmatpush1.bf16.xpose.msra.mxu0 0
      %1450 = vmatprep.subr.bf16.mxu0 0
      %1451 = vmatpush1.bf16.xpose.msra.mxu0 0
      %1452 = vmatprep.subr.bf16.mxu0 0
      %1453 = vmatpush1.bf16.xpose.msra.mxu0 0
      %1454 = vmatprep.subr.bf16.mxu0 0
      %1455 = vmatpush1.bf16.xpose.msra.mxu0 0
      %1456 = vmatprep.subr.bf16.mxu0 0
      %1457 = vmatpush1.bf16.xpose.msra.mxu0 0
      %1458 = vmatprep.subr.bf16.mxu0 0
      %1459 = vmatpush1.bf16.xpose.msra.mxu0 %v1442
      %1460 = vmatprep.subr.bf16.mxu0 0
      %1461 = vmatpush2.bf16.xpose.msra.mxu0 0
      %1462 = vmatprep.subr.bf16.mxu0 0
      %1463 = vmatpush2.bf16.xpose.msra.mxu0 0
      %1464 = vmatprep.subr.bf16.mxu0 0
      %1465 = vmatpush2.bf16.xpose.msra.mxu0 0
      %1466 = vmatprep.subr.bf16.mxu0 0
      %1467 = vmatpush2.bf16.xpose.msra.mxu0 0
      %1468 = vmatprep.subr.bf16.mxu0 0
      %1469 = vmatpush2.bf16.xpose.msra.mxu0 0
      %1470 = vmatprep.subr.bf16.mxu0 0
      %1471 = vmatpush2.bf16.xpose.msra.mxu0 0
      %1472 = vmatprep.subr.bf16.mxu0 0
      %1473 = vmatpush2.bf16.xpose.msra.mxu0 0
      %1474 = vmatprep.subr.bf16.mxu0 0
      %1475 = vmatpush2.bf16.xpose.msra.mxu0 0
      %1476 = vmatprep.mubr.bf16.mxu0 0
      %1477 = vmatmul.mubr.bf16.gmra.mxu0 %v1439
      %v1478 = vpop.f32.mrf.mxu0
      %v1479 = vadd.f32 %v372, %v1478
      %v1480 = vpop.f32.mrf.mxu0
      %v1481 = vpop.f32.mrf.mxu0
      %v1482 = vpop.f32.mrf.mxu0
      %1483 = vdwg.mxu0
      %v1484 = vsel %vm377, %v1479, -inf
      %1485 = vmax.xlane.f32.xlu0 %v1484
      %v1486 = vpop.xlane.xlu0 %1485
      %v1487 = vsub.f32 %v1479, %v1486
      %v1488 = vmul.f32 %v1487, 1.442695
      %v1489 = vpow.pop %v1488
      %v1490 = vsel %vm377, %v1489, 0.0
      %1491 = vadd.xlane.f32.xlu0 %v1490
      %v1492 = vpop.xlane.xlu0 %1491
      %v1493 = vrcp.pop %v1492
      %v1494 = vmul.f32 %v1489, %v1493
      %v1495 = vpack.c.bf16 %v1494, %v1494
      %1496 = vrot.lane.b32.xlu0 %v1322, 56
      %v1497 = vpop.permute.xlu0 %1496
      %v1499 = vsel %vm377, %v1495, 0
      %v1502 = vsel %vm441, %v1497, 0
      %1504 = vmatprep.subr.bf16.mxu0 0
      %1505 = vmatpush1.bf16.msra.mxu0 0
      %1506 = vmatprep.subr.bf16.mxu0 0
      %1507 = vmatpush1.bf16.msra.mxu0 0
      %1508 = vmatprep.subr.bf16.mxu0 0
      %1509 = vmatpush1.bf16.msra.mxu0 0
      %1510 = vmatprep.subr.bf16.mxu0 0
      %1511 = vmatpush1.bf16.msra.mxu0 0
      %1512 = vmatprep.subr.bf16.mxu0 0
      %1513 = vmatpush1.bf16.msra.mxu0 0
      %1514 = vmatprep.subr.bf16.mxu0 0
      %1515 = vmatpush1.bf16.msra.mxu0 0
      %1516 = vmatprep.subr.bf16.mxu0 0
      %1517 = vmatpush1.bf16.msra.mxu0 0
      %1518 = vmatprep.subr.bf16.mxu0 0
      %1519 = vmatpush1.bf16.msra.mxu0 %v1502
      %1520 = vmatprep.subr.bf16.mxu0 0
      %1521 = vmatpush2.bf16.msra.mxu0 0
      %1522 = vmatprep.subr.bf16.mxu0 0
      %1523 = vmatpush2.bf16.msra.mxu0 0
      %1524 = vmatprep.subr.bf16.mxu0 0
      %1525 = vmatpush2.bf16.msra.mxu0 0
      %1526 = vmatprep.subr.bf16.mxu0 0
      %1527 = vmatpush2.bf16.msra.mxu0 0
      %1528 = vmatprep.subr.bf16.mxu0 0
      %1529 = vmatpush2.bf16.msra.mxu0 0
      %1530 = vmatprep.subr.bf16.mxu0 0
      %1531 = vmatpush2.bf16.msra.mxu0 0
      %1532 = vmatprep.subr.bf16.mxu0 0
      %1533 = vmatpush2.bf16.msra.mxu0 0
      %1534 = vmatprep.subr.bf16.mxu0 0
      %1535 = vmatpush2.bf16.msra.mxu0 0
      %1536 = vmatprep.mubr.bf16.mxu0 0
      %1537 = vmatmul.mubr.bf16.gmra.mxu0 %v1499
      %v1538 = vpop.f32.mrf.mxu0
      %v1539 = vadd.f32 0.0, %v1538
      %v1540 = vpop.f32.mrf.mxu0
      %v1541 = vpop.f32.mrf.mxu0
      %v1542 = vpop.f32.mrf.mxu0
      %1543 = vdwg.mxu0
      %v1544 = vld [vmem:[%s1209 + $0x14] sm:$0xf]
      %v1545 = vpack.c.bf16 %v1539, %v1539
      %v1547 = vsel %vm377, %v1545, 0
      %v1550 = vsel %vm441, %v1544, 0
      %1552 = vmatprep.subr.bf16.mxu0 0
      %1553 = vmatpush1.bf16.msra.mxu0 0
      %1554 = vmatprep.subr.bf16.mxu0 0
      %1555 = vmatpush1.bf16.msra.mxu0 0
      %1556 = vmatprep.subr.bf16.mxu0 0
      %1557 = vmatpush1.bf16.msra.mxu0 0
      %1558 = vmatprep.subr.bf16.mxu0 0
      %1559 = vmatpush1.bf16.msra.mxu0 0
      %1560 = vmatprep.subr.bf16.mxu0 0
      %1561 = vmatpush1.bf16.msra.mxu0 0
      %1562 = vmatprep.subr.bf16.mxu0 0
      %1563 = vmatpush1.bf16.msra.mxu0 0
      %1564 = vmatprep.subr.bf16.mxu0 0
      %1565 = vmatpush1.bf16.msra.mxu0 0
      %1566 = vmatprep.subr.bf16.mxu0 0
      %1567 = vmatpush1.bf16.msra.mxu0 %v1550
      %1568 = vmatprep.subr.bf16.mxu0 0
      %1569 = vmatpush2.bf16.msra.mxu0 0
      %1570 = vmatprep.subr.bf16.mxu0 0
      %1571 = vmatpush2.bf16.msra.mxu0 0
      %1572 = vmatprep.subr.bf16.mxu0 0
      %1573 = vmatpush2.bf16.msra.mxu0 0
      %1574 = vmatprep.subr.bf16.mxu0 0
      %1575 = vmatpush2.bf16.msra.mxu0 0
      %1576 = vmatprep.subr.bf16.mxu0 0
      %1577 = vmatpush2.bf16.msra.mxu0 0
      %1578 = vmatprep.subr.bf16.mxu0 0
      %1579 = vmatpush2.bf16.msra.mxu0 0
      %1580 = vmatprep.subr.bf16.mxu0 0
      %1581 = vmatpush2.bf16.msra.mxu0 0
      %1582 = vmatprep.subr.bf16.mxu0 0
      %1583 = vmatpush2.bf16.msra.mxu0 0
      %1584 = vmatprep.mubr.bf16.mxu0 0
      %1585 = vmatmul.mubr.bf16.gmra.mxu0 %v1547
      %v1586 = vpop.f32.mrf.mxu0
      %v1587 = vadd.f32 0.0, %v1586
      %v1588 = vpop.f32.mrf.mxu0
      %v1589 = vpop.f32.mrf.mxu0
      %v1590 = vpop.f32.mrf.mxu0
      %1591 = vdwg.mxu0
      %v1593 = vsel %vm377, %v1433, 0
      %v1596 = vsel %vm441, %v1432, 0
      %1598 = vmatprep.subr.bf16.mxu0 0
      %1599 = vmatpush1.bf16.msra.mxu0 0
      %1600 = vmatprep.subr.bf16.mxu0 0
      %1601 = vmatpush1.bf16.msra.mxu0 0
      %1602 = vmatprep.subr.bf16.mxu0 0
      %1603 = vmatpush1.bf16.msra.mxu0 0
      %1604 = vmatprep.subr.bf16.mxu0 0
      %1605 = vmatpush1.bf16.msra.mxu0 0
      %1606 = vmatprep.subr.bf16.mxu0 0
      %1607 = vmatpush1.bf16.msra.mxu0 0
      %1608 = vmatprep.subr.bf16.mxu0 0
      %1609 = vmatpush1.bf16.msra.mxu0 0
      %1610 = vmatprep.subr.bf16.mxu0 0
      %1611 = vmatpush1.bf16.msra.mxu0 0
      %1612 = vmatprep.subr.bf16.mxu0 0
      %1613 = vmatpush1.bf16.msra.mxu0 %v1596
      %1614 = vmatprep.subr.bf16.mxu0 0
      %1615 = vmatpush2.bf16.msra.mxu0 0
      %1616 = vmatprep.subr.bf16.mxu0 0
      %1617 = vmatpush2.bf16.msra.mxu0 0
      %1618 = vmatprep.subr.bf16.mxu0 0
      %1619 = vmatpush2.bf16.msra.mxu0 0
      %1620 = vmatprep.subr.bf16.mxu0 0
      %1621 = vmatpush2.bf16.msra.mxu0 0
      %1622 = vmatprep.subr.bf16.mxu0 0
      %1623 = vmatpush2.bf16.msra.mxu0 0
      %1624 = vmatprep.subr.bf16.mxu0 0
      %1625 = vmatpush2.bf16.msra.mxu0 0
      %1626 = vmatprep.subr.bf16.mxu0 0
      %1627 = vmatpush2.bf16.msra.mxu0 0
      %1628 = vmatprep.subr.bf16.mxu0 0
      %1629 = vmatpush2.bf16.msra.mxu0 0
      %1630 = vmatprep.mubr.bf16.mxu0 0
      %1631 = vmatmul.mubr.bf16.gmra.mxu0 %v1593
      %v1632 = vpop.f32.mrf.mxu0
      %v1633 = vadd.f32 %v1587, %v1632
      %v1634 = vpop.f32.mrf.mxu0
      %v1635 = vpop.f32.mrf.mxu0
      %v1636 = vpop.f32.mrf.mxu0
      %1637 = vdwg.mxu0
      %1638 = vrot.lane.b32.xlu0 %v1322, 112
      %v1639 = vpop.permute.xlu0 %1638
      %1640 = vrot.lane.b32.xlu0 %v1322, 80
      %v1641 = vpop.permute.xlu0 %1640
      %v1643 = vsel %vm377, %v1639, 0
      %v1646 = vsel %vm377, %v1641, 0
      %1648 = vmatprep.subr.bf16.mxu0 0
      %1649 = vmatpush1.bf16.xpose.msra.mxu0 0
      %1650 = vmatprep.subr.bf16.mxu0 0
      %1651 = vmatpush1.bf16.xpose.msra.mxu0 0
      %1652 = vmatprep.subr.bf16.mxu0 0
      %1653 = vmatpush1.bf16.xpose.msra.mxu0 0
      %1654 = vmatprep.subr.bf16.mxu0 0
      %1655 = vmatpush1.bf16.xpose.msra.mxu0 0
      %1656 = vmatprep.subr.bf16.mxu0 0
      %1657 = vmatpush1.bf16.xpose.msra.mxu0 0
      %1658 = vmatprep.subr.bf16.mxu0 0
      %1659 = vmatpush1.bf16.xpose.msra.mxu0 0
      %1660 = vmatprep.subr.bf16.mxu0 0
      %1661 = vmatpush1.bf16.xpose.msra.mxu0 0
      %1662 = vmatprep.subr.bf16.mxu0 0
      %1663 = vmatpush1.bf16.xpose.msra.mxu0 %v1646
      %1664 = vmatprep.subr.bf16.mxu0 0
      %1665 = vmatpush2.bf16.xpose.msra.mxu0 0
      %1666 = vmatprep.subr.bf16.mxu0 0
      %1667 = vmatpush2.bf16.xpose.msra.mxu0 0
      %1668 = vmatprep.subr.bf16.mxu0 0
      %1669 = vmatpush2.bf16.xpose.msra.mxu0 0
      %1670 = vmatprep.subr.bf16.mxu0 0
      %1671 = vmatpush2.bf16.xpose.msra.mxu0 0
      %1672 = vmatprep.subr.bf16.mxu0 0
      %1673 = vmatpush2.bf16.xpose.msra.mxu0 0
      %1674 = vmatprep.subr.bf16.mxu0 0
      %1675 = vmatpush2.bf16.xpose.msra.mxu0 0
      %1676 = vmatprep.subr.bf16.mxu0 0
      %1677 = vmatpush2.bf16.xpose.msra.mxu0 0
      %1678 = vmatprep.subr.bf16.mxu0 0
      %1679 = vmatpush2.bf16.xpose.msra.mxu0 0
      %1680 = vmatprep.mubr.bf16.mxu0 0
      %1681 = vmatmul.mubr.bf16.gmra.mxu0 %v1643
      %v1682 = vpop.f32.mrf.mxu0
      %v1683 = vadd.f32 %v372, %v1682
      %v1684 = vpop.f32.mrf.mxu0
      %v1685 = vpop.f32.mrf.mxu0
      %v1686 = vpop.f32.mrf.mxu0
      %1687 = vdwg.mxu0
      %v1688 = vsel %vm377, %v1683, -inf
      %1689 = vmax.xlane.f32.xlu0 %v1688
      %v1690 = vpop.xlane.xlu0 %1689
      %v1691 = vsub.f32 %v1683, %v1690
      %v1692 = vmul.f32 %v1691, 1.442695
      %v1693 = vpow.pop %v1692
      %v1694 = vsel %vm377, %v1693, 0.0
      %1695 = vadd.xlane.f32.xlu0 %v1694
      %v1696 = vpop.xlane.xlu0 %1695
      %v1697 = vrcp.pop %v1696
      %v1698 = vmul.f32 %v1693, %v1697
      %v1699 = vpack.c.bf16 %v1698, %v1698
      %1700 = vrot.lane.b32.xlu0 %v1322, 48
      %v1701 = vpop.permute.xlu0 %1700
      %v1703 = vsel %vm377, %v1699, 0
      %v1706 = vsel %vm441, %v1701, 0
      %1708 = vmatprep.subr.bf16.mxu0 0
      %1709 = vmatpush1.bf16.msra.mxu0 0
      %1710 = vmatprep.subr.bf16.mxu0 0
      %1711 = vmatpush1.bf16.msra.mxu0 0
      %1712 = vmatprep.subr.bf16.mxu0 0
      %1713 = vmatpush1.bf16.msra.mxu0 0
      %1714 = vmatprep.subr.bf16.mxu0 0
      %1715 = vmatpush1.bf16.msra.mxu0 0
      %1716 = vmatprep.subr.bf16.mxu0 0
      %1717 = vmatpush1.bf16.msra.mxu0 0
      %1718 = vmatprep.subr.bf16.mxu0 0
      %1719 = vmatpush1.bf16.msra.mxu0 0
      %1720 = vmatprep.subr.bf16.mxu0 0
      %1721 = vmatpush1.bf16.msra.mxu0 0
      %1722 = vmatprep.subr.bf16.mxu0 0
      %1723 = vmatpush1.bf16.msra.mxu0 %v1706
      %1724 = vmatprep.subr.bf16.mxu0 0
      %1725 = vmatpush2.bf16.msra.mxu0 0
      %1726 = vmatprep.subr.bf16.mxu0 0
      %1727 = vmatpush2.bf16.msra.mxu0 0
      %1728 = vmatprep.subr.bf16.mxu0 0
      %1729 = vmatpush2.bf16.msra.mxu0 0
      %1730 = vmatprep.subr.bf16.mxu0 0
      %1731 = vmatpush2.bf16.msra.mxu0 0
      %1732 = vmatprep.subr.bf16.mxu0 0
      %1733 = vmatpush2.bf16.msra.mxu0 0
      %1734 = vmatprep.subr.bf16.mxu0 0
      %1735 = vmatpush2.bf16.msra.mxu0 0
      %1736 = vmatprep.subr.bf16.mxu0 0
      %1737 = vmatpush2.bf16.msra.mxu0 0
      %1738 = vmatprep.subr.bf16.mxu0 0
      %1739 = vmatpush2.bf16.msra.mxu0 0
      %1740 = vmatprep.mubr.bf16.mxu0 0
      %1741 = vmatmul.mubr.bf16.gmra.mxu0 %v1703
      %v1742 = vpop.f32.mrf.mxu0
      %v1743 = vadd.f32 0.0, %v1742
      %v1744 = vpop.f32.mrf.mxu0
      %v1745 = vpop.f32.mrf.mxu0
      %v1746 = vpop.f32.mrf.mxu0
      %1747 = vdwg.mxu0
      %v1748 = vld [vmem:[%s1209 + $0x18] sm:$0xf]
      %v1749 = vpack.c.bf16 %v1743, %v1743
      %v1751 = vsel %vm377, %v1749, 0
      %v1754 = vsel %vm441, %v1748, 0
      %1756 = vmatprep.subr.bf16.mxu0 0
      %1757 = vmatpush1.bf16.msra.mxu0 0
      %1758 = vmatprep.subr.bf16.mxu0 0
      %1759 = vmatpush1.bf16.msra.mxu0 0
      %1760 = vmatprep.subr.bf16.mxu0 0
      %1761 = vmatpush1.bf16.msra.mxu0 0
      %1762 = vmatprep.subr.bf16.mxu0 0
      %1763 = vmatpush1.bf16.msra.mxu0 0
      %1764 = vmatprep.subr.bf16.mxu0 0
      %1765 = vmatpush1.bf16.msra.mxu0 0
      %1766 = vmatprep.subr.bf16.mxu0 0
      %1767 = vmatpush1.bf16.msra.mxu0 0
      %1768 = vmatprep.subr.bf16.mxu0 0
      %1769 = vmatpush1.bf16.msra.mxu0 0
      %1770 = vmatprep.subr.bf16.mxu0 0
      %1771 = vmatpush1.bf16.msra.mxu0 %v1754
      %1772 = vmatprep.subr.bf16.mxu0 0
      %1773 = vmatpush2.bf16.msra.mxu0 0
      %1774 = vmatprep.subr.bf16.mxu0 0
      %1775 = vmatpush2.bf16.msra.mxu0 0
      %1776 = vmatprep.subr.bf16.mxu0 0
      %1777 = vmatpush2.bf16.msra.mxu0 0
      %1778 = vmatprep.subr.bf16.mxu0 0
      %1779 = vmatpush2.bf16.msra.mxu0 0
      %1780 = vmatprep.subr.bf16.mxu0 0
      %1781 = vmatpush2.bf16.msra.mxu0 0
      %1782 = vmatprep.subr.bf16.mxu0 0
      %1783 = vmatpush2.bf16.msra.mxu0 0
      %1784 = vmatprep.subr.bf16.mxu0 0
      %1785 = vmatpush2.bf16.msra.mxu0 0
      %1786 = vmatprep.subr.bf16.mxu0 0
      %1787 = vmatpush2.bf16.msra.mxu0 0
      %1788 = vmatprep.mubr.bf16.mxu0 0
      %1789 = vmatmul.mubr.bf16.gmra.mxu0 %v1751
      %v1790 = vpop.f32.mrf.mxu0
      %v1791 = vadd.f32 0.0, %v1790
      %v1792 = vpop.f32.mrf.mxu0
      %v1793 = vpop.f32.mrf.mxu0
      %v1794 = vpop.f32.mrf.mxu0
      %1795 = vdwg.mxu0
      %v1796 = vadd.f32 %v1633, %v1791
      %1797 = vrot.lane.b32.xlu0 %v1322, 104
      %v1798 = vpop.permute.xlu0 %1797
      %1799 = vrot.lane.b32.xlu0 %v1322, 72
      %v1800 = vpop.permute.xlu0 %1799
      %v1802 = vsel %vm377, %v1798, 0
      %v1805 = vsel %vm377, %v1800, 0
      %1807 = vmatprep.subr.bf16.mxu0 0
      %1808 = vmatpush1.bf16.xpose.msra.mxu0 0
      %1809 = vmatprep.subr.bf16.mxu0 0
      %1810 = vmatpush1.bf16.xpose.msra.mxu0 0
      %1811 = vmatprep.subr.bf16.mxu0 0
      %1812 = vmatpush1.bf16.xpose.msra.mxu0 0
      %1813 = vmatprep.subr.bf16.mxu0 0
      %1814 = vmatpush1.bf16.xpose.msra.mxu0 0
      %1815 = vmatprep.subr.bf16.mxu0 0
      %1816 = vmatpush1.bf16.xpose.msra.mxu0 0
      %1817 = vmatprep.subr.bf16.mxu0 0
      %1818 = vmatpush1.bf16.xpose.msra.mxu0 0
      %1819 = vmatprep.subr.bf16.mxu0 0
      %1820 = vmatpush1.bf16.xpose.msra.mxu0 0
      %1821 = vmatprep.subr.bf16.mxu0 0
      %1822 = vmatpush1.bf16.xpose.msra.mxu0 %v1805
      %1823 = vmatprep.subr.bf16.mxu0 0
      %1824 = vmatpush2.bf16.xpose.msra.mxu0 0
      %1825 = vmatprep.subr.bf16.mxu0 0
      %1826 = vmatpush2.bf16.xpose.msra.mxu0 0
      %1827 = vmatprep.subr.bf16.mxu0 0
      %1828 = vmatpush2.bf16.xpose.msra.mxu0 0
      %1829 = vmatprep.subr.bf16.mxu0 0
      %1830 = vmatpush2.bf16.xpose.msra.mxu0 0
      %1831 = vmatprep.subr.bf16.mxu0 0
      %1832 = vmatpush2.bf16.xpose.msra.mxu0 0
      %1833 = vmatprep.subr.bf16.mxu0 0
      %1834 = vmatpush2.bf16.xpose.msra.mxu0 0
      %1835 = vmatprep.subr.bf16.mxu0 0
      %1836 = vmatpush2.bf16.xpose.msra.mxu0 0
      %1837 = vmatprep.subr.bf16.mxu0 0
      %1838 = vmatpush2.bf16.xpose.msra.mxu0 0
      %1839 = vmatprep.mubr.bf16.mxu0 0
      %1840 = vmatmul.mubr.bf16.gmra.mxu0 %v1802
      %v1841 = vpop.f32.mrf.mxu0
      %v1842 = vadd.f32 %v372, %v1841
      %v1843 = vpop.f32.mrf.mxu0
      %v1844 = vpop.f32.mrf.mxu0
      %v1845 = vpop.f32.mrf.mxu0
      %1846 = vdwg.mxu0
      %v1847 = vsel %vm377, %v1842, -inf
      %1848 = vmax.xlane.f32.xlu0 %v1847
      %v1849 = vpop.xlane.xlu0 %1848
      %v1850 = vsub.f32 %v1842, %v1849
      %v1851 = vmul.f32 %v1850, 1.442695
      %v1852 = vpow.pop %v1851
      %v1853 = vsel %vm377, %v1852, 0.0
      %1854 = vadd.xlane.f32.xlu0 %v1853
      %v1855 = vpop.xlane.xlu0 %1854
      %v1856 = vrcp.pop %v1855
      %v1857 = vmul.f32 %v1852, %v1856
      %v1858 = vpack.c.bf16 %v1857, %v1857
      %1859 = vrot.lane.b32.xlu0 %v1322, 40
      %v1860 = vpop.permute.xlu0 %1859
      %v1862 = vsel %vm377, %v1858, 0
      %v1865 = vsel %vm441, %v1860, 0
      %1867 = vmatprep.subr.bf16.mxu0 0
      %1868 = vmatpush1.bf16.msra.mxu0 0
      %1869 = vmatprep.subr.bf16.mxu0 0
      %1870 = vmatpush1.bf16.msra.mxu0 0
      %1871 = vmatprep.subr.bf16.mxu0 0
      %1872 = vmatpush1.bf16.msra.mxu0 0
      %1873 = vmatprep.subr.bf16.mxu0 0
      %1874 = vmatpush1.bf16.msra.mxu0 0
      %1875 = vmatprep.subr.bf16.mxu0 0
      %1876 = vmatpush1.bf16.msra.mxu0 0
      %1877 = vmatprep.subr.bf16.mxu0 0
      %1878 = vmatpush1.bf16.msra.mxu0 0
      %1879 = vmatprep.subr.bf16.mxu0 0
      %1880 = vmatpush1.bf16.msra.mxu0 0
      %1881 = vmatprep.subr.bf16.mxu0 0
      %1882 = vmatpush1.bf16.msra.mxu0 %v1865
      %1883 = vmatprep.subr.bf16.mxu0 0
      %1884 = vmatpush2.bf16.msra.mxu0 0
      %1885 = vmatprep.subr.bf16.mxu0 0
      %1886 = vmatpush2.bf16.msra.mxu0 0
      %1887 = vmatprep.subr.bf16.mxu0 0
      %1888 = vmatpush2.bf16.msra.mxu0 0
      %1889 = vmatprep.subr.bf16.mxu0 0
      %1890 = vmatpush2.bf16.msra.mxu0 0
      %1891 = vmatprep.subr.bf16.mxu0 0
      %1892 = vmatpush2.bf16.msra.mxu0 0
      %1893 = vmatprep.subr.bf16.mxu0 0
      %1894 = vmatpush2.bf16.msra.mxu0 0
      %1895 = vmatprep.subr.bf16.mxu0 0
      %1896 = vmatpush2.bf16.msra.mxu0 0
      %1897 = vmatprep.subr.bf16.mxu0 0
      %1898 = vmatpush2.bf16.msra.mxu0 0
      %1899 = vmatprep.mubr.bf16.mxu0 0
      %1900 = vmatmul.mubr.bf16.gmra.mxu0 %v1862
      %v1901 = vpop.f32.mrf.mxu0
      %v1902 = vadd.f32 0.0, %v1901
      %v1903 = vpop.f32.mrf.mxu0
      %v1904 = vpop.f32.mrf.mxu0
      %v1905 = vpop.f32.mrf.mxu0
      %1906 = vdwg.mxu0
      %v1907 = vld [vmem:[%s1209 + $0x1c] sm:$0xf]
      %v1908 = vpack.c.bf16 %v1902, %v1902
      %v1910 = vsel %vm377, %v1908, 0
      %v1913 = vsel %vm441, %v1907, 0
      %1915 = vmatprep.subr.bf16.mxu0 0
      %1916 = vmatpush1.bf16.msra.mxu0 0
      %1917 = vmatprep.subr.bf16.mxu0 0
      %1918 = vmatpush1.bf16.msra.mxu0 0
      %1919 = vmatprep.subr.bf16.mxu0 0
      %1920 = vmatpush1.bf16.msra.mxu0 0
      %1921 = vmatprep.subr.bf16.mxu0 0
      %1922 = vmatpush1.bf16.msra.mxu0 0
      %1923 = vmatprep.subr.bf16.mxu0 0
      %1924 = vmatpush1.bf16.msra.mxu0 0
      %1925 = vmatprep.subr.bf16.mxu0 0
      %1926 = vmatpush1.bf16.msra.mxu0 0
      %1927 = vmatprep.subr.bf16.mxu0 0
      %1928 = vmatpush1.bf16.msra.mxu0 0
      %1929 = vmatprep.subr.bf16.mxu0 0
      %1930 = vmatpush1.bf16.msra.mxu0 %v1913
      %1931 = vmatprep.subr.bf16.mxu0 0
      %1932 = vmatpush2.bf16.msra.mxu0 0
      %1933 = vmatprep.subr.bf16.mxu0 0
      %1934 = vmatpush2.bf16.msra.mxu0 0
      %1935 = vmatprep.subr.bf16.mxu0 0
      %1936 = vmatpush2.bf16.msra.mxu0 0
      %1937 = vmatprep.subr.bf16.mxu0 0
      %1938 = vmatpush2.bf16.msra.mxu0 0
      %1939 = vmatprep.subr.bf16.mxu0 0
      %1940 = vmatpush2.bf16.msra.mxu0 0
      %1941 = vmatprep.subr.bf16.mxu0 0
      %1942 = vmatpush2.bf16.msra.mxu0 0
      %1943 = vmatprep.subr.bf16.mxu0 0
      %1944 = vmatpush2.bf16.msra.mxu0 0
      %1945 = vmatprep.subr.bf16.mxu0 0
      %1946 = vmatpush2.bf16.msra.mxu0 0
      %1947 = vmatprep.mubr.bf16.mxu0 0
      %1948 = vmatmul.mubr.bf16.gmra.mxu0 %v1910
      %v1949 = vpop.f32.mrf.mxu0
      %v1950 = vadd.f32 0.0, %v1949
      %v1951 = vpop.f32.mrf.mxu0
      %v1952 = vpop.f32.mrf.mxu0
      %v1953 = vpop.f32.mrf.mxu0
      %1954 = vdwg.mxu0
      %v1955 = vadd.f32 %v1796, %v1950
      %v1956 = vlaneseq
      %v1957 = vshrl.u32 %v1956, 7
      %v1958 = vsub.s32 0, %v1957
      %v1959 = vrot.slane %v1228, %v1958
      %v1960 = vadd.f32 %v1955, %v1959
      %v1961 = vadd.f32 %v1960, %v1208
      %v1962 = vsel %vm279, %v1961, 0.0
      %1963 = vadd.xlane.f32.xlu0 %v1962
      %v1964 = vpop.xlane.xlu0 %1963
      %v1965 = vrot.slane %v1964, 4
      %v1966 = vadd.f32 %v1964, %v1965
      %v1967 = vrot.slane %v1966, 2
      %v1968 = vadd.f32 %v1966, %v1967
      %v1969 = vrot.slane %v1968, 1
      %v1970 = vadd.f32 %v1968, %v1969
      %v1971 = vmul.f32 %v1970, 0.00390625
      %v1972 = vsub.f32 %v1961, %v1971
      %v1973 = vmul.f32 %v1972, %v1972
      %v1974 = vsel %vm279, %v1973, 0.0
      %1975 = vadd.xlane.f32.xlu0 %v1974
      %v1976 = vpop.xlane.xlu0 %1975
      %v1977 = vrot.slane %v1976, 4
      %v1978 = vadd.f32 %v1976, %v1977
      %v1979 = vrot.slane %v1978, 2
      %v1980 = vadd.f32 %v1978, %v1979
      %v1981 = vrot.slane %v1980, 1
      %v1982 = vadd.f32 %v1980, %v1981
      %v1983 = vmul.f32 %v1982, 0.00390625
      %v1984 = vadd.f32 %v1983, 1e-05
      %v1985 = vrsqrt.pop %v1984
      %v1986 = vmul.f32 %v1972, %v1985
      %v1987 = vmul.f32 %v1986, %v1233
      %v1988 = vadd.f32 %v1987, %v1234
      %v1989 = vpack.c.bf16 %v1988, %v1988
      %v1990 = vlaneseq
      %v1991 = vshrl.u32 %v1990, 7
      %v1992 = vsub.s32 0, %v1991
      %v1993 = vrot.slane %v1229, %v1992
      %v1998 = vunpack.c.l.b16 %v1214
      %v1999 = vunpack.c.l.b16 %v1215
      %v2000 = vunpack.c.l.b16 %v1216
      %v2001 = vunpack.c.l.b16 %v1217
      %v2002 = vpack.c.b16 %v1999, %v1998
      %v2003 = vpack.c.b16 %v2001, %v2000
      %v2007 = vsel %vm279, %v1989, 0
      %2009 = vmatprep.subr.bf16.mxu0 0
      %2010 = vmatpush1.bf16.msra.mxu0 0
      %2011 = vmatprep.subr.bf16.mxu0 0
      %2012 = vmatpush1.bf16.msra.mxu0 0
      %2013 = vmatprep.subr.bf16.mxu0 0
      %2014 = vmatpush1.bf16.msra.mxu0 0
      %2015 = vmatprep.subr.bf16.mxu0 0
      %2016 = vmatpush1.bf16.msra.mxu0 0
      %2017 = vmatprep.subr.bf16.mxu0 0
      %2018 = vmatpush1.bf16.msra.mxu0 0
      %2019 = vmatprep.subr.bf16.mxu0 0
      %2020 = vmatpush1.bf16.msra.mxu0 0
      %2021 = vmatprep.subr.bf16.mxu0 0
      %2022 = vmatpush1.bf16.msra.mxu0 %v2003
      %2023 = vmatprep.subr.bf16.mxu0 0
      %2024 = vmatpush1.bf16.msra.mxu0 %v2002
      %2025 = vmatprep.subr.bf16.mxu0 0
      %2026 = vmatpush2.bf16.msra.mxu0 0
      %2027 = vmatprep.subr.bf16.mxu0 0
      %2028 = vmatpush2.bf16.msra.mxu0 0
      %2029 = vmatprep.subr.bf16.mxu0 0
      %2030 = vmatpush2.bf16.msra.mxu0 0
      %2031 = vmatprep.subr.bf16.mxu0 0
      %2032 = vmatpush2.bf16.msra.mxu0 0
      %2033 = vmatprep.subr.bf16.mxu0 0
      %2034 = vmatpush2.bf16.msra.mxu0 0
      %2035 = vmatprep.subr.bf16.mxu0 0
      %2036 = vmatpush2.bf16.msra.mxu0 0
      %2037 = vmatprep.subr.bf16.mxu0 0
      %2038 = vmatpush2.bf16.msra.mxu0 0
      %2039 = vmatprep.subr.bf16.mxu0 0
      %2040 = vmatpush2.bf16.msra.mxu0 0
      %2041 = vmatprep.mubr.bf16.mxu0 0
      %2042 = vmatmul.mubr.bf16.gmra.mxu0 %v2007
      %v2043 = vpop.f32.mrf.mxu0
      %v2044 = vadd.f32 %v1993, %v2043
      %v2045 = vpop.f32.mrf.mxu0
      %v2046 = vpop.f32.mrf.mxu0
      %v2047 = vpop.f32.mrf.mxu0
      %2048 = vdwg.mxu0
      %v2049 = vmul.f32 %v2044, 0.5
      %v2050 = vmul.f32 %v2044, 0.70710677
      %vm2051 = vcmp.ge.f32.partialorder %v2050, 0.0
      %v2052 = vsel %vm2051, 1.0, -1.0
      %v2053 = vmul.f32 %v2050, %v2052
      %v2054 = vmul.f32 %v2053, 0.3275911
      %v2055 = vadd.f32 %v2054, 1.0
      %v2056 = vrcp.pop %v2055
      %v2057 = vmul.f32 1.0, %v2056
      %v2058 = vmul.f32 %v2057, 1.0614054
      %v2059 = vadd.f32 %v2058, -1.4531521
      %v2060 = vmul.f32 %v2059, %v2057
      %v2061 = vadd.f32 %v2060, 1.4214138
      %v2062 = vmul.f32 %v2061, %v2057
      %v2063 = vadd.f32 %v2062, -0.28449672
      %v2064 = vmul.f32 %v2063, %v2057
      %v2065 = vadd.f32 %v2064, 0.2548296
      %v2066 = vmul.f32 %v2065, %v2057
      %v2067 = vsub.f32 0.0, %v2053
      %v2068 = vmul.f32 %v2067, %v2053
      %v2069 = vmul.f32 %v2068, 1.442695
      %v2070 = vpow.pop %v2069
      %v2071 = vmul.f32 %v2066, %v2070
      %v2072 = vsub.f32 1.0, %v2071
      %v2073 = vmul.f32 %v2052, %v2072
      %v2074 = vadd.f32 %v2073, 1.0
      %v2075 = vmul.f32 %v2049, %v2074
      %v2076 = vpack.c.bf16 %v2075, %v2075
      %v2077 = vlaneseq
      %v2078 = vshrl.u32 %v2077, 7
      %v2079 = vsub.s32 0, %v2078
      %v2080 = vrot.slane %v1230, %v2079
      %v2089 = vunpack.c.l.b16 %v1218
      %v2090 = vunpack.c.l.b16 %v1219
      %v2091 = vunpack.c.l.b16 %v1220
      %v2092 = vunpack.c.l.b16 %v1221
      %v2093 = vunpack.c.l.b16 %v1222
      %v2094 = vunpack.c.l.b16 %v1223
      %v2095 = vunpack.c.l.b16 %v1224
      %v2096 = vunpack.c.l.b16 %v1225
      %v2097 = vpack.c.b16 %v2090, %v2089
      %v2098 = vpack.c.b16 %v2092, %v2091
      %v2099 = vpack.c.b16 %v2094, %v2093
      %v2100 = vpack.c.b16 %v2096, %v2095
      %v2106 = vsel %vm1158, %v2076, 0
      %2108 = vmatprep.subr.bf16.mxu0 0
      %2109 = vmatpush1.bf16.msra.mxu0 0
      %2110 = vmatprep.subr.bf16.mxu0 0
      %2111 = vmatpush1.bf16.msra.mxu0 0
      %2112 = vmatprep.subr.bf16.mxu0 0
      %2113 = vmatpush1.bf16.msra.mxu0 0
      %2114 = vmatprep.subr.bf16.mxu0 0
      %2115 = vmatpush1.bf16.msra.mxu0 0
      %2116 = vmatprep.subr.bf16.mxu0 0
      %2117 = vmatpush1.bf16.msra.mxu0 %v2100
      %2118 = vmatprep.subr.bf16.mxu0 0
      %2119 = vmatpush1.bf16.msra.mxu0 %v2099
      %2120 = vmatprep.subr.bf16.mxu0 0
      %2121 = vmatpush1.bf16.msra.mxu0 %v2098
      %2122 = vmatprep.subr.bf16.mxu0 0
      %2123 = vmatpush1.bf16.msra.mxu0 %v2097
      %2124 = vmatprep.subr.bf16.mxu0 0
      %2125 = vmatpush2.bf16.msra.mxu0 0
      %2126 = vmatprep.subr.bf16.mxu0 0
      %2127 = vmatpush2.bf16.msra.mxu0 0
      %2128 = vmatprep.subr.bf16.mxu0 0
      %2129 = vmatpush2.bf16.msra.mxu0 0
      %2130 = vmatprep.subr.bf16.mxu0 0
      %2131 = vmatpush2.bf16.msra.mxu0 0
      %2132 = vmatprep.subr.bf16.mxu0 0
      %2133 = vmatpush2.bf16.msra.mxu0 0
      %2134 = vmatprep.subr.bf16.mxu0 0
      %2135 = vmatpush2.bf16.msra.mxu0 0
      %2136 = vmatprep.subr.bf16.mxu0 0
      %2137 = vmatpush2.bf16.msra.mxu0 0
      %2138 = vmatprep.subr.bf16.mxu0 0
      %2139 = vmatpush2.bf16.msra.mxu0 0
      %2140 = vmatprep.mubr.bf16.mxu0 0
      %2141 = vmatmul.mubr.bf16.gmra.mxu0 %v2106
      %v2142 = vpop.f32.mrf.mxu0
      %v2143 = vadd.f32 %v2080, %v2142
      %v2144 = vpop.f32.mrf.mxu0
      %v2145 = vpop.f32.mrf.mxu0
      %v2146 = vpop.f32.mrf.mxu0
      %2147 = vdwg.mxu0
      %v2148 = vadd.f32 %v2143, %v1961
      %v2149 = vmul.f32 %v2148, %v1206
      %2150 = vst.msk [vmem:[%s250] sm:$0xff] %vm279, %v2149
      %p2151 = scmp.lt.s32.totalorder %s16, 1
      %s2152 = scalar_select %p2151, %s16, 1
      %s2153 = smul.addr %s2152, 8
      %s2154 = scalar_lea.vmem %s5, %s2153
      // Predicated region
      $region41: #{_lambda_.1} parent=39 // pred_check
        %p2155 = pneg %p154
      $region42: #{_lambda_.1} parent=39 // pred_check_branch
        %2157 = sbr.rel (%p2155) target = $region44
      $region43: #{_lambda_.1} parent=39 // pred_region
        _
      $region44: #{_lambda_.1} parent=39 // pred_fallthru
        _
    $region40: #{_lambda_.1} parent=5 // pred_fallthru
      _
    %p2158 = scmp.le.s32.totalorder 2, %s11
    // Predicated region
    $region45: #{_lambda_.1} parent=5 // pred_check
      %p2159 = pneg %p2158
    $region46: #{_lambda_.1} parent=5 // pred_check_branch
      %2161 = sbr.rel (%p2159) target = $region48
    $region47: #{_lambda_.1} parent=5 // pred_region
      %s2162 = ssub.s32 %s11, 2
      // Predicated region
      $region49: #{_lambda_.1} parent=47 // pred_check
        %p2163 = pneg %p160
      $region50: #{_lambda_.1} parent=47 // pred_check_branch
        %2165 = sbr.rel (%p2163) target = $region52
      $region51: #{_lambda_.1} parent=47 // pred_region
        %p2166 = scmp.lt.s32.totalorder %s17, 1
        %s2167 = scalar_select %p2166, %s17, 1
        %s2168 = smul.addr %s2167, 8
        %s2169 = scalar_lea.vmem %s5, %s2168
      $region52: #{_lambda_.1} parent=47 // pred_fallthru
        _
    $region48: #{_lambda_.1} parent=5 // pred_fallthru
      _
  $region6: #{_lambda_.1} parent=0 // loop_footer
    %s15 = sadd.s32 1, %s11
  $region7: #{_lambda_.1} parent=0 // loop_footer_branch
    %10 = sbr.rel target = $region3
  $region8: #{_lambda_.1} parent=0 // loop_exit
    _

</llo_original>
